<compile_context>
chip_gen: v7x
topology: tpu7x:2x2x1
jax: 0.10.0
libtpu: 0.0.40
codegen_flags: <defaults>
</compile_context>

<pallas_src>
import functools

import jax
import jax.numpy as jnp
from jax.experimental import pallas as pl
from jax.experimental.pallas import tpu as pltpu


def _protonet_kernel(*refs, dims):
    """Runs the whole conv stack for one batch-block of images (one grid step).

    refs layout:
      refs[0]              : x_ref     (B, H0, W0, C0)      NHWC input tile (f32)
      refs[1+3l : 4+3l]    : w_ref     (9, Cin_l, Cout_l)   bf16, rows ordered (dy, dx)
                             scale_ref (1, Cout_l)          fused eval-mode BN (f32)
                             bias_ref  (1, Cout_l)
      refs[1+3L]           : out_ref   (B, HL, WL, CL)      final pooled feature map (NHWC)
      refs[2+3L:]          : per-layer scratch:
                             pad (B, H+2, W+2, Cin)  zero-halo padded activations (f32)
                             y   (B, H//2, W, Cout)  post-H-pool staging (f32)
    """
    L = len(dims)
    x_ref = refs[0]
    out_ref = refs[1 + 3 * L]
    scr = refs[2 + 3 * L:]
    B = x_ref.shape[0]

    cur = x_ref[...]                                    # (B, H, W, Cin) current activations, f32
    for li, (H, W, Cin, Cout) in enumerate(dims):
        w_ref = refs[1 + 3 * li]
        scale_ref = refs[2 + 3 * li]
        bias_ref = refs[3 + 3 * li]
        pad_ref = scr[2 * li]                           # (B, H+2, W+2, Cin)
        y_ref = scr[2 * li + 1]                         # (B, H//2, W, Cout)
        Hh, Wh = H // 2, W // 2
        M = B * H * W

        # ---- zero only the 1-wide halo ring; interior is fully overwritten below ----
        zrow = jnp.zeros((B, 1, W + 2, Cin), jnp.float32)
        zcol = jnp.zeros((B, H + 2, 1, Cin), jnp.float32)
        pad_ref[:, 0:1, :, :] = zrow
        pad_ref[:, H + 1:H + 2, :, :] = zrow
        pad_ref[:, :, 0:1, :] = zcol
        pad_ref[:, :, W + 1:W + 2, :] = zcol
        pad_ref[:, 1:H + 1, 1:W + 1, :] = cur

        # ---- conv: 9 shifted MXU matmuls straight from pad, bf16 operands / f32 accumulation ----
        acc = jnp.zeros((M, Cout), jnp.float32)
        for dy in range(3):
            for dx in range(3):
                a = pad_ref[:, dy:dy + H, dx:dx + W, :].reshape(M, Cin)
                acc = acc + jnp.dot(a.astype(jnp.bfloat16), w_ref[dy * 3 + dx],
                                    preferred_element_type=jnp.float32)

        # ---- fused eval-mode BatchNorm + ReLU (f32 on the VPU) ----
        y = jnp.maximum(acc * scale_ref[...] + bias_ref[...], 0.0)      # (M, Cout)

        # ---- MaxPool2d(2): H-pool in registers first, then stride-2 W reads from staging ----
        y4 = y.reshape(B * Hh, 2, W, Cout)                               # leading-dim split only
        hmax = jnp.maximum(y4[:, 0, :, :], y4[:, 1, :, :])               # (B*Hh, W, Cout)
        y_ref[...] = hmax.reshape(B, Hh, W, Cout)
        cur = jnp.maximum(y_ref[:, :, pl.ds(0, Wh, 2), :],               # pool over W
                          y_ref[:, :, pl.ds(1, Wh, 2), :])               # (B, Hh, Wh, Cout)

    out_ref[...] = cur.astype(out_ref.dtype)


def _pick_batch_block(n, h0, w0):
    """Pick the per-step batch block B: B divides N, the grid N//B stays a multiple of 2 when
    possible (both v7x TensorCores busy), and M = B*H0*W0 <= 512 (register pressure bound)."""
    divisors = [b for b in range(1, n + 1) if n % b == 0]
    even_grid = [b for b in divisors if (n // b) % 2 == 0]
    pool = even_grid if even_grid else divisors
    best = 1
    for b in pool:
        if b * h0 * w0 <= 512:
            best = max(best, b)
    return best


def protonet_forward(x_nchw, params, batch_block=None):
    """Full ProtoNet forward. x_nchw: (N, C, H, W); params: list of (conv_w_hwio, bn_scale, bn_bias)."""
    N, C0, H0, W0 = x_nchw.shape

    # static per-layer shapes
    dims = []
    h, w, c = H0, W0, C0
    for (wt, _, _) in params:
        assert h % 2 == 0 and w % 2 == 0, "spatial dims must be even for MaxPool2d(2)"
        cout = wt.shape[-1]
        dims.append((h, w, c, cout))
        h, w, c = h // 2, w // 2, cout
    HL, WL, CL = h, w, c

    B = batch_block if batch_block is not None else _pick_batch_block(N, H0, W0)
    assert N % B == 0
    G = N // B

    x_nhwc = jnp.transpose(x_nchw, (0, 2, 3, 1)).astype(jnp.float32)    # NCHW -> NHWC

    inputs = [x_nhwc]
    in_specs = [pl.BlockSpec((B, H0, W0, C0), lambda n: (n, 0, 0, 0))]
    scratch = []
    for (wt, sc, bi), (lh, lw, ci, co) in zip(params, dims):
        inputs += [wt.reshape(9, ci, co).astype(jnp.bfloat16),          # taps ordered (dy, dx)
                   sc.reshape(1, co).astype(jnp.float32),
                   bi.reshape(1, co).astype(jnp.float32)]
        in_specs += [pl.BlockSpec((9, ci, co), lambda n: (0, 0, 0)),
                     pl.BlockSpec((1, co), lambda n: (0, 0)),
                     pl.BlockSpec((1, co), lambda n: (0, 0))]
        scratch += [pltpu.VMEM((B, lh + 2, lw + 2, ci), jnp.float32),    # padded activations
                    pltpu.VMEM((B, lh // 2, lw, co), jnp.float32)]       # post-H-pool staging

    kernel = functools.partial(_protonet_kernel, dims=tuple(dims))
    feat_nhwc = pl.pallas_call(
        kernel,
        out_shape=jax.ShapeDtypeStruct((N, HL, WL, CL), jnp.float32),
        grid_spec=pltpu.PrefetchScalarGridSpec(
            num_scalar_prefetch=0,
            grid=(G,),
            in_specs=in_specs,
            out_specs=pl.BlockSpec((B, HL, WL, CL), lambda n: (n, 0, 0, 0)),
            scratch_shapes=scratch,
        ),
        compiler_params=pltpu.CompilerParams(
            dimension_semantics=("parallel",),           # batch blocks split across TCs on v7x
            vmem_limit_bytes=32 * 1024 * 1024),          # padded scratch is << 1 MiB per core
    )(*inputs)

    # wrapper-side layout plumbing: NHWC feature map -> PyTorch NCHW flatten, x.view(N, -1)
    return jnp.transpose(feat_nhwc, (0, 3, 1, 2)).reshape(N, -1)


def init_params(key, in_channels, num_filters):
    """Deterministic synthetic parameters (conv weight + fused eval-mode BN scale/bias)."""
    params = []
    c_in = in_channels
    for i, c_out in enumerate(num_filters):
        kw, kg, kb, km, kv = jax.random.split(jax.random.fold_in(key, i), 5)
        fan_in = float(c_in * 9)
        w = jax.random.normal(kw, (3, 3, c_in, c_out), jnp.float32) / (fan_in ** 0.5)
        gamma = 1.0 + 0.1 * jax.random.normal(kg, (c_out,), jnp.float32)
        beta = 0.1 * jax.random.normal(kb, (c_out,), jnp.float32)
        running_mean = 0.1 * jax.random.normal(km, (c_out,), jnp.float32)
        running_var = 1.0 + 0.1 * jax.random.uniform(kv, (c_out,), jnp.float32)
        scale = gamma / jnp.sqrt(running_var + 1e-5)
        bias = beta - running_mean * scale
        params.append((w, scale, bias))
        c_in = c_out
    return params


def reference_forward(x_nchw, params, matmul_dtype=jnp.float32):
    """Pure-JAX reference (XLA conv / reduce_window). `matmul_dtype=bfloat16` mirrors the kernel's
    MXU operand precision (f32 accumulation either way); BN/ReLU/pool stay f32."""
    x = jnp.transpose(x_nchw, (0, 2, 3, 1)).astype(jnp.float32)
    for (w, scale, bias) in params:
        y = jax.lax.conv_general_dilated(
            x.astype(matmul_dtype), w.astype(matmul_dtype),
            window_strides=(1, 1), padding=((1, 1), (1, 1)),
            dimension_numbers=("NHWC", "HWIO", "NHWC"),
            preferred_element_type=jnp.float32)
        y = jnp.maximum(y * scale + bias, 0.0)
        y = jax.lax.reduce_window(y, -jnp.inf, jax.lax.max,
                                  (1, 2, 2, 1), (1, 2, 2, 1), "VALID")
        x = y
    xo = jnp.transpose(x, (0, 3, 1, 2))
    return xo.reshape(xo.shape[0], -1)


if __name__ == "__main__":
    # config equivalent: {'model': {'input_channels': 4, 'num_layers': 2, 'num_filters': [16, 32]}}
    N, C_IN, S = 2, 4, 16
    NUM_FILTERS = [16, 32]

    key = jax.random.PRNGKey(0)
    kx, kp = jax.random.split(key)
    x = jax.random.normal(kx, (N, C_IN, S, S), jnp.float32)     # PyTorch-style NCHW input
    params = init_params(kp, C_IN, NUM_FILTERS)

    out = protonet_forward(x, params)
    out = jax.block_until_ready(out)

    ref_bf16 = reference_forward(x, params, matmul_dtype=jnp.bfloat16)   # precision-matched ref
    ref_f32 = reference_forward(x, params, matmul_dtype=jnp.float32)     # module-exact f32 ref
    assert out.shape == (N, NUM_FILTERS[-1] * (S // (2 ** len(NUM_FILTERS))) ** 2), out.shape
    assert jnp.allclose(out, ref_bf16, rtol=2e-3, atol=2e-3), "mismatch vs bf16-matched reference"
    assert jnp.allclose(out, ref_f32, rtol=5e-2, atol=5e-2), "mismatch vs f32 reference"

    print("KERNEL_OK")
</pallas_src>

<mosaic_0001>
module attributes {stable_mosaic.version = 11 : i64} {
  func.func @_protonet_kernel(%arg0: i32, %arg1: memref<1x16x16x4xf32, #tpu.memory_space<vmem>>, %arg2: memref<9x4x16xbf16, #tpu.memory_space<vmem>>, %arg3: memref<1x16xf32, #tpu.memory_space<vmem>>, %arg4: memref<1x16xf32, #tpu.memory_space<vmem>>, %arg5: memref<9x16x32xbf16, #tpu.memory_space<vmem>>, %arg6: memref<1x32xf32, #tpu.memory_space<vmem>>, %arg7: memref<1x32xf32, #tpu.memory_space<vmem>>, %arg8: memref<1x4x4x32xf32, #tpu.memory_space<vmem>>, %arg9: memref<1x18x18x4xf32, #tpu.memory_space<vmem>>, %arg10: memref<1x8x16x16xf32, #tpu.memory_space<vmem>>, %arg11: memref<1x10x10x16xf32, #tpu.memory_space<vmem>>, %arg12: memref<1x4x8x32xf32, #tpu.memory_space<vmem>>) attributes {dimension_semantics = [#tpu.dimension_semantics<parallel>], iteration_bounds = array<i64: 2>, scalar_prefetch = 0 : i64, scratch_operands = 4 : i64, tpu.core_type = #tpu.core_type<tc>, window_params = [{transform_indices = @transform_0, window_bounds = array<i64: 1, 16, 16, 4>}, {pipeline_mode = #tpu.pipeline_mode<synchronous>, transform_indices = @transform_1, window_bounds = array<i64: 9, 4, 16>}, {pipeline_mode = #tpu.pipeline_mode<synchronous>, transform_indices = @transform_2, window_bounds = array<i64: 1, 16>}, {pipeline_mode = #tpu.pipeline_mode<synchronous>, transform_indices = @transform_3, window_bounds = array<i64: 1, 16>}, {pipeline_mode = #tpu.pipeline_mode<synchronous>, transform_indices = @transform_4, window_bounds = array<i64: 9, 16, 32>}, {pipeline_mode = #tpu.pipeline_mode<synchronous>, transform_indices = @transform_5, window_bounds = array<i64: 1, 32>}, {pipeline_mode = #tpu.pipeline_mode<synchronous>, transform_indices = @transform_6, window_bounds = array<i64: 1, 32>}, {transform_indices = @transform_7, window_bounds = array<i64: 1, 4, 4, 32>}]} {
    %c0 = arith.constant 0 : index
    %c0_0 = arith.constant 0 : index
    %c0_1 = arith.constant 0 : index
    %c0_2 = arith.constant 0 : index
    %0 = vector.load %arg1[%c0, %c0_0, %c0_1, %c0_2] : memref<1x16x16x4xf32, #tpu.memory_space<vmem>>, vector<1x16x16x4xf32>
    %cst = arith.constant 0.000000e+00 : f32
    %1 = vector.broadcast %cst : f32 to vector<1x1x18x4xf32>
    %cst_3 = arith.constant 0.000000e+00 : f32
    %2 = vector.broadcast %cst_3 : f32 to vector<1x18x1x4xf32>
    %c0_4 = arith.constant 0 : index
    %c0_5 = arith.constant 0 : index
    %c0_6 = arith.constant 0 : index
    %c0_7 = arith.constant 0 : index
    %3 = vector.load %arg9[%c0_4, %c0_5, %c0_6, %c0_7] : memref<1x18x18x4xf32, #tpu.memory_space<vmem>>, vector<1x1x18x4xf32>
    tpu.vector_store %arg9[%c0_4, %c0_5, %c0_6, %c0_7], %1 {strides = array<i32>} : memref<1x18x18x4xf32, #tpu.memory_space<vmem>>, vector<1x1x18x4xf32>,
    %c0_8 = arith.constant 0 : index
    %c17 = arith.constant 17 : index
    %c0_9 = arith.constant 0 : index
    %c0_10 = arith.constant 0 : index
    %4 = vector.load %arg9[%c0_8, %c17, %c0_9, %c0_10] : memref<1x18x18x4xf32, #tpu.memory_space<vmem>>, vector<1x1x18x4xf32>
    tpu.vector_store %arg9[%c0_8, %c17, %c0_9, %c0_10], %1 {strides = array<i32>} : memref<1x18x18x4xf32, #tpu.memory_space<vmem>>, vector<1x1x18x4xf32>,
    %c0_11 = arith.constant 0 : index
    %c0_12 = arith.constant 0 : index
    %c0_13 = arith.constant 0 : index
    %c0_14 = arith.constant 0 : index
    %5 = vector.load %arg9[%c0_11, %c0_12, %c0_13, %c0_14] : memref<1x18x18x4xf32, #tpu.memory_space<vmem>>, vector<1x18x1x4xf32>
    tpu.vector_store %arg9[%c0_11, %c0_12, %c0_13, %c0_14], %2 {strides = array<i32>} : memref<1x18x18x4xf32, #tpu.memory_space<vmem>>, vector<1x18x1x4xf32>,
    %c0_15 = arith.constant 0 : index
    %c0_16 = arith.constant 0 : index
    %c17_17 = arith.constant 17 : index
    %c0_18 = arith.constant 0 : index
    %6 = vector.load %arg9[%c0_15, %c0_16, %c17_17, %c0_18] : memref<1x18x18x4xf32, #tpu.memory_space<vmem>>, vector<1x18x1x4xf32>
    tpu.vector_store %arg9[%c0_15, %c0_16, %c17_17, %c0_18], %2 {strides = array<i32>} : memref<1x18x18x4xf32, #tpu.memory_space<vmem>>, vector<1x18x1x4xf32>,
    %c0_19 = arith.constant 0 : index
    %c1 = arith.constant 1 : index
    %c1_20 = arith.constant 1 : index
    %c0_21 = arith.constant 0 : index
    %7 = vector.load %arg9[%c0_19, %c1, %c1_20, %c0_21] : memref<1x18x18x4xf32, #tpu.memory_space<vmem>>, vector<1x16x16x4xf32>
    tpu.vector_store %arg9[%c0_19, %c1, %c1_20, %c0_21], %0 {strides = array<i32>} : memref<1x18x18x4xf32, #tpu.memory_space<vmem>>, vector<1x16x16x4xf32>,
    %cst_22 = arith.constant 0.000000e+00 : f32
    %8 = vector.broadcast %cst_22 : f32 to vector<256x16xf32>
    %c0_23 = arith.constant 0 : index
    %c0_24 = arith.constant 0 : index
    %c0_25 = arith.constant 0 : index
    %c0_26 = arith.constant 0 : index
    %9 = vector.load %arg9[%c0_23, %c0_24, %c0_25, %c0_26] : memref<1x18x18x4xf32, #tpu.memory_space<vmem>>, vector<1x16x16x4xf32>
    %10 = vector.shape_cast %9 : vector<1x16x16x4xf32> to vector<256x4xf32>
    %11 = arith.truncf %10 : vector<256x4xf32> to vector<256x4xbf16>
    %c0_27 = arith.constant 0 : index
    %c0_28 = arith.constant 0 : index
    %c0_29 = arith.constant 0 : index
    %12 = vector.load %arg2[%c0_27, %c0_28, %c0_29] : memref<9x4x16xbf16, #tpu.memory_space<vmem>>, vector<1x4x16xbf16>
    %13 = vector.shape_cast %12 : vector<1x4x16xbf16> to vector<4x16xbf16>
    %cst_30 = arith.constant dense<0.000000e+00> : vector<256x16xf32>
    %14 = tpu.matmul %11, %13, %cst_30 {dimension_numbers = #tpu.dot_dimension_numbers<[1], [0], [0], [1], [0, 0, 1, 1], [], []>} : vector<256x4xbf16>, vector<4x16xbf16>, vector<256x16xf32> -> vector<256x16xf32>
    %15 = arith.addf %8, %14 : vector<256x16xf32>
    %c0_31 = arith.constant 0 : index
    %c0_32 = arith.constant 0 : index
    %c1_33 = arith.constant 1 : index
    %c0_34 = arith.constant 0 : index
    %16 = vector.load %arg9[%c0_31, %c0_32, %c1_33, %c0_34] : memref<1x18x18x4xf32, #tpu.memory_space<vmem>>, vector<1x16x16x4xf32>
    %17 = vector.shape_cast %16 : vector<1x16x16x4xf32> to vector<256x4xf32>
    %18 = arith.truncf %17 : vector<256x4xf32> to vector<256x4xbf16>
    %c1_35 = arith.constant 1 : index
    %c0_36 = arith.constant 0 : index
    %c0_37 = arith.constant 0 : index
    %19 = vector.load %arg2[%c1_35, %c0_36, %c0_37] : memref<9x4x16xbf16, #tpu.memory_space<vmem>>, vector<1x4x16xbf16>
    %20 = vector.shape_cast %19 : vector<1x4x16xbf16> to vector<4x16xbf16>
    %cst_38 = arith.constant dense<0.000000e+00> : vector<256x16xf32>
    %21 = tpu.matmul %18, %20, %cst_38 {dimension_numbers = #tpu.dot_dimension_numbers<[1], [0], [0], [1], [0, 0, 1, 1], [], []>} : vector<256x4xbf16>, vector<4x16xbf16>, vector<256x16xf32> -> vector<256x16xf32>
    %22 = arith.addf %15, %21 : vector<256x16xf32>
    %c0_39 = arith.constant 0 : index
    %c0_40 = arith.constant 0 : index
    %c2 = arith.constant 2 : index
    %c0_41 = arith.constant 0 : index
    %23 = vector.load %arg9[%c0_39, %c0_40, %c2, %c0_41] : memref<1x18x18x4xf32, #tpu.memory_space<vmem>>, vector<1x16x16x4xf32>
    %24 = vector.shape_cast %23 : vector<1x16x16x4xf32> to vector<256x4xf32>
    %25 = arith.truncf %24 : vector<256x4xf32> to vector<256x4xbf16>
    %c2_42 = arith.constant 2 : index
    %c0_43 = arith.constant 0 : index
    %c0_44 = arith.constant 0 : index
    %26 = vector.load %arg2[%c2_42, %c0_43, %c0_44] : memref<9x4x16xbf16, #tpu.memory_space<vmem>>, vector<1x4x16xbf16>
    %27 = vector.shape_cast %26 : vector<1x4x16xbf16> to vector<4x16xbf16>
    %cst_45 = arith.constant dense<0.000000e+00> : vector<256x16xf32>
    %28 = tpu.matmul %25, %27, %cst_45 {dimension_numbers = #tpu.dot_dimension_numbers<[1], [0], [0], [1], [0, 0, 1, 1], [], []>} : vector<256x4xbf16>, vector<4x16xbf16>, vector<256x16xf32> -> vector<256x16xf32>
    %29 = arith.addf %22, %28 : vector<256x16xf32>
    %c0_46 = arith.constant 0 : index
    %c1_47 = arith.constant 1 : index
    %c0_48 = arith.constant 0 : index
    %c0_49 = arith.constant 0 : index
    %30 = vector.load %arg9[%c0_46, %c1_47, %c0_48, %c0_49] : memref<1x18x18x4xf32, #tpu.memory_space<vmem>>, vector<1x16x16x4xf32>
    %31 = vector.shape_cast %30 : vector<1x16x16x4xf32> to vector<256x4xf32>
    %32 = arith.truncf %31 : vector<256x4xf32> to vector<256x4xbf16>
    %c3 = arith.constant 3 : index
    %c0_50 = arith.constant 0 : index
    %c0_51 = arith.constant 0 : index
    %33 = vector.load %arg2[%c3, %c0_50, %c0_51] : memref<9x4x16xbf16, #tpu.memory_space<vmem>>, vector<1x4x16xbf16>
    %34 = vector.shape_cast %33 : vector<1x4x16xbf16> to vector<4x16xbf16>
    %cst_52 = arith.constant dense<0.000000e+00> : vector<256x16xf32>
    %35 = tpu.matmul %32, %34, %cst_52 {dimension_numbers = #tpu.dot_dimension_numbers<[1], [0], [0], [1], [0, 0, 1, 1], [], []>} : vector<256x4xbf16>, vector<4x16xbf16>, vector<256x16xf32> -> vector<256x16xf32>
    %36 = arith.addf %29, %35 : vector<256x16xf32>
    %c0_53 = arith.constant 0 : index
    %c1_54 = arith.constant 1 : index
    %c1_55 = arith.constant 1 : index
    %c0_56 = arith.constant 0 : index
    %37 = vector.load %arg9[%c0_53, %c1_54, %c1_55, %c0_56] : memref<1x18x18x4xf32, #tpu.memory_space<vmem>>, vector<1x16x16x4xf32>
    %38 = vector.shape_cast %37 : vector<1x16x16x4xf32> to vector<256x4xf32>
    %39 = arith.truncf %38 : vector<256x4xf32> to vector<256x4xbf16>
    %c4 = arith.constant 4 : index
    %c0_57 = arith.constant 0 : index
    %c0_58 = arith.constant 0 : index
    %40 = vector.load %arg2[%c4, %c0_57, %c0_58] : memref<9x4x16xbf16, #tpu.memory_space<vmem>>, vector<1x4x16xbf16>
    %41 = vector.shape_cast %40 : vector<1x4x16xbf16> to vector<4x16xbf16>
    %cst_59 = arith.constant dense<0.000000e+00> : vector<256x16xf32>
    %42 = tpu.matmul %39, %41, %cst_59 {dimension_numbers = #tpu.dot_dimension_numbers<[1], [0], [0], [1], [0, 0, 1, 1], [], []>} : vector<256x4xbf16>, vector<4x16xbf16>, vector<256x16xf32> -> vector<256x16xf32>
    %43 = arith.addf %36, %42 : vector<256x16xf32>
    %c0_60 = arith.constant 0 : index
    %c1_61 = arith.constant 1 : index
    %c2_62 = arith.constant 2 : index
    %c0_63 = arith.constant 0 : index
    %44 = vector.load %arg9[%c0_60, %c1_61, %c2_62, %c0_63] : memref<1x18x18x4xf32, #tpu.memory_space<vmem>>, vector<1x16x16x4xf32>
    %45 = vector.shape_cast %44 : vector<1x16x16x4xf32> to vector<256x4xf32>
    %46 = arith.truncf %45 : vector<256x4xf32> to vector<256x4xbf16>
    %c5 = arith.constant 5 : index
    %c0_64 = arith.constant 0 : index
    %c0_65 = arith.constant 0 : index
    %47 = vector.load %arg2[%c5, %c0_64, %c0_65] : memref<9x4x16xbf16, #tpu.memory_space<vmem>>, vector<1x4x16xbf16>
    %48 = vector.shape_cast %47 : vector<1x4x16xbf16> to vector<4x16xbf16>
    %cst_66 = arith.constant dense<0.000000e+00> : vector<256x16xf32>
    %49 = tpu.matmul %46, %48, %cst_66 {dimension_numbers = #tpu.dot_dimension_numbers<[1], [0], [0], [1], [0, 0, 1, 1], [], []>} : vector<256x4xbf16>, vector<4x16xbf16>, vector<256x16xf32> -> vector<256x16xf32>
    %50 = arith.addf %43, %49 : vector<256x16xf32>
    %c0_67 = arith.constant 0 : index
    %c2_68 = arith.constant 2 : index
    %c0_69 = arith.constant 0 : index
    %c0_70 = arith.constant 0 : index
    %51 = vector.load %arg9[%c0_67, %c2_68, %c0_69, %c0_70] : memref<1x18x18x4xf32, #tpu.memory_space<vmem>>, vector<1x16x16x4xf32>
    %52 = vector.shape_cast %51 : vector<1x16x16x4xf32> to vector<256x4xf32>
    %53 = arith.truncf %52 : vector<256x4xf32> to vector<256x4xbf16>
    %c6 = arith.constant 6 : index
    %c0_71 = arith.constant 0 : index
    %c0_72 = arith.constant 0 : index
    %54 = vector.load %arg2[%c6, %c0_71, %c0_72] : memref<9x4x16xbf16, #tpu.memory_space<vmem>>, vector<1x4x16xbf16>
    %55 = vector.shape_cast %54 : vector<1x4x16xbf16> to vector<4x16xbf16>
    %cst_73 = arith.constant dense<0.000000e+00> : vector<256x16xf32>
    %56 = tpu.matmul %53, %55, %cst_73 {dimension_numbers = #tpu.dot_dimension_numbers<[1], [0], [0], [1], [0, 0, 1, 1], [], []>} : vector<256x4xbf16>, vector<4x16xbf16>, vector<256x16xf32> -> vector<256x16xf32>
    %57 = arith.addf %50, %56 : vector<256x16xf32>
    %c0_74 = arith.constant 0 : index
    %c2_75 = arith.constant 2 : index
    %c1_76 = arith.constant 1 : index
    %c0_77 = arith.constant 0 : index
    %58 = vector.load %arg9[%c0_74, %c2_75, %c1_76, %c0_77] : memref<1x18x18x4xf32, #tpu.memory_space<vmem>>, vector<1x16x16x4xf32>
    %59 = vector.shape_cast %58 : vector<1x16x16x4xf32> to vector<256x4xf32>
    %60 = arith.truncf %59 : vector<256x4xf32> to vector<256x4xbf16>
    %c7 = arith.constant 7 : index
    %c0_78 = arith.constant 0 : index
    %c0_79 = arith.constant 0 : index
    %61 = vector.load %arg2[%c7, %c0_78, %c0_79] : memref<9x4x16xbf16, #tpu.memory_space<vmem>>, vector<1x4x16xbf16>
    %62 = vector.shape_cast %61 : vector<1x4x16xbf16> to vector<4x16xbf16>
    %cst_80 = arith.constant dense<0.000000e+00> : vector<256x16xf32>
    %63 = tpu.matmul %60, %62, %cst_80 {dimension_numbers = #tpu.dot_dimension_numbers<[1], [0], [0], [1], [0, 0, 1, 1], [], []>} : vector<256x4xbf16>, vector<4x16xbf16>, vector<256x16xf32> -> vector<256x16xf32>
    %64 = arith.addf %57, %63 : vector<256x16xf32>
    %c0_81 = arith.constant 0 : index
    %c2_82 = arith.constant 2 : index
    %c2_83 = arith.constant 2 : index
    %c0_84 = arith.constant 0 : index
    %65 = vector.load %arg9[%c0_81, %c2_82, %c2_83, %c0_84] : memref<1x18x18x4xf32, #tpu.memory_space<vmem>>, vector<1x16x16x4xf32>
    %66 = vector.shape_cast %65 : vector<1x16x16x4xf32> to vector<256x4xf32>
    %67 = arith.truncf %66 : vector<256x4xf32> to vector<256x4xbf16>
    %c8 = arith.constant 8 : index
    %c0_85 = arith.constant 0 : index
    %c0_86 = arith.constant 0 : index
    %68 = vector.load %arg2[%c8, %c0_85, %c0_86] : memref<9x4x16xbf16, #tpu.memory_space<vmem>>, vector<1x4x16xbf16>
    %69 = vector.shape_cast %68 : vector<1x4x16xbf16> to vector<4x16xbf16>
    %cst_87 = arith.constant dense<0.000000e+00> : vector<256x16xf32>
    %70 = tpu.matmul %67, %69, %cst_87 {dimension_numbers = #tpu.dot_dimension_numbers<[1], [0], [0], [1], [0, 0, 1, 1], [], []>} : vector<256x4xbf16>, vector<4x16xbf16>, vector<256x16xf32> -> vector<256x16xf32>
    %71 = arith.addf %64, %70 : vector<256x16xf32>
    %c0_88 = arith.constant 0 : index
    %c0_89 = arith.constant 0 : index
    %72 = vector.load %arg3[%c0_88, %c0_89] : memref<1x16xf32, #tpu.memory_space<vmem>>, vector<1x16xf32>
    %73 = vector.broadcast %72 : vector<1x16xf32> to vector<256x16xf32>
    %74 = arith.mulf %71, %73 : vector<256x16xf32>
    %c0_90 = arith.constant 0 : index
    %c0_91 = arith.constant 0 : index
    %75 = vector.load %arg4[%c0_90, %c0_91] : memref<1x16xf32, #tpu.memory_space<vmem>>, vector<1x16xf32>
    %76 = vector.broadcast %75 : vector<1x16xf32> to vector<256x16xf32>
    %77 = arith.addf %74, %76 : vector<256x16xf32>
    %cst_92 = arith.constant 0.000000e+00 : f32
    %78 = vector.broadcast %cst_92 : f32 to vector<256x16xf32>
    %79 = arith.maximumf %77, %78 : vector<256x16xf32>
    %80 = vector.shape_cast %79 : vector<256x16xf32> to vector<8x2x16x16xf32>
    %81 = vector.extract_strided_slice %80 {offsets = [0, 0, 0, 0], sizes = [8, 1, 16, 16], strides = [1, 1, 1, 1]} : vector<8x2x16x16xf32> to vector<8x1x16x16xf32>
    %82 = vector.shape_cast %81 : vector<8x1x16x16xf32> to vector<8x16x16xf32>
    %83 = vector.extract_strided_slice %80 {offsets = [0, 1, 0, 0], sizes = [8, 1, 16, 16], strides = [1, 1, 1, 1]} : vector<8x2x16x16xf32> to vector<8x1x16x16xf32>
    %84 = vector.shape_cast %83 : vector<8x1x16x16xf32> to vector<8x16x16xf32>
    %85 = arith.maximumf %82, %84 : vector<8x16x16xf32>
    %86 = vector.shape_cast %85 : vector<8x16x16xf32> to vector<1x8x16x16xf32>
    %c0_93 = arith.constant 0 : index
    %c0_94 = arith.constant 0 : index
    %c0_95 = arith.constant 0 : index
    %c0_96 = arith.constant 0 : index
    %87 = vector.load %arg10[%c0_93, %c0_94, %c0_95, %c0_96] : memref<1x8x16x16xf32, #tpu.memory_space<vmem>>, vector<1x8x16x16xf32>
    tpu.vector_store %arg10[%c0_93, %c0_94, %c0_95, %c0_96], %86 {strides = array<i32>} : memref<1x8x16x16xf32, #tpu.memory_space<vmem>>, vector<1x8x16x16xf32>,
    %c0_97 = arith.constant 0 : index
    %c0_98 = arith.constant 0 : index
    %c0_99 = arith.constant 0 : index
    %c0_100 = arith.constant 0 : index
    %88 = tpu.strided_load %arg10[%c0_97, %c0_98, %c0_99, %c0_100] {strides = array<i32: 1, 1, 2, 1>} : memref<1x8x16x16xf32, #tpu.memory_space<vmem>>, vector<1x8x8x16xf32>
    %c0_101 = arith.constant 0 : index
    %c0_102 = arith.constant 0 : index
    %c1_103 = arith.constant 1 : index
    %c0_104 = arith.constant 0 : index
    %89 = tpu.strided_load %arg10[%c0_101, %c0_102, %c1_103, %c0_104] {strides = array<i32: 1, 1, 2, 1>} : memref<1x8x16x16xf32, #tpu.memory_space<vmem>>, vector<1x8x8x16xf32>
    %90 = arith.maximumf %88, %89 : vector<1x8x8x16xf32>
    %cst_105 = arith.constant 0.000000e+00 : f32
    %91 = vector.broadcast %cst_105 : f32 to vector<1x1x10x16xf32>
    %cst_106 = arith.constant 0.000000e+00 : f32
    %92 = vector.broadcast %cst_106 : f32 to vector<1x10x1x16xf32>
    %c0_107 = arith.constant 0 : index
    %c0_108 = arith.constant 0 : index
    %c0_109 = arith.constant 0 : index
    %c0_110 = arith.constant 0 : index
    %93 = vector.load %arg11[%c0_107, %c0_108, %c0_109, %c0_110] : memref<1x10x10x16xf32, #tpu.memory_space<vmem>>, vector<1x1x10x16xf32>
    tpu.vector_store %arg11[%c0_107, %c0_108, %c0_109, %c0_110], %91 {strides = array<i32>} : memref<1x10x10x16xf32, #tpu.memory_space<vmem>>, vector<1x1x10x16xf32>,
    %c0_111 = arith.constant 0 : index
    %c9 = arith.constant 9 : index
    %c0_112 = arith.constant 0 : index
    %c0_113 = arith.constant 0 : index
    %94 = vector.load %arg11[%c0_111, %c9, %c0_112, %c0_113] : memref<1x10x10x16xf32, #tpu.memory_space<vmem>>, vector<1x1x10x16xf32>
    tpu.vector_store %arg11[%c0_111, %c9, %c0_112, %c0_113], %91 {strides = array<i32>} : memref<1x10x10x16xf32, #tpu.memory_space<vmem>>, vector<1x1x10x16xf32>,
    %c0_114 = arith.constant 0 : index
    %c0_115 = arith.constant 0 : index
    %c0_116 = arith.constant 0 : index
    %c0_117 = arith.constant 0 : index
    %95 = vector.load %arg11[%c0_114, %c0_115, %c0_116, %c0_117] : memref<1x10x10x16xf32, #tpu.memory_space<vmem>>, vector<1x10x1x16xf32>
    tpu.vector_store %arg11[%c0_114, %c0_115, %c0_116, %c0_117], %92 {strides = array<i32>} : memref<1x10x10x16xf32, #tpu.memory_space<vmem>>, vector<1x10x1x16xf32>,
    %c0_118 = arith.constant 0 : index
    %c0_119 = arith.constant 0 : index
    %c9_120 = arith.constant 9 : index
    %c0_121 = arith.constant 0 : index
    %96 = vector.load %arg11[%c0_118, %c0_119, %c9_120, %c0_121] : memref<1x10x10x16xf32, #tpu.memory_space<vmem>>, vector<1x10x1x16xf32>
    tpu.vector_store %arg11[%c0_118, %c0_119, %c9_120, %c0_121], %92 {strides = array<i32>} : memref<1x10x10x16xf32, #tpu.memory_space<vmem>>, vector<1x10x1x16xf32>,
    %c0_122 = arith.constant 0 : index
    %c1_123 = arith.constant 1 : index
    %c1_124 = arith.constant 1 : index
    %c0_125 = arith.constant 0 : index
    %97 = vector.load %arg11[%c0_122, %c1_123, %c1_124, %c0_125] : memref<1x10x10x16xf32, #tpu.memory_space<vmem>>, vector<1x8x8x16xf32>
    tpu.vector_store %arg11[%c0_122, %c1_123, %c1_124, %c0_125], %90 {strides = array<i32>} : memref<1x10x10x16xf32, #tpu.memory_space<vmem>>, vector<1x8x8x16xf32>,
    %cst_126 = arith.constant 0.000000e+00 : f32
    %98 = vector.broadcast %cst_126 : f32 to vector<64x32xf32>
    %c0_127 = arith.constant 0 : index
    %c0_128 = arith.constant 0 : index
    %c0_129 = arith.constant 0 : index
    %c0_130 = arith.constant 0 : index
    %99 = vector.load %arg11[%c0_127, %c0_128, %c0_129, %c0_130] : memref<1x10x10x16xf32, #tpu.memory_space<vmem>>, vector<1x8x8x16xf32>
    %100 = vector.shape_cast %99 : vector<1x8x8x16xf32> to vector<64x16xf32>
    %101 = arith.truncf %100 : vector<64x16xf32> to vector<64x16xbf16>
    %c0_131 = arith.constant 0 : index
    %c0_132 = arith.constant 0 : index
    %c0_133 = arith.constant 0 : index
    %102 = vector.load %arg5[%c0_131, %c0_132, %c0_133] : memref<9x16x32xbf16, #tpu.memory_space<vmem>>, vector<1x16x32xbf16>
    %103 = vector.shape_cast %102 : vector<1x16x32xbf16> to vector<16x32xbf16>
    %cst_134 = arith.constant dense<0.000000e+00> : vector<64x32xf32>
    %104 = tpu.matmul %101, %103, %cst_134 {dimension_numbers = #tpu.dot_dimension_numbers<[1], [0], [0], [1], [0, 0, 1, 1], [], []>} : vector<64x16xbf16>, vector<16x32xbf16>, vector<64x32xf32> -> vector<64x32xf32>
    %105 = arith.addf %98, %104 : vector<64x32xf32>
    %c0_135 = arith.constant 0 : index
    %c0_136 = arith.constant 0 : index
    %c1_137 = arith.constant 1 : index
    %c0_138 = arith.constant 0 : index
    %106 = vector.load %arg11[%c0_135, %c0_136, %c1_137, %c0_138] : memref<1x10x10x16xf32, #tpu.memory_space<vmem>>, vector<1x8x8x16xf32>
    %107 = vector.shape_cast %106 : vector<1x8x8x16xf32> to vector<64x16xf32>
    %108 = arith.truncf %107 : vector<64x16xf32> to vector<64x16xbf16>
    %c1_139 = arith.constant 1 : index
    %c0_140 = arith.constant 0 : index
    %c0_141 = arith.constant 0 : index
    %109 = vector.load %arg5[%c1_139, %c0_140, %c0_141] : memref<9x16x32xbf16, #tpu.memory_space<vmem>>, vector<1x16x32xbf16>
    %110 = vector.shape_cast %109 : vector<1x16x32xbf16> to vector<16x32xbf16>
    %cst_142 = arith.constant dense<0.000000e+00> : vector<64x32xf32>
    %111 = tpu.matmul %108, %110, %cst_142 {dimension_numbers = #tpu.dot_dimension_numbers<[1], [0], [0], [1], [0, 0, 1, 1], [], []>} : vector<64x16xbf16>, vector<16x32xbf16>, vector<64x32xf32> -> vector<64x32xf32>
    %112 = arith.addf %105, %111 : vector<64x32xf32>
    %c0_143 = arith.constant 0 : index
    %c0_144 = arith.constant 0 : index
    %c2_145 = arith.constant 2 : index
    %c0_146 = arith.constant 0 : index
    %113 = vector.load %arg11[%c0_143, %c0_144, %c2_145, %c0_146] : memref<1x10x10x16xf32, #tpu.memory_space<vmem>>, vector<1x8x8x16xf32>
    %114 = vector.shape_cast %113 : vector<1x8x8x16xf32> to vector<64x16xf32>
    %115 = arith.truncf %114 : vector<64x16xf32> to vector<64x16xbf16>
    %c2_147 = arith.constant 2 : index
    %c0_148 = arith.constant 0 : index
    %c0_149 = arith.constant 0 : index
    %116 = vector.load %arg5[%c2_147, %c0_148, %c0_149] : memref<9x16x32xbf16, #tpu.memory_space<vmem>>, vector<1x16x32xbf16>
    %117 = vector.shape_cast %116 : vector<1x16x32xbf16> to vector<16x32xbf16>
    %cst_150 = arith.constant dense<0.000000e+00> : vector<64x32xf32>
    %118 = tpu.matmul %115, %117, %cst_150 {dimension_numbers = #tpu.dot_dimension_numbers<[1], [0], [0], [1], [0, 0, 1, 1], [], []>} : vector<64x16xbf16>, vector<16x32xbf16>, vector<64x32xf32> -> vector<64x32xf32>
    %119 = arith.addf %112, %118 : vector<64x32xf32>
    %c0_151 = arith.constant 0 : index
    %c1_152 = arith.constant 1 : index
    %c0_153 = arith.constant 0 : index
    %c0_154 = arith.constant 0 : index
    %120 = vector.load %arg11[%c0_151, %c1_152, %c0_153, %c0_154] : memref<1x10x10x16xf32, #tpu.memory_space<vmem>>, vector<1x8x8x16xf32>
    %121 = vector.shape_cast %120 : vector<1x8x8x16xf32> to vector<64x16xf32>
    %122 = arith.truncf %121 : vector<64x16xf32> to vector<64x16xbf16>
    %c3_155 = arith.constant 3 : index
    %c0_156 = arith.constant 0 : index
    %c0_157 = arith.constant 0 : index
    %123 = vector.load %arg5[%c3_155, %c0_156, %c0_157] : memref<9x16x32xbf16, #tpu.memory_space<vmem>>, vector<1x16x32xbf16>
    %124 = vector.shape_cast %123 : vector<1x16x32xbf16> to vector<16x32xbf16>
    %cst_158 = arith.constant dense<0.000000e+00> : vector<64x32xf32>
    %125 = tpu.matmul %122, %124, %cst_158 {dimension_numbers = #tpu.dot_dimension_numbers<[1], [0], [0], [1], [0, 0, 1, 1], [], []>} : vector<64x16xbf16>, vector<16x32xbf16>, vector<64x32xf32> -> vector<64x32xf32>
    %126 = arith.addf %119, %125 : vector<64x32xf32>
    %c0_159 = arith.constant 0 : index
    %c1_160 = arith.constant 1 : index
    %c1_161 = arith.constant 1 : index
    %c0_162 = arith.constant 0 : index
    %127 = vector.load %arg11[%c0_159, %c1_160, %c1_161, %c0_162] : memref<1x10x10x16xf32, #tpu.memory_space<vmem>>, vector<1x8x8x16xf32>
    %128 = vector.shape_cast %127 : vector<1x8x8x16xf32> to vector<64x16xf32>
    %129 = arith.truncf %128 : vector<64x16xf32> to vector<64x16xbf16>
    %c4_163 = arith.constant 4 : index
    %c0_164 = arith.constant 0 : index
    %c0_165 = arith.constant 0 : index
    %130 = vector.load %arg5[%c4_163, %c0_164, %c0_165] : memref<9x16x32xbf16, #tpu.memory_space<vmem>>, vector<1x16x32xbf16>
    %131 = vector.shape_cast %130 : vector<1x16x32xbf16> to vector<16x32xbf16>
    %cst_166 = arith.constant dense<0.000000e+00> : vector<64x32xf32>
    %132 = tpu.matmul %129, %131, %cst_166 {dimension_numbers = #tpu.dot_dimension_numbers<[1], [0], [0], [1], [0, 0, 1, 1], [], []>} : vector<64x16xbf16>, vector<16x32xbf16>, vector<64x32xf32> -> vector<64x32xf32>
    %133 = arith.addf %126, %132 : vector<64x32xf32>
    %c0_167 = arith.constant 0 : index
    %c1_168 = arith.constant 1 : index
    %c2_169 = arith.constant 2 : index
    %c0_170 = arith.constant 0 : index
    %134 = vector.load %arg11[%c0_167, %c1_168, %c2_169, %c0_170] : memref<1x10x10x16xf32, #tpu.memory_space<vmem>>, vector<1x8x8x16xf32>
    %135 = vector.shape_cast %134 : vector<1x8x8x16xf32> to vector<64x16xf32>
    %136 = arith.truncf %135 : vector<64x16xf32> to vector<64x16xbf16>
    %c5_171 = arith.constant 5 : index
    %c0_172 = arith.constant 0 : index
    %c0_173 = arith.constant 0 : index
    %137 = vector.load %arg5[%c5_171, %c0_172, %c0_173] : memref<9x16x32xbf16, #tpu.memory_space<vmem>>, vector<1x16x32xbf16>
    %138 = vector.shape_cast %137 : vector<1x16x32xbf16> to vector<16x32xbf16>
    %cst_174 = arith.constant dense<0.000000e+00> : vector<64x32xf32>
    %139 = tpu.matmul %136, %138, %cst_174 {dimension_numbers = #tpu.dot_dimension_numbers<[1], [0], [0], [1], [0, 0, 1, 1], [], []>} : vector<64x16xbf16>, vector<16x32xbf16>, vector<64x32xf32> -> vector<64x32xf32>
    %140 = arith.addf %133, %139 : vector<64x32xf32>
    %c0_175 = arith.constant 0 : index
    %c2_176 = arith.constant 2 : index
    %c0_177 = arith.constant 0 : index
    %c0_178 = arith.constant 0 : index
    %141 = vector.load %arg11[%c0_175, %c2_176, %c0_177, %c0_178] : memref<1x10x10x16xf32, #tpu.memory_space<vmem>>, vector<1x8x8x16xf32>
    %142 = vector.shape_cast %141 : vector<1x8x8x16xf32> to vector<64x16xf32>
    %143 = arith.truncf %142 : vector<64x16xf32> to vector<64x16xbf16>
    %c6_179 = arith.constant 6 : index
    %c0_180 = arith.constant 0 : index
    %c0_181 = arith.constant 0 : index
    %144 = vector.load %arg5[%c6_179, %c0_180, %c0_181] : memref<9x16x32xbf16, #tpu.memory_space<vmem>>, vector<1x16x32xbf16>
    %145 = vector.shape_cast %144 : vector<1x16x32xbf16> to vector<16x32xbf16>
    %cst_182 = arith.constant dense<0.000000e+00> : vector<64x32xf32>
    %146 = tpu.matmul %143, %145, %cst_182 {dimension_numbers = #tpu.dot_dimension_numbers<[1], [0], [0], [1], [0, 0, 1, 1], [], []>} : vector<64x16xbf16>, vector<16x32xbf16>, vector<64x32xf32> -> vector<64x32xf32>
    %147 = arith.addf %140, %146 : vector<64x32xf32>
    %c0_183 = arith.constant 0 : index
    %c2_184 = arith.constant 2 : index
    %c1_185 = arith.constant 1 : index
    %c0_186 = arith.constant 0 : index
    %148 = vector.load %arg11[%c0_183, %c2_184, %c1_185, %c0_186] : memref<1x10x10x16xf32, #tpu.memory_space<vmem>>, vector<1x8x8x16xf32>
    %149 = vector.shape_cast %148 : vector<1x8x8x16xf32> to vector<64x16xf32>
    %150 = arith.truncf %149 : vector<64x16xf32> to vector<64x16xbf16>
    %c7_187 = arith.constant 7 : index
    %c0_188 = arith.constant 0 : index
    %c0_189 = arith.constant 0 : index
    %151 = vector.load %arg5[%c7_187, %c0_188, %c0_189] : memref<9x16x32xbf16, #tpu.memory_space<vmem>>, vector<1x16x32xbf16>
    %152 = vector.shape_cast %151 : vector<1x16x32xbf16> to vector<16x32xbf16>
    %cst_190 = arith.constant dense<0.000000e+00> : vector<64x32xf32>
    %153 = tpu.matmul %150, %152, %cst_190 {dimension_numbers = #tpu.dot_dimension_numbers<[1], [0], [0], [1], [0, 0, 1, 1], [], []>} : vector<64x16xbf16>, vector<16x32xbf16>, vector<64x32xf32> -> vector<64x32xf32>
    %154 = arith.addf %147, %153 : vector<64x32xf32>
    %c0_191 = arith.constant 0 : index
    %c2_192 = arith.constant 2 : index
    %c2_193 = arith.constant 2 : index
    %c0_194 = arith.constant 0 : index
    %155 = vector.load %arg11[%c0_191, %c2_192, %c2_193, %c0_194] : memref<1x10x10x16xf32, #tpu.memory_space<vmem>>, vector<1x8x8x16xf32>
    %156 = vector.shape_cast %155 : vector<1x8x8x16xf32> to vector<64x16xf32>
    %157 = arith.truncf %156 : vector<64x16xf32> to vector<64x16xbf16>
    %c8_195 = arith.constant 8 : index
    %c0_196 = arith.constant 0 : index
    %c0_197 = arith.constant 0 : index
    %158 = vector.load %arg5[%c8_195, %c0_196, %c0_197] : memref<9x16x32xbf16, #tpu.memory_space<vmem>>, vector<1x16x32xbf16>
    %159 = vector.shape_cast %158 : vector<1x16x32xbf16> to vector<16x32xbf16>
    %cst_198 = arith.constant dense<0.000000e+00> : vector<64x32xf32>
    %160 = tpu.matmul %157, %159, %cst_198 {dimension_numbers = #tpu.dot_dimension_numbers<[1], [0], [0], [1], [0, 0, 1, 1], [], []>} : vector<64x16xbf16>, vector<16x32xbf16>, vector<64x32xf32> -> vector<64x32xf32>
    %161 = arith.addf %154, %160 : vector<64x32xf32>
    %c0_199 = arith.constant 0 : index
    %c0_200 = arith.constant 0 : index
    %162 = vector.load %arg6[%c0_199, %c0_200] : memref<1x32xf32, #tpu.memory_space<vmem>>, vector<1x32xf32>
    %163 = vector.broadcast %162 : vector<1x32xf32> to vector<64x32xf32>
    %164 = arith.mulf %161, %163 : vector<64x32xf32>
    %c0_201 = arith.constant 0 : index
    %c0_202 = arith.constant 0 : index
    %165 = vector.load %arg7[%c0_201, %c0_202] : memref<1x32xf32, #tpu.memory_space<vmem>>, vector<1x32xf32>
    %166 = vector.broadcast %165 : vector<1x32xf32> to vector<64x32xf32>
    %167 = arith.addf %164, %166 : vector<64x32xf32>
    %cst_203 = arith.constant 0.000000e+00 : f32
    %168 = vector.broadcast %cst_203 : f32 to vector<64x32xf32>
    %169 = arith.maximumf %167, %168 : vector<64x32xf32>
    %170 = vector.shape_cast %169 : vector<64x32xf32> to vector<4x2x8x32xf32>
    %171 = vector.extract_strided_slice %170 {offsets = [0, 0, 0, 0], sizes = [4, 1, 8, 32], strides = [1, 1, 1, 1]} : vector<4x2x8x32xf32> to vector<4x1x8x32xf32>
    %172 = vector.shape_cast %171 : vector<4x1x8x32xf32> to vector<4x8x32xf32>
    %173 = vector.extract_strided_slice %170 {offsets = [0, 1, 0, 0], sizes = [4, 1, 8, 32], strides = [1, 1, 1, 1]} : vector<4x2x8x32xf32> to vector<4x1x8x32xf32>
    %174 = vector.shape_cast %173 : vector<4x1x8x32xf32> to vector<4x8x32xf32>
    %175 = arith.maximumf %172, %174 : vector<4x8x32xf32>
    %176 = vector.shape_cast %175 : vector<4x8x32xf32> to vector<1x4x8x32xf32>
    %c0_204 = arith.constant 0 : index
    %c0_205 = arith.constant 0 : index
    %c0_206 = arith.constant 0 : index
    %c0_207 = arith.constant 0 : index
    %177 = vector.load %arg12[%c0_204, %c0_205, %c0_206, %c0_207] : memref<1x4x8x32xf32, #tpu.memory_space<vmem>>, vector<1x4x8x32xf32>
    tpu.vector_store %arg12[%c0_204, %c0_205, %c0_206, %c0_207], %176 {strides = array<i32>} : memref<1x4x8x32xf32, #tpu.memory_space<vmem>>, vector<1x4x8x32xf32>,
    %c0_208 = arith.constant 0 : index
    %c0_209 = arith.constant 0 : index
    %c0_210 = arith.constant 0 : index
    %c0_211 = arith.constant 0 : index
    %178 = tpu.strided_load %arg12[%c0_208, %c0_209, %c0_210, %c0_211] {strides = array<i32: 1, 1, 2, 1>} : memref<1x4x8x32xf32, #tpu.memory_space<vmem>>, vector<1x4x4x32xf32>
    %c0_212 = arith.constant 0 : index
    %c0_213 = arith.constant 0 : index
    %c1_214 = arith.constant 1 : index
    %c0_215 = arith.constant 0 : index
    %179 = tpu.strided_load %arg12[%c0_212, %c0_213, %c1_214, %c0_215] {strides = array<i32: 1, 1, 2, 1>} : memref<1x4x8x32xf32, #tpu.memory_space<vmem>>, vector<1x4x4x32xf32>
    %180 = arith.maximumf %178, %179 : vector<1x4x4x32xf32>
    %c0_216 = arith.constant 0 : index
    %c0_217 = arith.constant 0 : index
    %c0_218 = arith.constant 0 : index
    %c0_219 = arith.constant 0 : index
    %181 = vector.load %arg8[%c0_216, %c0_217, %c0_218, %c0_219] : memref<1x4x4x32xf32, #tpu.memory_space<vmem>>, vector<1x4x4x32xf32>
    tpu.vector_store %arg8[%c0_216, %c0_217, %c0_218, %c0_219], %180 {strides = array<i32>} : memref<1x4x4x32xf32, #tpu.memory_space<vmem>>, vector<1x4x4x32xf32>,
    return
  }
  func.func @transform_0(%arg0: i32) -> (i32, i32, i32, i32) {
    %c0_i32 = arith.constant 0 : i32
    %c0_i32_0 = arith.constant 0 : i32
    %c0_i32_1 = arith.constant 0 : i32
    %c0_i32_2 = arith.constant 0 : i32
    return %arg0, %c0_i32, %c0_i32_0, %c0_i32_1 : i32, i32, i32, i32
  }
  func.func @transform_1(%arg0: i32) -> (i32, i32, i32) {
    %c0_i32 = arith.constant 0 : i32
    %c0_i32_0 = arith.constant 0 : i32
    %c0_i32_1 = arith.constant 0 : i32
    %c0_i32_2 = arith.constant 0 : i32
    return %c0_i32, %c0_i32_0, %c0_i32_1 : i32, i32, i32
  }
  func.func @transform_2(%arg0: i32) -> (i32, i32) {
    %c0_i32 = arith.constant 0 : i32
    %c0_i32_0 = arith.constant 0 : i32
    %c0_i32_1 = arith.constant 0 : i32
    return %c0_i32, %c0_i32_0 : i32, i32
  }
  func.func @transform_3(%arg0: i32) -> (i32, i32) {
    %c0_i32 = arith.constant 0 : i32
    %c0_i32_0 = arith.constant 0 : i32
    %c0_i32_1 = arith.constant 0 : i32
    return %c0_i32, %c0_i32_0 : i32, i32
  }
  func.func @transform_4(%arg0: i32) -> (i32, i32, i32) {
    %c0_i32 = arith.constant 0 : i32
    %c0_i32_0 = arith.constant 0 : i32
    %c0_i32_1 = arith.constant 0 : i32
    %c0_i32_2 = arith.constant 0 : i32
    return %c0_i32, %c0_i32_0, %c0_i32_1 : i32, i32, i32
  }
  func.func @transform_5(%arg0: i32) -> (i32, i32) {
    %c0_i32 = arith.constant 0 : i32
    %c0_i32_0 = arith.constant 0 : i32
    %c0_i32_1 = arith.constant 0 : i32
    return %c0_i32, %c0_i32_0 : i32, i32
  }
  func.func @transform_6(%arg0: i32) -> (i32, i32) {
    %c0_i32 = arith.constant 0 : i32
    %c0_i32_0 = arith.constant 0 : i32
    %c0_i32_1 = arith.constant 0 : i32
    return %c0_i32, %c0_i32_0 : i32, i32
  }
  func.func @transform_7(%arg0: i32) -> (i32, i32, i32, i32) {
    %c0_i32 = arith.constant 0 : i32
    %c0_i32_0 = arith.constant 0 : i32
    %c0_i32_1 = arith.constant 0 : i32
    %c0_i32_2 = arith.constant 0 : i32
    return %arg0, %c0_i32, %c0_i32_0, %c0_i32_1 : i32, i32, i32, i32
  }
}

</mosaic_0001>

<llo_original>
// kernel: tpu_custom_call.1
$region0: #{tpu_custom_call.1}
  #allocation0 [shape = 'u32[]', space=smem, size = 0x4, offset = 0x4, fixed_abs, tag = 'smem constant byte address 0x4 - core index']
  #allocation1 [shape = 'u32[144,128]{1,0:T(1,128)}', space=vmem, size = 0x12000, scoped, tag = 'internal scratch']
  #allocation2 [shape = 'f32[1,18,18,4]{3,2,1,0:T(8,128)}', space=vmem, size = 0x36000, scoped, tag = 'scratch operand']
  #allocation3 [shape = 'f32[1,8,16,16]{3,2,1,0:T(8,128)}', space=vmem, size = 0x10000, scoped, tag = 'scratch operand']
  #allocation4 [shape = 'f32[1,10,10,16]{3,2,1,0:T(8,128)}', space=vmem, size = 0x14000, scoped, tag = 'scratch operand']
  #allocation5 [shape = 'f32[1,4,8,32]{3,2,1,0:T(8,128)}', space=vmem, size = 0x4000, scoped, tag = 'scratch operand']
  %s0 = inlined_call_operand.vmem [shape: f32[2,16,16,4], index: 0, kind: input, shape index: {}]
  %s1 = inlined_call_operand.vmem [shape: bf16[9,4,16], index: 1, kind: input, shape index: {}]
  %s2 = inlined_call_operand.vmem [shape: f32[1,16], index: 2, kind: input, shape index: {}]
  %s3 = inlined_call_operand.vmem [shape: f32[1,16], index: 3, kind: input, shape index: {}]
  %s4 = inlined_call_operand.vmem [shape: bf16[9,16,32], index: 4, kind: input, shape index: {}]
  %s5 = inlined_call_operand.vmem [shape: f32[1,32], index: 5, kind: input, shape index: {}]
  %s6 = inlined_call_operand.vmem [shape: f32[1,32], index: 6, kind: input, shape index: {}]
  %s7 = inlined_call_operand.hbm [shape: f32[2,4,4,32], index: 7, kind: output, shape index: {}]
  %s8 = sld [smem:[#allocation0]]
  $region61: #{tpu_custom_call.1} parent=0
    _
  %s10 = ssub.s32 1, %s8
  %s11 = scalar_select 0, %s10, %s8
  $region1: #{tpu_custom_call.1} parent=0
    #allocation6 [shape = 'u8[16384]{0}', space=vmem, size = 0x4000, scoped, tag = 'output window, operand 0']
    #allocation7 [shape = 's32[2]{0}', space=sflag, size = 0x8, scoped, tag = 'scoped memory for tpu_custom_call.1']
    %12 = vsyncpa [#allocation7], 0
    %s13 = scalar_lea.sflag [#allocation7], 1
    %14 = vsyncpa %s13, 0
    loop: start=0, step=1, limit=4
    $region2: #{tpu_custom_call.1} parent=1 // loop_pre_header
      _
    $region3: #{tpu_custom_call.1} parent=1 // loop_header
      %s16 = sphi 0, %s20
      %p17 = scmp.ge.s32.totalorder %s16, 4
      %s26 = sphi 0, %s28
      %s29 = sphi 0, %s26
      %s30 = sphi 0, %s29
      %s46 = sphi 0, %s30
      %s50 = sphi 0, %s50
      %s52 = sphi 0, %s50
      %s53 = sphi 0, %s52
      %s67 = sphi 0, %s53
      %s71 = sphi 0, %s71
      %s73 = sphi 0, %s71
      %s74 = sphi 0, %s73
      %s88 = sphi 0, %s74
      %s92 = sphi 0, %s92
      %s94 = sphi 0, %s92
      %s95 = sphi 0, %s94
      %s109 = sphi 0, %s95
      %s113 = sphi 0, %s113
      %s115 = sphi 0, %s113
      %s116 = sphi 0, %s115
      %s130 = sphi 0, %s116
      %s134 = sphi 0, %s134
      %s136 = sphi 0, %s134
      %s137 = sphi 0, %s136
      %s151 = sphi 0, %s137
      %s155 = sphi 0, %s155
      %s157 = sphi 0, %s155
      %s158 = sphi 0, %s157
      %s172 = sphi 0, %s158
      %s178 = sphi 0, %s180
      %s181 = sphi 0, %s178
      %s182 = sphi 0, %s181
      %s198 = sphi 0, %s182
    $region4: #{tpu_custom_call.1} parent=1 // loop_header_branch
      %19 = sbr.rel (%p17) target = $region8
    $region5: #{tpu_custom_call.1} parent=1 // loop_body
      %s21 = ssub.s32 %s16, 1
      %s22 = ssub.s32 %s16, 2
      %s23 = sadd.s32 %s16, 1
      %s24 = ssub.s32 %s16, %s23
      %p25 = scmp.eq.s32.totalorder %s24, 0
      %s27 = sadd.s32 %s26, 1
      %s28 = scalar_select %p25, %s26, %s27
      %p31 = pneg %p25
      %p32 = scmp.eq.s32.totalorder %s16, 1
      %p33 = por %p31, %p32
      %p34 = scmp.ne.s32.totalorder %s26, %s29
      %p35 = scmp.eq.s32.totalorder %s16, 0
      %p36 = por %p34, %p35
      %p37 = scmp.ne.s32.totalorder %s26, %s29
      %p38 = scmp.eq.s32.totalorder %s21, 1
      %p39 = por %p37, %p38
      %p40 = scmp.ne.s32.totalorder %s29, %s30
      %p41 = scmp.eq.s32.totalorder %s21, 0
      %p42 = por %p40, %p41
      %p43 = scmp.ne.s32.totalorder %s29, %s30
      %p44 = scmp.eq.s32.totalorder %s22, 1
      %p45 = por %p43, %p44
      %p47 = scmp.ne.s32.totalorder %s30, %s46
      %p48 = scmp.eq.s32.totalorder %s22, 0
      %p49 = por %p47, %p48
      %s51 = sadd.s32 %s50, 1
      %p54 = scmp.eq.s32.totalorder %s16, 1
      %p55 = scmp.ne.s32.totalorder %s50, %s52
      %p56 = scmp.eq.s32.totalorder %s16, 0
      %p57 = por %p55, %p56
      %p58 = scmp.ne.s32.totalorder %s50, %s52
      %p59 = scmp.eq.s32.totalorder %s21, 1
      %p60 = por %p58, %p59
      %p61 = scmp.ne.s32.totalorder %s52, %s53
      %p62 = scmp.eq.s32.totalorder %s21, 0
      %p63 = por %p61, %p62
      %p64 = scmp.ne.s32.totalorder %s52, %s53
      %p65 = scmp.eq.s32.totalorder %s22, 1
      %p66 = por %p64, %p65
      %p68 = scmp.ne.s32.totalorder %s53, %s67
      %p69 = scmp.eq.s32.totalorder %s22, 0
      %p70 = por %p68, %p69
      %s72 = sadd.s32 %s71, 1
      %p75 = scmp.eq.s32.totalorder %s16, 1
      %p76 = scmp.ne.s32.totalorder %s71, %s73
      %p77 = scmp.eq.s32.totalorder %s16, 0
      %p78 = por %p76, %p77
      %p79 = scmp.ne.s32.totalorder %s71, %s73
      %p80 = scmp.eq.s32.totalorder %s21, 1
      %p81 = por %p79, %p80
      %p82 = scmp.ne.s32.totalorder %s73, %s74
      %p83 = scmp.eq.s32.totalorder %s21, 0
      %p84 = por %p82, %p83
      %p85 = scmp.ne.s32.totalorder %s73, %s74
      %p86 = scmp.eq.s32.totalorder %s22, 1
      %p87 = por %p85, %p86
      %p89 = scmp.ne.s32.totalorder %s74, %s88
      %p90 = scmp.eq.s32.totalorder %s22, 0
      %p91 = por %p89, %p90
      %s93 = sadd.s32 %s92, 1
      %p96 = scmp.eq.s32.totalorder %s16, 1
      %p97 = scmp.ne.s32.totalorder %s92, %s94
      %p98 = scmp.eq.s32.totalorder %s16, 0
      %p99 = por %p97, %p98
      %p100 = scmp.ne.s32.totalorder %s92, %s94
      %p101 = scmp.eq.s32.totalorder %s21, 1
      %p102 = por %p100, %p101
      %p103 = scmp.ne.s32.totalorder %s94, %s95
      %p104 = scmp.eq.s32.totalorder %s21, 0
      %p105 = por %p103, %p104
      %p106 = scmp.ne.s32.totalorder %s94, %s95
      %p107 = scmp.eq.s32.totalorder %s22, 1
      %p108 = por %p106, %p107
      %p110 = scmp.ne.s32.totalorder %s95, %s109
      %p111 = scmp.eq.s32.totalorder %s22, 0
      %p112 = por %p110, %p111
      %s114 = sadd.s32 %s113, 1
      %p117 = scmp.eq.s32.totalorder %s16, 1
      %p118 = scmp.ne.s32.totalorder %s113, %s115
      %p119 = scmp.eq.s32.totalorder %s16, 0
      %p120 = por %p118, %p119
      %p121 = scmp.ne.s32.totalorder %s113, %s115
      %p122 = scmp.eq.s32.totalorder %s21, 1
      %p123 = por %p121, %p122
      %p124 = scmp.ne.s32.totalorder %s115, %s116
      %p125 = scmp.eq.s32.totalorder %s21, 0
      %p126 = por %p124, %p125
      %p127 = scmp.ne.s32.totalorder %s115, %s116
      %p128 = scmp.eq.s32.totalorder %s22, 1
      %p129 = por %p127, %p128
      %p131 = scmp.ne.s32.totalorder %s116, %s130
      %p132 = scmp.eq.s32.totalorder %s22, 0
      %p133 = por %p131, %p132
      %s135 = sadd.s32 %s134, 1
      %p138 = scmp.eq.s32.totalorder %s16, 1
      %p139 = scmp.ne.s32.totalorder %s134, %s136
      %p140 = scmp.eq.s32.totalorder %s16, 0
      %p141 = por %p139, %p140
      %p142 = scmp.ne.s32.totalorder %s134, %s136
      %p143 = scmp.eq.s32.totalorder %s21, 1
      %p144 = por %p142, %p143
      %p145 = scmp.ne.s32.totalorder %s136, %s137
      %p146 = scmp.eq.s32.totalorder %s21, 0
      %p147 = por %p145, %p146
      %p148 = scmp.ne.s32.totalorder %s136, %s137
      %p149 = scmp.eq.s32.totalorder %s22, 1
      %p150 = por %p148, %p149
      %p152 = scmp.ne.s32.totalorder %s137, %s151
      %p153 = scmp.eq.s32.totalorder %s22, 0
      %p154 = por %p152, %p153
      %s156 = sadd.s32 %s155, 1
      %p159 = scmp.eq.s32.totalorder %s16, 1
      %p160 = scmp.ne.s32.totalorder %s155, %s157
      %p161 = scmp.eq.s32.totalorder %s16, 0
      %p162 = por %p160, %p161
      %p163 = scmp.ne.s32.totalorder %s155, %s157
      %p164 = scmp.eq.s32.totalorder %s21, 1
      %p165 = por %p163, %p164
      %p166 = scmp.ne.s32.totalorder %s157, %s158
      %p167 = scmp.eq.s32.totalorder %s21, 0
      %p168 = por %p166, %p167
      %p169 = scmp.ne.s32.totalorder %s157, %s158
      %p170 = scmp.eq.s32.totalorder %s22, 1
      %p171 = por %p169, %p170
      %p173 = scmp.ne.s32.totalorder %s158, %s172
      %p174 = scmp.eq.s32.totalorder %s22, 0
      %p175 = por %p173, %p174
      %s176 = ssub.s32 %s16, %s23
      %p177 = scmp.eq.s32.totalorder %s176, 0
      %s179 = sadd.s32 %s178, 1
      %s180 = scalar_select %p177, %s178, %s179
      %p183 = pneg %p177
      %p184 = scmp.eq.s32.totalorder %s16, 1
      %p185 = por %p183, %p184
      %p186 = scmp.ne.s32.totalorder %s178, %s181
      %p187 = scmp.eq.s32.totalorder %s16, 0
      %p188 = por %p186, %p187
      %p189 = scmp.ne.s32.totalorder %s178, %s181
      %p190 = scmp.eq.s32.totalorder %s21, 1
      %p191 = por %p189, %p190
      %p192 = scmp.ne.s32.totalorder %s181, %s182
      %p193 = scmp.eq.s32.totalorder %s21, 0
      %p194 = por %p192, %p193
      %p195 = scmp.ne.s32.totalorder %s181, %s182
      %p196 = scmp.eq.s32.totalorder %s22, 1
      %p197 = por %p195, %p196
      %p199 = scmp.ne.s32.totalorder %s182, %s198
      %p200 = scmp.eq.s32.totalorder %s22, 0
      %p201 = por %p199, %p200
      %p202 = scmp.le.s32.totalorder 1, %s16
      %p203 = scmp.lt.s32.totalorder %s16, 3
      %p204 = pnand %p202, %p203
      %p205 = pneg %p204
      // Predicated region
      $region9: #{tpu_custom_call.1} parent=5 // pred_check
        _
      $region10: #{tpu_custom_call.1} parent=5 // pred_check_branch
        %207 = sbr.rel (%p204) target = $region12
      $region11: #{tpu_custom_call.1} parent=5 // pred_region
        %s208 = ssub.s32 %s16, 1
        // Predicated region
        $region13: #{tpu_custom_call.1} parent=11 // pred_check
          %p209 = pneg %p63
        $region14: #{tpu_custom_call.1} parent=11 // pred_check_branch
          %211 = sbr.rel (%p209) target = $region16
        $region15: #{tpu_custom_call.1} parent=11 // pred_region
          _
        $region16: #{tpu_custom_call.1} parent=11 // pred_fallthru
          _
        // Predicated region
        $region17: #{tpu_custom_call.1} parent=11 // pred_check
          %p212 = pneg %p84
        $region18: #{tpu_custom_call.1} parent=11 // pred_check_branch
          %214 = sbr.rel (%p212) target = $region20
        $region19: #{tpu_custom_call.1} parent=11 // pred_region
          _
        $region20: #{tpu_custom_call.1} parent=11 // pred_fallthru
          _
        // Predicated region
        $region21: #{tpu_custom_call.1} parent=11 // pred_check
          %p215 = pneg %p105
        $region22: #{tpu_custom_call.1} parent=11 // pred_check_branch
          %217 = sbr.rel (%p215) target = $region24
        $region23: #{tpu_custom_call.1} parent=11 // pred_region
          _
        $region24: #{tpu_custom_call.1} parent=11 // pred_fallthru
          _
        // Predicated region
        $region25: #{tpu_custom_call.1} parent=11 // pred_check
          %p218 = pneg %p126
        $region26: #{tpu_custom_call.1} parent=11 // pred_check_branch
          %220 = sbr.rel (%p218) target = $region28
        $region27: #{tpu_custom_call.1} parent=11 // pred_region
          _
        $region28: #{tpu_custom_call.1} parent=11 // pred_fallthru
          _
        // Predicated region
        $region29: #{tpu_custom_call.1} parent=11 // pred_check
          %p221 = pneg %p147
        $region30: #{tpu_custom_call.1} parent=11 // pred_check_branch
          %223 = sbr.rel (%p221) target = $region32
        $region31: #{tpu_custom_call.1} parent=11 // pred_region
          _
        $region32: #{tpu_custom_call.1} parent=11 // pred_fallthru
          _
        // Predicated region
        $region33: #{tpu_custom_call.1} parent=11 // pred_check
          %p224 = pneg %p168
        $region34: #{tpu_custom_call.1} parent=11 // pred_check_branch
          %226 = sbr.rel (%p224) target = $region36
        $region35: #{tpu_custom_call.1} parent=11 // pred_region
          _
        $region36: #{tpu_custom_call.1} parent=11 // pred_fallthru
          _
      $region12: #{tpu_custom_call.1} parent=5 // pred_fallthru
        _
      %p227 = scmp.lt.s32.totalorder %s16, 2
      // Predicated region
      $region37: #{tpu_custom_call.1} parent=5 // pred_check
        %p228 = pneg %p227
      $region38: #{tpu_custom_call.1} parent=5 // pred_check_branch
        %230 = sbr.rel (%p228) target = $region40
      $region39: #{tpu_custom_call.1} parent=5 // pred_region
        // Predicated region
        $region41: #{tpu_custom_call.1} parent=39 // pred_check
          %p231 = pneg %p36
        $region42: #{tpu_custom_call.1} parent=39 // pred_check_branch
          %233 = sbr.rel (%p231) target = $region44
        $region43: #{tpu_custom_call.1} parent=39 // pred_region
          %p234 = scmp.lt.s32.totalorder %s16, 1
          %s235 = scalar_select %p234, %s16, 1
          %s236 = smul.addr %s235, 32
          %s237 = smul.addr %s236, 8
          %s238 = scalar_lea.vmem %s0, %s237
        $region44: #{tpu_custom_call.1} parent=39 // pred_fallthru
          _
      $region40: #{tpu_custom_call.1} parent=5 // pred_fallthru
        _
      %p239 = scmp.le.s32.totalorder 1, %s16
      %p240 = scmp.lt.s32.totalorder %s16, 3
      %p241 = pnand %p239, %p240
      %p242 = pneg %p241
      // Predicated region
      $region45: #{tpu_custom_call.1} parent=5 // pred_check
        _
      $region46: #{tpu_custom_call.1} parent=5 // pred_check_branch
        %244 = sbr.rel (%p241) target = $region48
      $region47: #{tpu_custom_call.1} parent=5 // pred_region
        %s245 = ssub.s32 %s16, 1
        %p246 = scmp.lt.s32.totalorder %s21, 1
        %s247 = scalar_select %p246, %s21, 1
        %s248 = smul.addr %s247, 32
        %s249 = smul.addr %s248, 8
        %s250 = scalar_lea.vmem %s0, %s249
        %p251 = pneg %p42
        %p252 = pneg %p39
        %p253 = pneg %p63
        %p254 = pneg %p60
        %p255 = pneg %p84
        %p256 = pneg %p81
        %p257 = pneg %p105
        %p258 = pneg %p102
        %p259 = pneg %p126
        %p260 = pneg %p123
        %p261 = pneg %p147
        %p262 = pneg %p144
        %p263 = pneg %p168
        %p264 = pneg %p165
        %p265 = pneg %p194
        %p266 = pneg %p191
        %s267 = sand.u32 %s181, 1
        %s268 = scalar_lea.sflag [#allocation7], %s267
        %s269 = sand.u32 %s181, 1
        %s270 = smul.addr %s269, 16
        %s271 = scalar_lea.vmem [#allocation6], %s270
        %p272 = scmp.lt.s32.totalorder %s21, 1
        %s273 = scalar_select %p272, %s21, 1
        %s274 = smul.addr %s273, 32
        %s275 = smul.addr %s274, 8
        %s276 = scalar_lea.vmem %s0, %s275
        %v278 = vld [vmem:[%s276] sm:$0xff]
        %v279 = vld [vmem:[%s276 + $0x8] sm:$0xff]
        %v280 = vld [vmem:[%s276 + $0x10] sm:$0xff]
        %v281 = vld [vmem:[%s276 + $0x18] sm:$0xff]
        %v282 = vld [vmem:[%s276 + $0x20] sm:$0xff]
        %v283 = vld [vmem:[%s276 + $0x28] sm:$0xff]
        %v284 = vld [vmem:[%s276 + $0x30] sm:$0xff]
        %v285 = vld [vmem:[%s276 + $0x38] sm:$0xff]
        %v286 = vld [vmem:[%s276 + $0x40] sm:$0xff]
        %v287 = vld [vmem:[%s276 + $0x48] sm:$0xff]
        %v288 = vld [vmem:[%s276 + $0x50] sm:$0xff]
        %v289 = vld [vmem:[%s276 + $0x58] sm:$0xff]
        %v290 = vld [vmem:[%s276 + $0x60] sm:$0xff]
        %v291 = vld [vmem:[%s276 + $0x68] sm:$0xff]
        %v292 = vld [vmem:[%s276 + $0x70] sm:$0xff]
        %v293 = vld [vmem:[%s276 + $0x78] sm:$0xff]
        %v294 = vld [vmem:[%s276 + $0x80] sm:$0xff]
        %v295 = vld [vmem:[%s276 + $0x88] sm:$0xff]
        %v296 = vld [vmem:[%s276 + $0x90] sm:$0xff]
        %v297 = vld [vmem:[%s276 + $0x98] sm:$0xff]
        %v298 = vld [vmem:[%s276 + $0xa0] sm:$0xff]
        %v299 = vld [vmem:[%s276 + $0xa8] sm:$0xff]
        %v300 = vld [vmem:[%s276 + $0xb0] sm:$0xff]
        %v301 = vld [vmem:[%s276 + $0xb8] sm:$0xff]
        %v302 = vld [vmem:[%s276 + $0xc0] sm:$0xff]
        %v303 = vld [vmem:[%s276 + $0xc8] sm:$0xff]
        %v304 = vld [vmem:[%s276 + $0xd0] sm:$0xff]
        %v305 = vld [vmem:[%s276 + $0xd8] sm:$0xff]
        %v306 = vld [vmem:[%s276 + $0xe0] sm:$0xff]
        %v307 = vld [vmem:[%s276 + $0xe8] sm:$0xff]
        %v308 = vld [vmem:[%s276 + $0xf0] sm:$0xff]
        %v309 = vld [vmem:[%s276 + $0xf8] sm:$0xff]
        %vm310 = vcmask 31744
        %311 = vst.msk [vmem:[#allocation2] sm:$0xff] %vm310, 0.0
        %312 = vst.msk [vmem:[#allocation2 + $0x8] sm:$0xff] %vm310, 0.0
        %vm313 = vcmask 25600
        %314 = vst.msk [vmem:[#allocation2 + $0x10] sm:$0x3] %vm313, 0.0
        %s315 = scalar_lea.vmem [#allocation2], 408
        %316 = vst.msk [vmem:[%s315] sm:$0xff] %vm310, 0.0
        %317 = vst.msk [vmem:[%s315 + $0x8] sm:$0xff] %vm310, 0.0
        %318 = vst.msk [vmem:[%s315 + $0x10] sm:$0x3] %vm313, 0.0
        %vm319 = vcmask 24576
        %320 = vst.msk [vmem:[#allocation2] sm:$0x1] %vm319, 0.0
        %321 = vst.msk [vmem:[#allocation2 + $0x18] sm:$0x1] %vm319, 0.0
        %322 = vst.msk [vmem:[#allocation2 + $0x30] sm:$0x1] %vm319, 0.0
        %323 = vst.msk [vmem:[#allocation2 + $0x48] sm:$0x1] %vm319, 0.0
        %324 = vst.msk [vmem:[#allocation2 + $0x60] sm:$0x1] %vm319, 0.0
        %325 = vst.msk [vmem:[#allocation2 + $0x78] sm:$0x1] %vm319, 0.0
        %326 = vst.msk [vmem:[#allocation2 + $0x90] sm:$0x1] %vm319, 0.0
        %327 = vst.msk [vmem:[#allocation2 + $0xa8] sm:$0x1] %vm319, 0.0
        %328 = vst.msk [vmem:[#allocation2 + $0xc0] sm:$0x1] %vm319, 0.0
        %329 = vst.msk [vmem:[#allocation2 + $0xd8] sm:$0x1] %vm319, 0.0
        %330 = vst.msk [vmem:[#allocation2 + $0xf0] sm:$0x1] %vm319, 0.0
        %331 = vst.msk [vmem:[#allocation2 + $0x108] sm:$0x1] %vm319, 0.0
        %332 = vst.msk [vmem:[#allocation2 + $0x120] sm:$0x1] %vm319, 0.0
        %333 = vst.msk [vmem:[#allocation2 + $0x138] sm:$0x1] %vm319, 0.0
        %334 = vst.msk [vmem:[#allocation2 + $0x150] sm:$0x1] %vm319, 0.0
        %335 = vst.msk [vmem:[#allocation2 + $0x168] sm:$0x1] %vm319, 0.0
        %336 = vst.msk [vmem:[#allocation2 + $0x180] sm:$0x1] %vm319, 0.0
        %337 = vst.msk [vmem:[#allocation2 + $0x198] sm:$0x1] %vm319, 0.0
        %338 = vst.msk [vmem:[#allocation2 + $0x11] sm:$0x1] %vm319, 0.0
        %339 = vst.msk [vmem:[#allocation2 + $0x29] sm:$0x1] %vm319, 0.0
        %340 = vst.msk [vmem:[#allocation2 + $0x41] sm:$0x1] %vm319, 0.0
        %341 = vst.msk [vmem:[#allocation2 + $0x59] sm:$0x1] %vm319, 0.0
        %342 = vst.msk [vmem:[#allocation2 + $0x71] sm:$0x1] %vm319, 0.0
        %343 = vst.msk [vmem:[#allocation2 + $0x89] sm:$0x1] %vm319, 0.0
        %344 = vst.msk [vmem:[#allocation2 + $0xa1] sm:$0x1] %vm319, 0.0
        %345 = vst.msk [vmem:[#allocation2 + $0xb9] sm:$0x1] %vm319, 0.0
        %346 = vst.msk [vmem:[#allocation2 + $0xd1] sm:$0x1] %vm319, 0.0
        %347 = vst.msk [vmem:[#allocation2 + $0xe9] sm:$0x1] %vm319, 0.0
        %348 = vst.msk [vmem:[#allocation2 + $0x101] sm:$0x1] %vm319, 0.0
        %349 = vst.msk [vmem:[#allocation2 + $0x119] sm:$0x1] %vm319, 0.0
        %350 = vst.msk [vmem:[#allocation2 + $0x131] sm:$0x1] %vm319, 0.0
        %351 = vst.msk [vmem:[#allocation2 + $0x149] sm:$0x1] %vm319, 0.0
        %352 = vst.msk [vmem:[#allocation2 + $0x161] sm:$0x1] %vm319, 0.0
        %353 = vst.msk [vmem:[#allocation2 + $0x179] sm:$0x1] %vm319, 0.0
        %354 = vst.msk [vmem:[#allocation2 + $0x191] sm:$0x1] %vm319, 0.0
        %355 = vst.msk [vmem:[#allocation2 + $0x1a9] sm:$0x1] %vm319, 0.0
        %s356 = scalar_lea.vmem [#allocation2], 24
        %357 = vst.msk [vmem:[%s356 + $0x1] sm:$0xff] %vm310, %v278
        %358 = vst.msk [vmem:[%s356 + $0x9] sm:$0xff] %vm310, %v279
        %359 = vst.msk [vmem:[%s356 + $0x19] sm:$0xff] %vm310, %v280
        %360 = vst.msk [vmem:[%s356 + $0x21] sm:$0xff] %vm310, %v281
        %361 = vst.msk [vmem:[%s356 + $0x31] sm:$0xff] %vm310, %v282
        %362 = vst.msk [vmem:[%s356 + $0x39] sm:$0xff] %vm310, %v283
        %363 = vst.msk [vmem:[%s356 + $0x49] sm:$0xff] %vm310, %v284
        %364 = vst.msk [vmem:[%s356 + $0x51] sm:$0xff] %vm310, %v285
        %365 = vst.msk [vmem:[%s356 + $0x61] sm:$0xff] %vm310, %v286
        %366 = vst.msk [vmem:[%s356 + $0x69] sm:$0xff] %vm310, %v287
        %367 = vst.msk [vmem:[%s356 + $0x79] sm:$0xff] %vm310, %v288
        %368 = vst.msk [vmem:[%s356 + $0x81] sm:$0xff] %vm310, %v289
        %369 = vst.msk [vmem:[%s356 + $0x91] sm:$0xff] %vm310, %v290
        %370 = vst.msk [vmem:[%s356 + $0x99] sm:$0xff] %vm310, %v291
        %371 = vst.msk [vmem:[%s356 + $0xa9] sm:$0xff] %vm310, %v292
        %372 = vst.msk [vmem:[%s356 + $0xb1] sm:$0xff] %vm310, %v293
        %373 = vst.msk [vmem:[%s356 + $0xc1] sm:$0xff] %vm310, %v294
        %374 = vst.msk [vmem:[%s356 + $0xc9] sm:$0xff] %vm310, %v295
        %375 = vst.msk [vmem:[%s356 + $0xd9] sm:$0xff] %vm310, %v296
        %376 = vst.msk [vmem:[%s356 + $0xe1] sm:$0xff] %vm310, %v297
        %377 = vst.msk [vmem:[%s356 + $0xf1] sm:$0xff] %vm310, %v298
        %378 = vst.msk [vmem:[%s356 + $0xf9] sm:$0xff] %vm310, %v299
        %379 = vst.msk [vmem:[%s356 + $0x109] sm:$0xff] %vm310, %v300
        %380 = vst.msk [vmem:[%s356 + $0x111] sm:$0xff] %vm310, %v301
        %381 = vst.msk [vmem:[%s356 + $0x121] sm:$0xff] %vm310, %v302
        %382 = vst.msk [vmem:[%s356 + $0x129] sm:$0xff] %vm310, %v303
        %383 = vst.msk [vmem:[%s356 + $0x139] sm:$0xff] %vm310, %v304
        %384 = vst.msk [vmem:[%s356 + $0x141] sm:$0xff] %vm310, %v305
        %385 = vst.msk [vmem:[%s356 + $0x151] sm:$0xff] %vm310, %v306
        %386 = vst.msk [vmem:[%s356 + $0x159] sm:$0xff] %vm310, %v307
        %387 = vst.msk [vmem:[%s356 + $0x169] sm:$0xff] %vm310, %v308
        %388 = vst.msk [vmem:[%s356 + $0x171] sm:$0xff] %vm310, %v309
        %v389 = vld [vmem:[#allocation2] sm:$0xff]
        %v390 = vld [vmem:[#allocation2 + $0x8] sm:$0xff]
        %v391 = vld [vmem:[#allocation2 + $0x18] sm:$0xff]
        %v392 = vld [vmem:[#allocation2 + $0x20] sm:$0xff]
        %v393 = vld [vmem:[#allocation2 + $0x30] sm:$0xff]
        %v394 = vld [vmem:[#allocation2 + $0x38] sm:$0xff]
        %v395 = vld [vmem:[#allocation2 + $0x48] sm:$0xff]
        %v396 = vld [vmem:[#allocation2 + $0x50] sm:$0xff]
        %v397 = vld [vmem:[#allocation2 + $0x60] sm:$0xff]
        %v398 = vld [vmem:[#allocation2 + $0x68] sm:$0xff]
        %v399 = vld [vmem:[#allocation2 + $0x78] sm:$0xff]
        %v400 = vld [vmem:[#allocation2 + $0x80] sm:$0xff]
        %v401 = vld [vmem:[#allocation2 + $0x90] sm:$0xff]
        %v402 = vld [vmem:[#allocation2 + $0x98] sm:$0xff]
        %v403 = vld [vmem:[#allocation2 + $0xa8] sm:$0xff]
        %v404 = vld [vmem:[#allocation2 + $0xb0] sm:$0xff]
        %v405 = vld [vmem:[#allocation2 + $0xc0] sm:$0xff]
        %v406 = vld [vmem:[#allocation2 + $0xc8] sm:$0xff]
        %v407 = vld [vmem:[#allocation2 + $0xd8] sm:$0xff]
        %v408 = vld [vmem:[#allocation2 + $0xe0] sm:$0xff]
        %v409 = vld [vmem:[#allocation2 + $0xf0] sm:$0xff]
        %v410 = vld [vmem:[#allocation2 + $0xf8] sm:$0xff]
        %v411 = vld [vmem:[#allocation2 + $0x108] sm:$0xff]
        %v412 = vld [vmem:[#allocation2 + $0x110] sm:$0xff]
        %v413 = vld [vmem:[#allocation2 + $0x120] sm:$0xff]
        %v414 = vld [vmem:[#allocation2 + $0x128] sm:$0xff]
        %v415 = vld [vmem:[#allocation2 + $0x138] sm:$0xff]
        %v416 = vld [vmem:[#allocation2 + $0x140] sm:$0xff]
        %v417 = vld [vmem:[#allocation2 + $0x150] sm:$0xff]
        %v418 = vld [vmem:[#allocation2 + $0x158] sm:$0xff]
        %v419 = vld [vmem:[#allocation2 + $0x168] sm:$0xff]
        %v420 = vld [vmem:[#allocation2 + $0x170] sm:$0xff]
        %v421 = vpack.c.bf16 %v390, %v389
        %v422 = vpack.c.bf16 %v392, %v391
        %v423 = vpack.c.bf16 %v394, %v393
        %v424 = vpack.c.bf16 %v396, %v395
        %v425 = vpack.c.bf16 %v398, %v397
        %v426 = vpack.c.bf16 %v400, %v399
        %v427 = vpack.c.bf16 %v402, %v401
        %v428 = vpack.c.bf16 %v404, %v403
        %v429 = vpack.c.bf16 %v406, %v405
        %v430 = vpack.c.bf16 %v408, %v407
        %v431 = vpack.c.bf16 %v410, %v409
        %v432 = vpack.c.bf16 %v412, %v411
        %v433 = vpack.c.bf16 %v414, %v413
        %v434 = vpack.c.bf16 %v416, %v415
        %v435 = vpack.c.bf16 %v418, %v417
        %v436 = vpack.c.bf16 %v420, %v419
        %v437 = vld [vmem:[%s1] sm:$0x3]
        %v438 = vld [vmem:[#allocation2 + $0x1] sm:$0xff]
        %v439 = vld [vmem:[#allocation2 + $0x9] sm:$0xff]
        %v440 = vld [vmem:[#allocation2 + $0x19] sm:$0xff]
        %v441 = vld [vmem:[#allocation2 + $0x21] sm:$0xff]
        %v442 = vld [vmem:[#allocation2 + $0x31] sm:$0xff]
        %v443 = vld [vmem:[#allocation2 + $0x39] sm:$0xff]
        %v444 = vld [vmem:[#allocation2 + $0x49] sm:$0xff]
        %v445 = vld [vmem:[#allocation2 + $0x51] sm:$0xff]
        %v446 = vld [vmem:[#allocation2 + $0x61] sm:$0xff]
        %v447 = vld [vmem:[#allocation2 + $0x69] sm:$0xff]
        %v448 = vld [vmem:[#allocation2 + $0x79] sm:$0xff]
        %v449 = vld [vmem:[#allocation2 + $0x81] sm:$0xff]
        %v450 = vld [vmem:[#allocation2 + $0x91] sm:$0xff]
        %v451 = vld [vmem:[#allocation2 + $0x99] sm:$0xff]
        %v452 = vld [vmem:[#allocation2 + $0xa9] sm:$0xff]
        %v453 = vld [vmem:[#allocation2 + $0xb1] sm:$0xff]
        %v454 = vld [vmem:[#allocation2 + $0xc1] sm:$0xff]
        %v455 = vld [vmem:[#allocation2 + $0xc9] sm:$0xff]
        %v456 = vld [vmem:[#allocation2 + $0xd9] sm:$0xff]
        %v457 = vld [vmem:[#allocation2 + $0xe1] sm:$0xff]
        %v458 = vld [vmem:[#allocation2 + $0xf1] sm:$0xff]
        %v459 = vld [vmem:[#allocation2 + $0xf9] sm:$0xff]
        %v460 = vld [vmem:[#allocation2 + $0x109] sm:$0xff]
        %v461 = vld [vmem:[#allocation2 + $0x111] sm:$0xff]
        %v462 = vld [vmem:[#allocation2 + $0x121] sm:$0xff]
        %v463 = vld [vmem:[#allocation2 + $0x129] sm:$0xff]
        %v464 = vld [vmem:[#allocation2 + $0x139] sm:$0xff]
        %v465 = vld [vmem:[#allocation2 + $0x141] sm:$0xff]
        %v466 = vld [vmem:[#allocation2 + $0x151] sm:$0xff]
        %v467 = vld [vmem:[#allocation2 + $0x159] sm:$0xff]
        %v468 = vld [vmem:[#allocation2 + $0x169] sm:$0xff]
        %v469 = vld [vmem:[#allocation2 + $0x171] sm:$0xff]
        %v470 = vpack.c.bf16 %v439, %v438
        %v471 = vpack.c.bf16 %v441, %v440
        %v472 = vpack.c.bf16 %v443, %v442
        %v473 = vpack.c.bf16 %v445, %v444
        %v474 = vpack.c.bf16 %v447, %v446
        %v475 = vpack.c.bf16 %v449, %v448
        %v476 = vpack.c.bf16 %v451, %v450
        %v477 = vpack.c.bf16 %v453, %v452
        %v478 = vpack.c.bf16 %v455, %v454
        %v479 = vpack.c.bf16 %v457, %v456
        %v480 = vpack.c.bf16 %v459, %v458
        %v481 = vpack.c.bf16 %v461, %v460
        %v482 = vpack.c.bf16 %v463, %v462
        %v483 = vpack.c.bf16 %v465, %v464
        %v484 = vpack.c.bf16 %v467, %v466
        %v485 = vpack.c.bf16 %v469, %v468
        %s486 = scalar_lea.vmem %s1, 2
        %v487 = vld [vmem:[%s486] sm:$0x3]
        %v489 = vsel %vm310, %v470, 0
        %v492 = vsel %vm310, %v471, 0
        %v495 = vsel %vm310, %v472, 0
        %v498 = vsel %vm310, %v473, 0
        %v501 = vsel %vm310, %v474, 0
        %v504 = vsel %vm310, %v475, 0
        %v507 = vsel %vm310, %v476, 0
        %v510 = vsel %vm310, %v477, 0
        %v513 = vsel %vm310, %v478, 0
        %v516 = vsel %vm310, %v479, 0
        %v519 = vsel %vm310, %v480, 0
        %v522 = vsel %vm310, %v481, 0
        %v525 = vsel %vm310, %v482, 0
        %v528 = vsel %vm310, %v483, 0
        %v531 = vsel %vm310, %v484, 0
        %v534 = vsel %vm310, %v485, 0
        %vm536 = vcmask 1041408
        %v538 = vsel %vm536, %v487, 0
        %540 = vmatprep.subr.bf16.mxu0 0
        %541 = vmatpush1.bf16.msra.mxu0 %v538
        %542 = vmatprep.subr.bf16.mxu0 0
        %543 = vmatpush1.bf16.msra.mxu0 0
        %544 = vmatprep.subr.bf16.mxu0 0
        %545 = vmatpush1.bf16.msra.mxu0 0
        %546 = vmatprep.subr.bf16.mxu0 0
        %547 = vmatpush1.bf16.msra.mxu0 0
        %548 = vmatprep.subr.bf16.mxu0 0
        %549 = vmatpush1.bf16.msra.mxu0 0
        %550 = vmatprep.subr.bf16.mxu0 0
        %551 = vmatpush1.bf16.msra.mxu0 0
        %552 = vmatprep.subr.bf16.mxu0 0
        %553 = vmatpush1.bf16.msra.mxu0 0
        %554 = vmatprep.subr.bf16.mxu0 0
        %555 = vmatpush1.bf16.msra.mxu0 0
        %556 = vmatprep.subr.bf16.mxu0 0
        %557 = vmatpush1.bf16.msra.mxu0 0
        %558 = vmatprep.subr.bf16.mxu0 0
        %559 = vmatpush1.bf16.msra.mxu0 0
        %560 = vmatprep.subr.bf16.mxu0 0
        %561 = vmatpush1.bf16.msra.mxu0 0
        %562 = vmatprep.subr.bf16.mxu0 0
        %563 = vmatpush1.bf16.msra.mxu0 0
        %564 = vmatprep.subr.bf16.mxu0 0
        %565 = vmatpush1.bf16.msra.mxu0 0
        %566 = vmatprep.subr.bf16.mxu0 0
        %567 = vmatpush1.bf16.msra.mxu0 0
        %568 = vmatprep.subr.bf16.mxu0 0
        %569 = vmatpush1.bf16.msra.mxu0 0
        %570 = vmatprep.subr.bf16.mxu0 0
        %571 = vmatpush1.bf16.msra.mxu0 0
        %572 = vmatprep.mubr.bf16.mxu0 0
        %573 = vmatmul.mubr.bf16.gmra.mrb[0].mxu0 %v489
        %v574 = vpop.f32.mrb[0].mxu0
        %v575 = vadd.f32 0.0, %v574
        %v576 = vpop.f32.mrb[0].mxu0
        %v577 = vpop.f32.mrb[0].mxu0
        %v578 = vadd.f32 0.0, %v577
        %v579 = vpop.f32.mrb[0].mxu0
        %580 = vmatprep.mubr.bf16.mxu0 0
        %581 = vmatmul.mubr.bf16.gmra.mrb[0].mxu0 %v492
        %v582 = vpop.f32.mrb[0].mxu0
        %v583 = vadd.f32 0.0, %v582
        %v584 = vpop.f32.mrb[0].mxu0
        %v585 = vpop.f32.mrb[0].mxu0
        %v586 = vadd.f32 0.0, %v585
        %v587 = vpop.f32.mrb[0].mxu0
        %588 = vmatprep.mubr.bf16.mxu0 0
        %589 = vmatmul.mubr.bf16.gmra.mrb[0].mxu0 %v495
        %v590 = vpop.f32.mrb[0].mxu0
        %v591 = vadd.f32 0.0, %v590
        %v592 = vpop.f32.mrb[0].mxu0
        %v593 = vpop.f32.mrb[0].mxu0
        %v594 = vadd.f32 0.0, %v593
        %v595 = vpop.f32.mrb[0].mxu0
        %596 = vmatprep.mubr.bf16.mxu0 0
        %597 = vmatmul.mubr.bf16.gmra.mrb[0].mxu0 %v498
        %v598 = vpop.f32.mrb[0].mxu0
        %v599 = vadd.f32 0.0, %v598
        %v600 = vpop.f32.mrb[0].mxu0
        %v601 = vpop.f32.mrb[0].mxu0
        %v602 = vadd.f32 0.0, %v601
        %v603 = vpop.f32.mrb[0].mxu0
        %604 = vmatprep.mubr.bf16.mxu0 0
        %605 = vmatmul.mubr.bf16.gmra.mrb[0].mxu0 %v501
        %v606 = vpop.f32.mrb[0].mxu0
        %v607 = vadd.f32 0.0, %v606
        %v608 = vpop.f32.mrb[0].mxu0
        %v609 = vpop.f32.mrb[0].mxu0
        %v610 = vadd.f32 0.0, %v609
        %v611 = vpop.f32.mrb[0].mxu0
        %612 = vmatprep.mubr.bf16.mxu0 0
        %613 = vmatmul.mubr.bf16.gmra.mrb[0].mxu0 %v504
        %v614 = vpop.f32.mrb[0].mxu0
        %v615 = vadd.f32 0.0, %v614
        %v616 = vpop.f32.mrb[0].mxu0
        %v617 = vpop.f32.mrb[0].mxu0
        %v618 = vadd.f32 0.0, %v617
        %v619 = vpop.f32.mrb[0].mxu0
        %620 = vmatprep.mubr.bf16.mxu0 0
        %621 = vmatmul.mubr.bf16.gmra.mrb[0].mxu0 %v507
        %v622 = vpop.f32.mrb[0].mxu0
        %v623 = vadd.f32 0.0, %v622
        %v624 = vpop.f32.mrb[0].mxu0
        %v625 = vpop.f32.mrb[0].mxu0
        %v626 = vadd.f32 0.0, %v625
        %v627 = vpop.f32.mrb[0].mxu0
        %628 = vmatprep.mubr.bf16.mxu0 0
        %629 = vmatmul.mubr.bf16.gmra.mrb[0].mxu0 %v510
        %v630 = vpop.f32.mrb[0].mxu0
        %v631 = vadd.f32 0.0, %v630
        %v632 = vpop.f32.mrb[0].mxu0
        %v633 = vpop.f32.mrb[0].mxu0
        %v634 = vadd.f32 0.0, %v633
        %v635 = vpop.f32.mrb[0].mxu0
        %636 = vmatprep.mubr.bf16.mxu0 0
        %637 = vmatmul.mubr.bf16.gmra.mrb[0].mxu0 %v513
        %v638 = vpop.f32.mrb[0].mxu0
        %v639 = vadd.f32 0.0, %v638
        %v640 = vpop.f32.mrb[0].mxu0
        %v641 = vpop.f32.mrb[0].mxu0
        %v642 = vadd.f32 0.0, %v641
        %v643 = vpop.f32.mrb[0].mxu0
        %644 = vmatprep.mubr.bf16.mxu0 0
        %645 = vmatmul.mubr.bf16.gmra.mrb[0].mxu0 %v516
        %v646 = vpop.f32.mrb[0].mxu0
        %v647 = vadd.f32 0.0, %v646
        %v648 = vpop.f32.mrb[0].mxu0
        %v649 = vpop.f32.mrb[0].mxu0
        %v650 = vadd.f32 0.0, %v649
        %v651 = vpop.f32.mrb[0].mxu0
        %652 = vmatprep.mubr.bf16.mxu0 0
        %653 = vmatmul.mubr.bf16.gmra.mrb[0].mxu0 %v519
        %v654 = vpop.f32.mrb[0].mxu0
        %v655 = vadd.f32 0.0, %v654
        %v656 = vpop.f32.mrb[0].mxu0
        %v657 = vpop.f32.mrb[0].mxu0
        %v658 = vadd.f32 0.0, %v657
        %v659 = vpop.f32.mrb[0].mxu0
        %660 = vmatprep.mubr.bf16.mxu0 0
        %661 = vmatmul.mubr.bf16.gmra.mrb[0].mxu0 %v522
        %v662 = vpop.f32.mrb[0].mxu0
        %v663 = vadd.f32 0.0, %v662
        %v664 = vpop.f32.mrb[0].mxu0
        %v665 = vpop.f32.mrb[0].mxu0
        %v666 = vadd.f32 0.0, %v665
        %v667 = vpop.f32.mrb[0].mxu0
        %668 = vmatprep.mubr.bf16.mxu0 0
        %669 = vmatmul.mubr.bf16.gmra.mrb[0].mxu0 %v525
        %v670 = vpop.f32.mrb[0].mxu0
        %v671 = vadd.f32 0.0, %v670
        %v672 = vpop.f32.mrb[0].mxu0
        %v673 = vpop.f32.mrb[0].mxu0
        %v674 = vadd.f32 0.0, %v673
        %v675 = vpop.f32.mrb[0].mxu0
        %676 = vmatprep.mubr.bf16.mxu0 0
        %677 = vmatmul.mubr.bf16.gmra.mrb[0].mxu0 %v528
        %v678 = vpop.f32.mrb[0].mxu0
        %v679 = vadd.f32 0.0, %v678
        %v680 = vpop.f32.mrb[0].mxu0
        %v681 = vpop.f32.mrb[0].mxu0
        %v682 = vadd.f32 0.0, %v681
        %v683 = vpop.f32.mrb[0].mxu0
        %684 = vmatprep.mubr.bf16.mxu0 0
        %685 = vmatmul.mubr.bf16.gmra.mrb[0].mxu0 %v531
        %v686 = vpop.f32.mrb[0].mxu0
        %v687 = vadd.f32 0.0, %v686
        %v688 = vpop.f32.mrb[0].mxu0
        %v689 = vpop.f32.mrb[0].mxu0
        %v690 = vadd.f32 0.0, %v689
        %v691 = vpop.f32.mrb[0].mxu0
        %692 = vmatprep.mubr.bf16.mxu0 0
        %693 = vmatmul.mubr.bf16.gmra.mrb[0].mxu0 %v534
        %v694 = vpop.f32.mrb[0].mxu0
        %v695 = vadd.f32 0.0, %v694
        %v696 = vpop.f32.mrb[0].mxu0
        %v697 = vpop.f32.mrb[0].mxu0
        %v698 = vadd.f32 0.0, %v697
        %v699 = vpop.f32.mrb[0].mxu0
        %700 = vdwg.mxu0
        %v702 = vsel %vm310, %v421, 0
        %v705 = vsel %vm310, %v422, 0
        %v708 = vsel %vm310, %v423, 0
        %v711 = vsel %vm310, %v424, 0
        %v714 = vsel %vm310, %v425, 0
        %v717 = vsel %vm310, %v426, 0
        %v720 = vsel %vm310, %v427, 0
        %v723 = vsel %vm310, %v428, 0
        %v726 = vsel %vm310, %v429, 0
        %v729 = vsel %vm310, %v430, 0
        %v732 = vsel %vm310, %v431, 0
        %v735 = vsel %vm310, %v432, 0
        %v738 = vsel %vm310, %v433, 0
        %v741 = vsel %vm310, %v434, 0
        %v744 = vsel %vm310, %v435, 0
        %v747 = vsel %vm310, %v436, 0
        %v750 = vsel %vm536, %v437, 0
        %752 = vmatprep.subr.bf16.mxu0 0
        %753 = vmatpush1.bf16.msra.mxu0 %v750
        %754 = vmatprep.subr.bf16.mxu0 0
        %755 = vmatpush1.bf16.msra.mxu0 0
        %756 = vmatprep.subr.bf16.mxu0 0
        %757 = vmatpush1.bf16.msra.mxu0 0
        %758 = vmatprep.subr.bf16.mxu0 0
        %759 = vmatpush1.bf16.msra.mxu0 0
        %760 = vmatprep.subr.bf16.mxu0 0
        %761 = vmatpush1.bf16.msra.mxu0 0
        %762 = vmatprep.subr.bf16.mxu0 0
        %763 = vmatpush1.bf16.msra.mxu0 0
        %764 = vmatprep.subr.bf16.mxu0 0
        %765 = vmatpush1.bf16.msra.mxu0 0
        %766 = vmatprep.subr.bf16.mxu0 0
        %767 = vmatpush1.bf16.msra.mxu0 0
        %768 = vmatprep.subr.bf16.mxu0 0
        %769 = vmatpush1.bf16.msra.mxu0 0
        %770 = vmatprep.subr.bf16.mxu0 0
        %771 = vmatpush1.bf16.msra.mxu0 0
        %772 = vmatprep.subr.bf16.mxu0 0
        %773 = vmatpush1.bf16.msra.mxu0 0
        %774 = vmatprep.subr.bf16.mxu0 0
        %775 = vmatpush1.bf16.msra.mxu0 0
        %776 = vmatprep.subr.bf16.mxu0 0
        %777 = vmatpush1.bf16.msra.mxu0 0
        %778 = vmatprep.subr.bf16.mxu0 0
        %779 = vmatpush1.bf16.msra.mxu0 0
        %780 = vmatprep.subr.bf16.mxu0 0
        %781 = vmatpush1.bf16.msra.mxu0 0
        %782 = vmatprep.subr.bf16.mxu0 0
        %783 = vmatpush1.bf16.msra.mxu0 0
        %784 = vmatprep.mubr.bf16.mxu0 0
        %785 = vmatmul.mubr.bf16.gmra.mrb[0].mxu0 %v702
        %v786 = vpop.f32.mrb[0].mxu0
        %v787 = vadd.f32 %v575, %v786
        %v788 = vpop.f32.mrb[0].mxu0
        %v789 = vpop.f32.mrb[0].mxu0
        %v790 = vadd.f32 %v578, %v789
        %v791 = vpop.f32.mrb[0].mxu0
        %792 = vmatprep.mubr.bf16.mxu0 0
        %793 = vmatmul.mubr.bf16.gmra.mrb[0].mxu0 %v705
        %v794 = vpop.f32.mrb[0].mxu0
        %v795 = vadd.f32 %v583, %v794
        %v796 = vpop.f32.mrb[0].mxu0
        %v797 = vpop.f32.mrb[0].mxu0
        %v798 = vadd.f32 %v586, %v797
        %v799 = vpop.f32.mrb[0].mxu0
        %800 = vmatprep.mubr.bf16.mxu0 0
        %801 = vmatmul.mubr.bf16.gmra.mrb[0].mxu0 %v708
        %v802 = vpop.f32.mrb[0].mxu0
        %v803 = vadd.f32 %v591, %v802
        %v804 = vpop.f32.mrb[0].mxu0
        %v805 = vpop.f32.mrb[0].mxu0
        %v806 = vadd.f32 %v594, %v805
        %v807 = vpop.f32.mrb[0].mxu0
        %808 = vmatprep.mubr.bf16.mxu0 0
        %809 = vmatmul.mubr.bf16.gmra.mrb[0].mxu0 %v711
        %v810 = vpop.f32.mrb[0].mxu0
        %v811 = vadd.f32 %v599, %v810
        %v812 = vpop.f32.mrb[0].mxu0
        %v813 = vpop.f32.mrb[0].mxu0
        %v814 = vadd.f32 %v602, %v813
        %v815 = vpop.f32.mrb[0].mxu0
        %816 = vmatprep.mubr.bf16.mxu0 0
        %817 = vmatmul.mubr.bf16.gmra.mrb[0].mxu0 %v714
        %v818 = vpop.f32.mrb[0].mxu0
        %v819 = vadd.f32 %v607, %v818
        %v820 = vpop.f32.mrb[0].mxu0
        %v821 = vpop.f32.mrb[0].mxu0
        %v822 = vadd.f32 %v610, %v821
        %v823 = vpop.f32.mrb[0].mxu0
        %824 = vmatprep.mubr.bf16.mxu0 0
        %825 = vmatmul.mubr.bf16.gmra.mrb[0].mxu0 %v717
        %v826 = vpop.f32.mrb[0].mxu0
        %v827 = vadd.f32 %v615, %v826
        %v828 = vpop.f32.mrb[0].mxu0
        %v829 = vpop.f32.mrb[0].mxu0
        %v830 = vadd.f32 %v618, %v829
        %v831 = vpop.f32.mrb[0].mxu0
        %832 = vmatprep.mubr.bf16.mxu0 0
        %833 = vmatmul.mubr.bf16.gmra.mrb[0].mxu0 %v720
        %v834 = vpop.f32.mrb[0].mxu0
        %v835 = vadd.f32 %v623, %v834
        %v836 = vpop.f32.mrb[0].mxu0
        %v837 = vpop.f32.mrb[0].mxu0
        %v838 = vadd.f32 %v626, %v837
        %v839 = vpop.f32.mrb[0].mxu0
        %840 = vmatprep.mubr.bf16.mxu0 0
        %841 = vmatmul.mubr.bf16.gmra.mrb[0].mxu0 %v723
        %v842 = vpop.f32.mrb[0].mxu0
        %v843 = vadd.f32 %v631, %v842
        %v844 = vpop.f32.mrb[0].mxu0
        %v845 = vpop.f32.mrb[0].mxu0
        %v846 = vadd.f32 %v634, %v845
        %v847 = vpop.f32.mrb[0].mxu0
        %848 = vmatprep.mubr.bf16.mxu0 0
        %849 = vmatmul.mubr.bf16.gmra.mrb[0].mxu0 %v726
        %v850 = vpop.f32.mrb[0].mxu0
        %v851 = vadd.f32 %v639, %v850
        %v852 = vpop.f32.mrb[0].mxu0
        %v853 = vpop.f32.mrb[0].mxu0
        %v854 = vadd.f32 %v642, %v853
        %v855 = vpop.f32.mrb[0].mxu0
        %856 = vmatprep.mubr.bf16.mxu0 0
        %857 = vmatmul.mubr.bf16.gmra.mrb[0].mxu0 %v729
        %v858 = vpop.f32.mrb[0].mxu0
        %v859 = vadd.f32 %v647, %v858
        %v860 = vpop.f32.mrb[0].mxu0
        %v861 = vpop.f32.mrb[0].mxu0
        %v862 = vadd.f32 %v650, %v861
        %v863 = vpop.f32.mrb[0].mxu0
        %864 = vmatprep.mubr.bf16.mxu0 0
        %865 = vmatmul.mubr.bf16.gmra.mrb[0].mxu0 %v732
        %v866 = vpop.f32.mrb[0].mxu0
        %v867 = vadd.f32 %v655, %v866
        %v868 = vpop.f32.mrb[0].mxu0
        %v869 = vpop.f32.mrb[0].mxu0
        %v870 = vadd.f32 %v658, %v869
        %v871 = vpop.f32.mrb[0].mxu0
        %872 = vmatprep.mubr.bf16.mxu0 0
        %873 = vmatmul.mubr.bf16.gmra.mrb[0].mxu0 %v735
        %v874 = vpop.f32.mrb[0].mxu0
        %v875 = vadd.f32 %v663, %v874
        %v876 = vpop.f32.mrb[0].mxu0
        %v877 = vpop.f32.mrb[0].mxu0
        %v878 = vadd.f32 %v666, %v877
        %v879 = vpop.f32.mrb[0].mxu0
        %880 = vmatprep.mubr.bf16.mxu0 0
        %881 = vmatmul.mubr.bf16.gmra.mrb[0].mxu0 %v738
        %v882 = vpop.f32.mrb[0].mxu0
        %v883 = vadd.f32 %v671, %v882
        %v884 = vpop.f32.mrb[0].mxu0
        %v885 = vpop.f32.mrb[0].mxu0
        %v886 = vadd.f32 %v674, %v885
        %v887 = vpop.f32.mrb[0].mxu0
        %888 = vmatprep.mubr.bf16.mxu0 0
        %889 = vmatmul.mubr.bf16.gmra.mrb[0].mxu0 %v741
        %v890 = vpop.f32.mrb[0].mxu0
        %v891 = vadd.f32 %v679, %v890
        %v892 = vpop.f32.mrb[0].mxu0
        %v893 = vpop.f32.mrb[0].mxu0
        %v894 = vadd.f32 %v682, %v893
        %v895 = vpop.f32.mrb[0].mxu0
        %896 = vmatprep.mubr.bf16.mxu0 0
        %897 = vmatmul.mubr.bf16.gmra.mrb[0].mxu0 %v744
        %v898 = vpop.f32.mrb[0].mxu0
        %v899 = vadd.f32 %v687, %v898
        %v900 = vpop.f32.mrb[0].mxu0
        %v901 = vpop.f32.mrb[0].mxu0
        %v902 = vadd.f32 %v690, %v901
        %v903 = vpop.f32.mrb[0].mxu0
        %904 = vmatprep.mubr.bf16.mxu0 0
        %905 = vmatmul.mubr.bf16.gmra.mrb[0].mxu0 %v747
        %v906 = vpop.f32.mrb[0].mxu0
        %v907 = vadd.f32 %v695, %v906
        %v908 = vpop.f32.mrb[0].mxu0
        %v909 = vpop.f32.mrb[0].mxu0
        %v910 = vadd.f32 %v698, %v909
        %v911 = vpop.f32.mrb[0].mxu0
        %912 = vdwg.mxu0
        %v913 = vld [vmem:[#allocation2 + $0x2] sm:$0xff]
        %v914 = vld [vmem:[#allocation2 + $0xa] sm:$0xff]
        %v915 = vld [vmem:[#allocation2 + $0x1a] sm:$0xff]
        %v916 = vld [vmem:[#allocation2 + $0x22] sm:$0xff]
        %v917 = vld [vmem:[#allocation2 + $0x32] sm:$0xff]
        %v918 = vld [vmem:[#allocation2 + $0x3a] sm:$0xff]
        %v919 = vld [vmem:[#allocation2 + $0x4a] sm:$0xff]
        %v920 = vld [vmem:[#allocation2 + $0x52] sm:$0xff]
        %v921 = vld [vmem:[#allocation2 + $0x62] sm:$0xff]
        %v922 = vld [vmem:[#allocation2 + $0x6a] sm:$0xff]
        %v923 = vld [vmem:[#allocation2 + $0x7a] sm:$0xff]
        %v924 = vld [vmem:[#allocation2 + $0x82] sm:$0xff]
        %v925 = vld [vmem:[#allocation2 + $0x92] sm:$0xff]
        %v926 = vld [vmem:[#allocation2 + $0x9a] sm:$0xff]
        %v927 = vld [vmem:[#allocation2 + $0xaa] sm:$0xff]
        %v928 = vld [vmem:[#allocation2 + $0xb2] sm:$0xff]
        %v929 = vld [vmem:[#allocation2 + $0xc2] sm:$0xff]
        %v930 = vld [vmem:[#allocation2 + $0xca] sm:$0xff]
        %v931 = vld [vmem:[#allocation2 + $0xda] sm:$0xff]
        %v932 = vld [vmem:[#allocation2 + $0xe2] sm:$0xff]
        %v933 = vld [vmem:[#allocation2 + $0xf2] sm:$0xff]
        %v934 = vld [vmem:[#allocation2 + $0xfa] sm:$0xff]
        %v935 = vld [vmem:[#allocation2 + $0x10a] sm:$0xff]
        %v936 = vld [vmem:[#allocation2 + $0x112] sm:$0xff]
        %v937 = vld [vmem:[#allocation2 + $0x122] sm:$0xff]
        %v938 = vld [vmem:[#allocation2 + $0x12a] sm:$0xff]
        %v939 = vld [vmem:[#allocation2 + $0x13a] sm:$0xff]
        %v940 = vld [vmem:[#allocation2 + $0x142] sm:$0xff]
        %v941 = vld [vmem:[#allocation2 + $0x152] sm:$0xff]
        %v942 = vld [vmem:[#allocation2 + $0x15a] sm:$0xff]
        %v943 = vld [vmem:[#allocation2 + $0x16a] sm:$0xff]
        %v944 = vld [vmem:[#allocation2 + $0x172] sm:$0xff]
        %v945 = vpack.c.bf16 %v914, %v913
        %v946 = vpack.c.bf16 %v916, %v915
        %v947 = vpack.c.bf16 %v918, %v917
        %v948 = vpack.c.bf16 %v920, %v919
        %v949 = vpack.c.bf16 %v922, %v921
        %v950 = vpack.c.bf16 %v924, %v923
        %v951 = vpack.c.bf16 %v926, %v925
        %v952 = vpack.c.bf16 %v928, %v927
        %v953 = vpack.c.bf16 %v930, %v929
        %v954 = vpack.c.bf16 %v932, %v931
        %v955 = vpack.c.bf16 %v934, %v933
        %v956 = vpack.c.bf16 %v936, %v935
        %v957 = vpack.c.bf16 %v938, %v937
        %v958 = vpack.c.bf16 %v940, %v939
        %v959 = vpack.c.bf16 %v942, %v941
        %v960 = vpack.c.bf16 %v944, %v943
        %s961 = scalar_lea.vmem %s1, 4
        %v962 = vld [vmem:[%s961] sm:$0x3]
        %v964 = vsel %vm310, %v945, 0
        %v967 = vsel %vm310, %v946, 0
        %v970 = vsel %vm310, %v947, 0
        %v973 = vsel %vm310, %v948, 0
        %v976 = vsel %vm310, %v949, 0
        %v979 = vsel %vm310, %v950, 0
        %v982 = vsel %vm310, %v951, 0
        %v985 = vsel %vm310, %v952, 0
        %v988 = vsel %vm310, %v953, 0
        %v991 = vsel %vm310, %v954, 0
        %v994 = vsel %vm310, %v955, 0
        %v997 = vsel %vm310, %v956, 0
        %v1000 = vsel %vm310, %v957, 0
        %v1003 = vsel %vm310, %v958, 0
        %v1006 = vsel %vm310, %v959, 0
        %v1009 = vsel %vm310, %v960, 0
        %v1012 = vsel %vm536, %v962, 0
        %1014 = vmatprep.subr.bf16.mxu0 0
        %1015 = vmatpush1.bf16.msra.mxu0 %v1012
        %1016 = vmatprep.subr.bf16.mxu0 0
        %1017 = vmatpush1.bf16.msra.mxu0 0
        %1018 = vmatprep.subr.bf16.mxu0 0
        %1019 = vmatpush1.bf16.msra.mxu0 0
        %1020 = vmatprep.subr.bf16.mxu0 0
        %1021 = vmatpush1.bf16.msra.mxu0 0
        %1022 = vmatprep.subr.bf16.mxu0 0
        %1023 = vmatpush1.bf16.msra.mxu0 0
        %1024 = vmatprep.subr.bf16.mxu0 0
        %1025 = vmatpush1.bf16.msra.mxu0 0
        %1026 = vmatprep.subr.bf16.mxu0 0
        %1027 = vmatpush1.bf16.msra.mxu0 0
        %1028 = vmatprep.subr.bf16.mxu0 0
        %1029 = vmatpush1.bf16.msra.mxu0 0
        %1030 = vmatprep.subr.bf16.mxu0 0
        %1031 = vmatpush1.bf16.msra.mxu0 0
        %1032 = vmatprep.subr.bf16.mxu0 0
        %1033 = vmatpush1.bf16.msra.mxu0 0
        %1034 = vmatprep.subr.bf16.mxu0 0
        %1035 = vmatpush1.bf16.msra.mxu0 0
        %1036 = vmatprep.subr.bf16.mxu0 0
        %1037 = vmatpush1.bf16.msra.mxu0 0
        %1038 = vmatprep.subr.bf16.mxu0 0
        %1039 = vmatpush1.bf16.msra.mxu0 0
        %1040 = vmatprep.subr.bf16.mxu0 0
        %1041 = vmatpush1.bf16.msra.mxu0 0
        %1042 = vmatprep.subr.bf16.mxu0 0
        %1043 = vmatpush1.bf16.msra.mxu0 0
        %1044 = vmatprep.subr.bf16.mxu0 0
        %1045 = vmatpush1.bf16.msra.mxu0 0
        %1046 = vmatprep.mubr.bf16.mxu0 0
        %1047 = vmatmul.mubr.bf16.gmra.mrb[0].mxu0 %v964
        %v1048 = vpop.f32.mrb[0].mxu0
        %v1049 = vadd.f32 0.0, %v1048
        %v1050 = vpop.f32.mrb[0].mxu0
        %v1051 = vpop.f32.mrb[0].mxu0
        %v1052 = vadd.f32 0.0, %v1051
        %v1053 = vpop.f32.mrb[0].mxu0
        %1054 = vmatprep.mubr.bf16.mxu0 0
        %1055 = vmatmul.mubr.bf16.gmra.mrb[0].mxu0 %v967
        %v1056 = vpop.f32.mrb[0].mxu0
        %v1057 = vadd.f32 0.0, %v1056
        %v1058 = vpop.f32.mrb[0].mxu0
        %v1059 = vpop.f32.mrb[0].mxu0
        %v1060 = vadd.f32 0.0, %v1059
        %v1061 = vpop.f32.mrb[0].mxu0
        %1062 = vmatprep.mubr.bf16.mxu0 0
        %1063 = vmatmul.mubr.bf16.gmra.mrb[0].mxu0 %v970
        %v1064 = vpop.f32.mrb[0].mxu0
        %v1065 = vadd.f32 0.0, %v1064
        %v1066 = vpop.f32.mrb[0].mxu0
        %v1067 = vpop.f32.mrb[0].mxu0
        %v1068 = vadd.f32 0.0, %v1067
        %v1069 = vpop.f32.mrb[0].mxu0
        %1070 = vmatprep.mubr.bf16.mxu0 0
        %1071 = vmatmul.mubr.bf16.gmra.mrb[0].mxu0 %v973
        %v1072 = vpop.f32.mrb[0].mxu0
        %v1073 = vadd.f32 0.0, %v1072
        %v1074 = vpop.f32.mrb[0].mxu0
        %v1075 = vpop.f32.mrb[0].mxu0
        %v1076 = vadd.f32 0.0, %v1075
        %v1077 = vpop.f32.mrb[0].mxu0
        %1078 = vmatprep.mubr.bf16.mxu0 0
        %1079 = vmatmul.mubr.bf16.gmra.mrb[0].mxu0 %v976
        %v1080 = vpop.f32.mrb[0].mxu0
        %v1081 = vadd.f32 0.0, %v1080
        %v1082 = vpop.f32.mrb[0].mxu0
        %v1083 = vpop.f32.mrb[0].mxu0
        %v1084 = vadd.f32 0.0, %v1083
        %v1085 = vpop.f32.mrb[0].mxu0
        %1086 = vmatprep.mubr.bf16.mxu0 0
        %1087 = vmatmul.mubr.bf16.gmra.mrb[0].mxu0 %v979
        %v1088 = vpop.f32.mrb[0].mxu0
        %v1089 = vadd.f32 0.0, %v1088
        %v1090 = vpop.f32.mrb[0].mxu0
        %v1091 = vpop.f32.mrb[0].mxu0
        %v1092 = vadd.f32 0.0, %v1091
        %v1093 = vpop.f32.mrb[0].mxu0
        %1094 = vmatprep.mubr.bf16.mxu0 0
        %1095 = vmatmul.mubr.bf16.gmra.mrb[0].mxu0 %v982
        %v1096 = vpop.f32.mrb[0].mxu0
        %v1097 = vadd.f32 0.0, %v1096
        %v1098 = vpop.f32.mrb[0].mxu0
        %v1099 = vpop.f32.mrb[0].mxu0
        %v1100 = vadd.f32 0.0, %v1099
        %v1101 = vpop.f32.mrb[0].mxu0
        %1102 = vmatprep.mubr.bf16.mxu0 0
        %1103 = vmatmul.mubr.bf16.gmra.mrb[0].mxu0 %v985
        %v1104 = vpop.f32.mrb[0].mxu0
        %v1105 = vadd.f32 0.0, %v1104
        %v1106 = vpop.f32.mrb[0].mxu0
        %v1107 = vpop.f32.mrb[0].mxu0
        %v1108 = vadd.f32 0.0, %v1107
        %v1109 = vpop.f32.mrb[0].mxu0
        %1110 = vmatprep.mubr.bf16.mxu0 0
        %1111 = vmatmul.mubr.bf16.gmra.mrb[0].mxu0 %v988
        %v1112 = vpop.f32.mrb[0].mxu0
        %v1113 = vadd.f32 0.0, %v1112
        %v1114 = vpop.f32.mrb[0].mxu0
        %v1115 = vpop.f32.mrb[0].mxu0
        %v1116 = vadd.f32 0.0, %v1115
        %v1117 = vpop.f32.mrb[0].mxu0
        %1118 = vmatprep.mubr.bf16.mxu0 0
        %1119 = vmatmul.mubr.bf16.gmra.mrb[0].mxu0 %v991
        %v1120 = vpop.f32.mrb[0].mxu0
        %v1121 = vadd.f32 0.0, %v1120
        %v1122 = vpop.f32.mrb[0].mxu0
        %v1123 = vpop.f32.mrb[0].mxu0
        %v1124 = vadd.f32 0.0, %v1123
        %v1125 = vpop.f32.mrb[0].mxu0
        %1126 = vmatprep.mubr.bf16.mxu0 0
        %1127 = vmatmul.mubr.bf16.gmra.mrb[0].mxu0 %v994
        %v1128 = vpop.f32.mrb[0].mxu0
        %v1129 = vadd.f32 0.0, %v1128
        %v1130 = vpop.f32.mrb[0].mxu0
        %v1131 = vpop.f32.mrb[0].mxu0
        %v1132 = vadd.f32 0.0, %v1131
        %v1133 = vpop.f32.mrb[0].mxu0
        %1134 = vmatprep.mubr.bf16.mxu0 0
        %1135 = vmatmul.mubr.bf16.gmra.mrb[0].mxu0 %v997
        %v1136 = vpop.f32.mrb[0].mxu0
        %v1137 = vadd.f32 0.0, %v1136
        %v1138 = vpop.f32.mrb[0].mxu0
        %v1139 = vpop.f32.mrb[0].mxu0
        %v1140 = vadd.f32 0.0, %v1139
        %v1141 = vpop.f32.mrb[0].mxu0
        %1142 = vmatprep.mubr.bf16.mxu0 0
        %1143 = vmatmul.mubr.bf16.gmra.mrb[0].mxu0 %v1000
        %v1144 = vpop.f32.mrb[0].mxu0
        %v1145 = vadd.f32 0.0, %v1144
        %v1146 = vpop.f32.mrb[0].mxu0
        %v1147 = vpop.f32.mrb[0].mxu0
        %v1148 = vadd.f32 0.0, %v1147
        %v1149 = vpop.f32.mrb[0].mxu0
        %1150 = vmatprep.mubr.bf16.mxu0 0
        %1151 = vmatmul.mubr.bf16.gmra.mrb[0].mxu0 %v1003
        %v1152 = vpop.f32.mrb[0].mxu0
        %v1153 = vadd.f32 0.0, %v1152
        %v1154 = vpop.f32.mrb[0].mxu0
        %v1155 = vpop.f32.mrb[0].mxu0
        %v1156 = vadd.f32 0.0, %v1155
        %v1157 = vpop.f32.mrb[0].mxu0
        %1158 = vmatprep.mubr.bf16.mxu0 0
        %1159 = vmatmul.mubr.bf16.gmra.mrb[0].mxu0 %v1006
        %v1160 = vpop.f32.mrb[0].mxu0
        %v1161 = vadd.f32 0.0, %v1160
        %v1162 = vpop.f32.mrb[0].mxu0
        %v1163 = vpop.f32.mrb[0].mxu0
        %v1164 = vadd.f32 0.0, %v1163
        %v1165 = vpop.f32.mrb[0].mxu0
        %1166 = vmatprep.mubr.bf16.mxu0 0
        %1167 = vmatmul.mubr.bf16.gmra.mrb[0].mxu0 %v1009
        %v1168 = vpop.f32.mrb[0].mxu0
        %v1169 = vadd.f32 0.0, %v1168
        %v1170 = vpop.f32.mrb[0].mxu0
        %v1171 = vpop.f32.mrb[0].mxu0
        %v1172 = vadd.f32 0.0, %v1171
        %v1173 = vpop.f32.mrb[0].mxu0
        %1174 = vdwg.mxu0
        %v1175 = vadd.f32 %v787, %v1049
        %v1176 = vadd.f32 %v790, %v1052
        %v1177 = vadd.f32 %v795, %v1057
        %v1178 = vadd.f32 %v798, %v1060
        %v1179 = vadd.f32 %v803, %v1065
        %v1180 = vadd.f32 %v806, %v1068
        %v1181 = vadd.f32 %v811, %v1073
        %v1182 = vadd.f32 %v814, %v1076
        %v1183 = vadd.f32 %v819, %v1081
        %v1184 = vadd.f32 %v822, %v1084
        %v1185 = vadd.f32 %v827, %v1089
        %v1186 = vadd.f32 %v830, %v1092
        %v1187 = vadd.f32 %v835, %v1097
        %v1188 = vadd.f32 %v838, %v1100
        %v1189 = vadd.f32 %v843, %v1105
        %v1190 = vadd.f32 %v846, %v1108
        %v1191 = vadd.f32 %v851, %v1113
        %v1192 = vadd.f32 %v854, %v1116
        %v1193 = vadd.f32 %v859, %v1121
        %v1194 = vadd.f32 %v862, %v1124
        %v1195 = vadd.f32 %v867, %v1129
        %v1196 = vadd.f32 %v870, %v1132
        %v1197 = vadd.f32 %v875, %v1137
        %v1198 = vadd.f32 %v878, %v1140
        %v1199 = vadd.f32 %v883, %v1145
        %v1200 = vadd.f32 %v886, %v1148
        %v1201 = vadd.f32 %v891, %v1153
        %v1202 = vadd.f32 %v894, %v1156
        %v1203 = vadd.f32 %v899, %v1161
        %v1204 = vadd.f32 %v902, %v1164
        %v1205 = vadd.f32 %v907, %v1169
        %v1206 = vadd.f32 %v910, %v1172
        %v1207 = vld [vmem:[%s356] sm:$0xff]
        %v1208 = vld [vmem:[%s356 + $0x8] sm:$0xff]
        %v1209 = vld [vmem:[%s356 + $0x18] sm:$0xff]
        %v1210 = vld [vmem:[%s356 + $0x20] sm:$0xff]
        %v1211 = vld [vmem:[%s356 + $0x30] sm:$0xff]
        %v1212 = vld [vmem:[%s356 + $0x38] sm:$0xff]
        %v1213 = vld [vmem:[%s356 + $0x48] sm:$0xff]
        %v1214 = vld [vmem:[%s356 + $0x50] sm:$0xff]
        %v1215 = vld [vmem:[%s356 + $0x60] sm:$0xff]
        %v1216 = vld [vmem:[%s356 + $0x68] sm:$0xff]
        %v1217 = vld [vmem:[%s356 + $0x78] sm:$0xff]
        %v1218 = vld [vmem:[%s356 + $0x80] sm:$0xff]
        %v1219 = vld [vmem:[%s356 + $0x90] sm:$0xff]
        %v1220 = vld [vmem:[%s356 + $0x98] sm:$0xff]
        %v1221 = vld [vmem:[%s356 + $0xa8] sm:$0xff]
        %v1222 = vld [vmem:[%s356 + $0xb0] sm:$0xff]
        %v1223 = vld [vmem:[%s356 + $0xc0] sm:$0xff]
        %v1224 = vld [vmem:[%s356 + $0xc8] sm:$0xff]
        %v1225 = vld [vmem:[%s356 + $0xd8] sm:$0xff]
        %v1226 = vld [vmem:[%s356 + $0xe0] sm:$0xff]
        %v1227 = vld [vmem:[%s356 + $0xf0] sm:$0xff]
        %v1228 = vld [vmem:[%s356 + $0xf8] sm:$0xff]
        %v1229 = vld [vmem:[%s356 + $0x108] sm:$0xff]
        %v1230 = vld [vmem:[%s356 + $0x110] sm:$0xff]
        %v1231 = vld [vmem:[%s356 + $0x120] sm:$0xff]
        %v1232 = vld [vmem:[%s356 + $0x128] sm:$0xff]
        %v1233 = vld [vmem:[%s356 + $0x138] sm:$0xff]
        %v1234 = vld [vmem:[%s356 + $0x140] sm:$0xff]
        %v1235 = vld [vmem:[%s356 + $0x150] sm:$0xff]
        %v1236 = vld [vmem:[%s356 + $0x158] sm:$0xff]
        %v1237 = vld [vmem:[%s356 + $0x168] sm:$0xff]
        %v1238 = vld [vmem:[%s356 + $0x170] sm:$0xff]
        %v1239 = vpack.c.bf16 %v1208, %v1207
        %v1240 = vpack.c.bf16 %v1210, %v1209
        %v1241 = vpack.c.bf16 %v1212, %v1211
        %v1242 = vpack.c.bf16 %v1214, %v1213
        %v1243 = vpack.c.bf16 %v1216, %v1215
        %v1244 = vpack.c.bf16 %v1218, %v1217
        %v1245 = vpack.c.bf16 %v1220, %v1219
        %v1246 = vpack.c.bf16 %v1222, %v1221
        %v1247 = vpack.c.bf16 %v1224, %v1223
        %v1248 = vpack.c.bf16 %v1226, %v1225
        %v1249 = vpack.c.bf16 %v1228, %v1227
        %v1250 = vpack.c.bf16 %v1230, %v1229
        %v1251 = vpack.c.bf16 %v1232, %v1231
        %v1252 = vpack.c.bf16 %v1234, %v1233
        %v1253 = vpack.c.bf16 %v1236, %v1235
        %v1254 = vpack.c.bf16 %v1238, %v1237
        %s1255 = scalar_lea.vmem %s1, 6
        %v1256 = vld [vmem:[%s1255] sm:$0x3]
        %v1258 = vsel %vm310, %v1239, 0
        %v1261 = vsel %vm310, %v1240, 0
        %v1264 = vsel %vm310, %v1241, 0
        %v1267 = vsel %vm310, %v1242, 0
        %v1270 = vsel %vm310, %v1243, 0
        %v1273 = vsel %vm310, %v1244, 0
        %v1276 = vsel %vm310, %v1245, 0
        %v1279 = vsel %vm310, %v1246, 0
        %v1282 = vsel %vm310, %v1247, 0
        %v1285 = vsel %vm310, %v1248, 0
        %v1288 = vsel %vm310, %v1249, 0
        %v1291 = vsel %vm310, %v1250, 0
        %v1294 = vsel %vm310, %v1251, 0
        %v1297 = vsel %vm310, %v1252, 0
        %v1300 = vsel %vm310, %v1253, 0
        %v1303 = vsel %vm310, %v1254, 0
        %v1306 = vsel %vm536, %v1256, 0
        %1308 = vmatprep.subr.bf16.mxu0 0
        %1309 = vmatpush1.bf16.msra.mxu0 %v1306
        %1310 = vmatprep.subr.bf16.mxu0 0
        %1311 = vmatpush1.bf16.msra.mxu0 0
        %1312 = vmatprep.subr.bf16.mxu0 0
        %1313 = vmatpush1.bf16.msra.mxu0 0
        %1314 = vmatprep.subr.bf16.mxu0 0
        %1315 = vmatpush1.bf16.msra.mxu0 0
        %1316 = vmatprep.subr.bf16.mxu0 0
        %1317 = vmatpush1.bf16.msra.mxu0 0
        %1318 = vmatprep.subr.bf16.mxu0 0
        %1319 = vmatpush1.bf16.msra.mxu0 0
        %1320 = vmatprep.subr.bf16.mxu0 0
        %1321 = vmatpush1.bf16.msra.mxu0 0
        %1322 = vmatprep.subr.bf16.mxu0 0
        %1323 = vmatpush1.bf16.msra.mxu0 0
        %1324 = vmatprep.subr.bf16.mxu0 0
        %1325 = vmatpush1.bf16.msra.mxu0 0
        %1326 = vmatprep.subr.bf16.mxu0 0
        %1327 = vmatpush1.bf16.msra.mxu0 0
        %1328 = vmatprep.subr.bf16.mxu0 0
        %1329 = vmatpush1.bf16.msra.mxu0 0
        %1330 = vmatprep.subr.bf16.mxu0 0
        %1331 = vmatpush1.bf16.msra.mxu0 0
        %1332 = vmatprep.subr.bf16.mxu0 0
        %1333 = vmatpush1.bf16.msra.mxu0 0
        %1334 = vmatprep.subr.bf16.mxu0 0
        %1335 = vmatpush1.bf16.msra.mxu0 0
        %1336 = vmatprep.subr.bf16.mxu0 0
        %1337 = vmatpush1.bf16.msra.mxu0 0
        %1338 = vmatprep.subr.bf16.mxu0 0
        %1339 = vmatpush1.bf16.msra.mxu0 0
        %1340 = vmatprep.mubr.bf16.mxu0 0
        %1341 = vmatmul.mubr.bf16.gmra.mrb[0].mxu0 %v1258
        %v1342 = vpop.f32.mrb[0].mxu0
        %v1343 = vadd.f32 0.0, %v1342
        %v1344 = vpop.f32.mrb[0].mxu0
        %v1345 = vpop.f32.mrb[0].mxu0
        %v1346 = vadd.f32 0.0, %v1345
        %v1347 = vpop.f32.mrb[0].mxu0
        %1348 = vmatprep.mubr.bf16.mxu0 0
        %1349 = vmatmul.mubr.bf16.gmra.mrb[0].mxu0 %v1261
        %v1350 = vpop.f32.mrb[0].mxu0
        %v1351 = vadd.f32 0.0, %v1350
        %v1352 = vpop.f32.mrb[0].mxu0
        %v1353 = vpop.f32.mrb[0].mxu0
        %v1354 = vadd.f32 0.0, %v1353
        %v1355 = vpop.f32.mrb[0].mxu0
        %1356 = vmatprep.mubr.bf16.mxu0 0
        %1357 = vmatmul.mubr.bf16.gmra.mrb[0].mxu0 %v1264
        %v1358 = vpop.f32.mrb[0].mxu0
        %v1359 = vadd.f32 0.0, %v1358
        %v1360 = vpop.f32.mrb[0].mxu0
        %v1361 = vpop.f32.mrb[0].mxu0
        %v1362 = vadd.f32 0.0, %v1361
        %v1363 = vpop.f32.mrb[0].mxu0
        %1364 = vmatprep.mubr.bf16.mxu0 0
        %1365 = vmatmul.mubr.bf16.gmra.mrb[0].mxu0 %v1267
        %v1366 = vpop.f32.mrb[0].mxu0
        %v1367 = vadd.f32 0.0, %v1366
        %v1368 = vpop.f32.mrb[0].mxu0
        %v1369 = vpop.f32.mrb[0].mxu0
        %v1370 = vadd.f32 0.0, %v1369
        %v1371 = vpop.f32.mrb[0].mxu0
        %1372 = vmatprep.mubr.bf16.mxu0 0
        %1373 = vmatmul.mubr.bf16.gmra.mrb[0].mxu0 %v1270
        %v1374 = vpop.f32.mrb[0].mxu0
        %v1375 = vadd.f32 0.0, %v1374
        %v1376 = vpop.f32.mrb[0].mxu0
        %v1377 = vpop.f32.mrb[0].mxu0
        %v1378 = vadd.f32 0.0, %v1377
        %v1379 = vpop.f32.mrb[0].mxu0
        %1380 = vmatprep.mubr.bf16.mxu0 0
        %1381 = vmatmul.mubr.bf16.gmra.mrb[0].mxu0 %v1273
        %v1382 = vpop.f32.mrb[0].mxu0
        %v1383 = vadd.f32 0.0, %v1382
        %v1384 = vpop.f32.mrb[0].mxu0
        %v1385 = vpop.f32.mrb[0].mxu0
        %v1386 = vadd.f32 0.0, %v1385
        %v1387 = vpop.f32.mrb[0].mxu0
        %1388 = vmatprep.mubr.bf16.mxu0 0
        %1389 = vmatmul.mubr.bf16.gmra.mrb[0].mxu0 %v1276
        %v1390 = vpop.f32.mrb[0].mxu0
        %v1391 = vadd.f32 0.0, %v1390
        %v1392 = vpop.f32.mrb[0].mxu0
        %v1393 = vpop.f32.mrb[0].mxu0
        %v1394 = vadd.f32 0.0, %v1393
        %v1395 = vpop.f32.mrb[0].mxu0
        %1396 = vmatprep.mubr.bf16.mxu0 0
        %1397 = vmatmul.mubr.bf16.gmra.mrb[0].mxu0 %v1279
        %v1398 = vpop.f32.mrb[0].mxu0
        %v1399 = vadd.f32 0.0, %v1398
        %v1400 = vpop.f32.mrb[0].mxu0
        %v1401 = vpop.f32.mrb[0].mxu0
        %v1402 = vadd.f32 0.0, %v1401
        %v1403 = vpop.f32.mrb[0].mxu0
        %1404 = vmatprep.mubr.bf16.mxu0 0
        %1405 = vmatmul.mubr.bf16.gmra.mrb[0].mxu0 %v1282
        %v1406 = vpop.f32.mrb[0].mxu0
        %v1407 = vadd.f32 0.0, %v1406
        %v1408 = vpop.f32.mrb[0].mxu0
        %v1409 = vpop.f32.mrb[0].mxu0
        %v1410 = vadd.f32 0.0, %v1409
        %v1411 = vpop.f32.mrb[0].mxu0
        %1412 = vmatprep.mubr.bf16.mxu0 0
        %1413 = vmatmul.mubr.bf16.gmra.mrb[0].mxu0 %v1285
        %v1414 = vpop.f32.mrb[0].mxu0
        %v1415 = vadd.f32 0.0, %v1414
        %v1416 = vpop.f32.mrb[0].mxu0
        %v1417 = vpop.f32.mrb[0].mxu0
        %v1418 = vadd.f32 0.0, %v1417
        %v1419 = vpop.f32.mrb[0].mxu0
        %1420 = vmatprep.mubr.bf16.mxu0 0
        %1421 = vmatmul.mubr.bf16.gmra.mrb[0].mxu0 %v1288
        %v1422 = vpop.f32.mrb[0].mxu0
        %v1423 = vadd.f32 0.0, %v1422
        %v1424 = vpop.f32.mrb[0].mxu0
        %v1425 = vpop.f32.mrb[0].mxu0
        %v1426 = vadd.f32 0.0, %v1425
        %v1427 = vpop.f32.mrb[0].mxu0
        %1428 = vmatprep.mubr.bf16.mxu0 0
        %1429 = vmatmul.mubr.bf16.gmra.mrb[0].mxu0 %v1291
        %v1430 = vpop.f32.mrb[0].mxu0
        %v1431 = vadd.f32 0.0, %v1430
        %v1432 = vpop.f32.mrb[0].mxu0
        %v1433 = vpop.f32.mrb[0].mxu0
        %v1434 = vadd.f32 0.0, %v1433
        %v1435 = vpop.f32.mrb[0].mxu0
        %1436 = vmatprep.mubr.bf16.mxu0 0
        %1437 = vmatmul.mubr.bf16.gmra.mrb[0].mxu0 %v1294
        %v1438 = vpop.f32.mrb[0].mxu0
        %v1439 = vadd.f32 0.0, %v1438
        %v1440 = vpop.f32.mrb[0].mxu0
        %v1441 = vpop.f32.mrb[0].mxu0
        %v1442 = vadd.f32 0.0, %v1441
        %v1443 = vpop.f32.mrb[0].mxu0
        %1444 = vmatprep.mubr.bf16.mxu0 0
        %1445 = vmatmul.mubr.bf16.gmra.mrb[0].mxu0 %v1297
        %v1446 = vpop.f32.mrb[0].mxu0
        %v1447 = vadd.f32 0.0, %v1446
        %v1448 = vpop.f32.mrb[0].mxu0
        %v1449 = vpop.f32.mrb[0].mxu0
        %v1450 = vadd.f32 0.0, %v1449
        %v1451 = vpop.f32.mrb[0].mxu0
        %1452 = vmatprep.mubr.bf16.mxu0 0
        %1453 = vmatmul.mubr.bf16.gmra.mrb[0].mxu0 %v1300
        %v1454 = vpop.f32.mrb[0].mxu0
        %v1455 = vadd.f32 0.0, %v1454
        %v1456 = vpop.f32.mrb[0].mxu0
        %v1457 = vpop.f32.mrb[0].mxu0
        %v1458 = vadd.f32 0.0, %v1457
        %v1459 = vpop.f32.mrb[0].mxu0
        %1460 = vmatprep.mubr.bf16.mxu0 0
        %1461 = vmatmul.mubr.bf16.gmra.mrb[0].mxu0 %v1303
        %v1462 = vpop.f32.mrb[0].mxu0
        %v1463 = vadd.f32 0.0, %v1462
        %v1464 = vpop.f32.mrb[0].mxu0
        %v1465 = vpop.f32.mrb[0].mxu0
        %v1466 = vadd.f32 0.0, %v1465
        %v1467 = vpop.f32.mrb[0].mxu0
        %1468 = vdwg.mxu0
        %v1469 = vadd.f32 %v1175, %v1343
        %v1470 = vadd.f32 %v1176, %v1346
        %v1471 = vadd.f32 %v1177, %v1351
        %v1472 = vadd.f32 %v1178, %v1354
        %v1473 = vadd.f32 %v1179, %v1359
        %v1474 = vadd.f32 %v1180, %v1362
        %v1475 = vadd.f32 %v1181, %v1367
        %v1476 = vadd.f32 %v1182, %v1370
        %v1477 = vadd.f32 %v1183, %v1375
        %v1478 = vadd.f32 %v1184, %v1378
        %v1479 = vadd.f32 %v1185, %v1383
        %v1480 = vadd.f32 %v1186, %v1386
        %v1481 = vadd.f32 %v1187, %v1391
        %v1482 = vadd.f32 %v1188, %v1394
        %v1483 = vadd.f32 %v1189, %v1399
        %v1484 = vadd.f32 %v1190, %v1402
        %v1485 = vadd.f32 %v1191, %v1407
        %v1486 = vadd.f32 %v1192, %v1410
        %v1487 = vadd.f32 %v1193, %v1415
        %v1488 = vadd.f32 %v1194, %v1418
        %v1489 = vadd.f32 %v1195, %v1423
        %v1490 = vadd.f32 %v1196, %v1426
        %v1491 = vadd.f32 %v1197, %v1431
        %v1492 = vadd.f32 %v1198, %v1434
        %v1493 = vadd.f32 %v1199, %v1439
        %v1494 = vadd.f32 %v1200, %v1442
        %v1495 = vadd.f32 %v1201, %v1447
        %v1496 = vadd.f32 %v1202, %v1450
        %v1497 = vadd.f32 %v1203, %v1455
        %v1498 = vadd.f32 %v1204, %v1458
        %v1499 = vadd.f32 %v1205, %v1463
        %v1500 = vadd.f32 %v1206, %v1466
        %v1501 = vld [vmem:[%s356 + $0x1] sm:$0xff]
        %v1502 = vld [vmem:[%s356 + $0x9] sm:$0xff]
        %v1503 = vld [vmem:[%s356 + $0x19] sm:$0xff]
        %v1504 = vld [vmem:[%s356 + $0x21] sm:$0xff]
        %v1505 = vld [vmem:[%s356 + $0x31] sm:$0xff]
        %v1506 = vld [vmem:[%s356 + $0x39] sm:$0xff]
        %v1507 = vld [vmem:[%s356 + $0x49] sm:$0xff]
        %v1508 = vld [vmem:[%s356 + $0x51] sm:$0xff]
        %v1509 = vld [vmem:[%s356 + $0x61] sm:$0xff]
        %v1510 = vld [vmem:[%s356 + $0x69] sm:$0xff]
        %v1511 = vld [vmem:[%s356 + $0x79] sm:$0xff]
        %v1512 = vld [vmem:[%s356 + $0x81] sm:$0xff]
        %v1513 = vld [vmem:[%s356 + $0x91] sm:$0xff]
        %v1514 = vld [vmem:[%s356 + $0x99] sm:$0xff]
        %v1515 = vld [vmem:[%s356 + $0xa9] sm:$0xff]
        %v1516 = vld [vmem:[%s356 + $0xb1] sm:$0xff]
        %v1517 = vld [vmem:[%s356 + $0xc1] sm:$0xff]
        %v1518 = vld [vmem:[%s356 + $0xc9] sm:$0xff]
        %v1519 = vld [vmem:[%s356 + $0xd9] sm:$0xff]
        %v1520 = vld [vmem:[%s356 + $0xe1] sm:$0xff]
        %v1521 = vld [vmem:[%s356 + $0xf1] sm:$0xff]
        %v1522 = vld [vmem:[%s356 + $0xf9] sm:$0xff]
        %v1523 = vld [vmem:[%s356 + $0x109] sm:$0xff]
        %v1524 = vld [vmem:[%s356 + $0x111] sm:$0xff]
        %v1525 = vld [vmem:[%s356 + $0x121] sm:$0xff]
        %v1526 = vld [vmem:[%s356 + $0x129] sm:$0xff]
        %v1527 = vld [vmem:[%s356 + $0x139] sm:$0xff]
        %v1528 = vld [vmem:[%s356 + $0x141] sm:$0xff]
        %v1529 = vld [vmem:[%s356 + $0x151] sm:$0xff]
        %v1530 = vld [vmem:[%s356 + $0x159] sm:$0xff]
        %v1531 = vld [vmem:[%s356 + $0x169] sm:$0xff]
        %v1532 = vld [vmem:[%s356 + $0x171] sm:$0xff]
        %v1533 = vpack.c.bf16 %v1502, %v1501
        %v1534 = vpack.c.bf16 %v1504, %v1503
        %v1535 = vpack.c.bf16 %v1506, %v1505
        %v1536 = vpack.c.bf16 %v1508, %v1507
        %v1537 = vpack.c.bf16 %v1510, %v1509
        %v1538 = vpack.c.bf16 %v1512, %v1511
        %v1539 = vpack.c.bf16 %v1514, %v1513
        %v1540 = vpack.c.bf16 %v1516, %v1515
        %v1541 = vpack.c.bf16 %v1518, %v1517
        %v1542 = vpack.c.bf16 %v1520, %v1519
        %v1543 = vpack.c.bf16 %v1522, %v1521
        %v1544 = vpack.c.bf16 %v1524, %v1523
        %v1545 = vpack.c.bf16 %v1526, %v1525
        %v1546 = vpack.c.bf16 %v1528, %v1527
        %v1547 = vpack.c.bf16 %v1530, %v1529
        %v1548 = vpack.c.bf16 %v1532, %v1531
        %s1549 = scalar_lea.vmem %s1, 8
        %v1550 = vld [vmem:[%s1549] sm:$0x3]
        %v1552 = vsel %vm310, %v1533, 0
        %v1555 = vsel %vm310, %v1534, 0
        %v1558 = vsel %vm310, %v1535, 0
        %v1561 = vsel %vm310, %v1536, 0
        %v1564 = vsel %vm310, %v1537, 0
        %v1567 = vsel %vm310, %v1538, 0
        %v1570 = vsel %vm310, %v1539, 0
        %v1573 = vsel %vm310, %v1540, 0
        %v1576 = vsel %vm310, %v1541, 0
        %v1579 = vsel %vm310, %v1542, 0
        %v1582 = vsel %vm310, %v1543, 0
        %v1585 = vsel %vm310, %v1544, 0
        %v1588 = vsel %vm310, %v1545, 0
        %v1591 = vsel %vm310, %v1546, 0
        %v1594 = vsel %vm310, %v1547, 0
        %v1597 = vsel %vm310, %v1548, 0
        %v1600 = vsel %vm536, %v1550, 0
        %1602 = vmatprep.subr.bf16.mxu0 0
        %1603 = vmatpush1.bf16.msra.mxu0 %v1600
        %1604 = vmatprep.subr.bf16.mxu0 0
        %1605 = vmatpush1.bf16.msra.mxu0 0
        %1606 = vmatprep.subr.bf16.mxu0 0
        %1607 = vmatpush1.bf16.msra.mxu0 0
        %1608 = vmatprep.subr.bf16.mxu0 0
        %1609 = vmatpush1.bf16.msra.mxu0 0
        %1610 = vmatprep.subr.bf16.mxu0 0
        %1611 = vmatpush1.bf16.msra.mxu0 0
        %1612 = vmatprep.subr.bf16.mxu0 0
        %1613 = vmatpush1.bf16.msra.mxu0 0
        %1614 = vmatprep.subr.bf16.mxu0 0
        %1615 = vmatpush1.bf16.msra.mxu0 0
        %1616 = vmatprep.subr.bf16.mxu0 0
        %1617 = vmatpush1.bf16.msra.mxu0 0
        %1618 = vmatprep.subr.bf16.mxu0 0
        %1619 = vmatpush1.bf16.msra.mxu0 0
        %1620 = vmatprep.subr.bf16.mxu0 0
        %1621 = vmatpush1.bf16.msra.mxu0 0
        %1622 = vmatprep.subr.bf16.mxu0 0
        %1623 = vmatpush1.bf16.msra.mxu0 0
        %1624 = vmatprep.subr.bf16.mxu0 0
        %1625 = vmatpush1.bf16.msra.mxu0 0
        %1626 = vmatprep.subr.bf16.mxu0 0
        %1627 = vmatpush1.bf16.msra.mxu0 0
        %1628 = vmatprep.subr.bf16.mxu0 0
        %1629 = vmatpush1.bf16.msra.mxu0 0
        %1630 = vmatprep.subr.bf16.mxu0 0
        %1631 = vmatpush1.bf16.msra.mxu0 0
        %1632 = vmatprep.subr.bf16.mxu0 0
        %1633 = vmatpush1.bf16.msra.mxu0 0
        %1634 = vmatprep.mubr.bf16.mxu0 0
        %1635 = vmatmul.mubr.bf16.gmra.mrb[0].mxu0 %v1552
        %v1636 = vpop.f32.mrb[0].mxu0
        %v1637 = vadd.f32 0.0, %v1636
        %v1638 = vpop.f32.mrb[0].mxu0
        %v1639 = vpop.f32.mrb[0].mxu0
        %v1640 = vadd.f32 0.0, %v1639
        %v1641 = vpop.f32.mrb[0].mxu0
        %1642 = vmatprep.mubr.bf16.mxu0 0
        %1643 = vmatmul.mubr.bf16.gmra.mrb[0].mxu0 %v1555
        %v1644 = vpop.f32.mrb[0].mxu0
        %v1645 = vadd.f32 0.0, %v1644
        %v1646 = vpop.f32.mrb[0].mxu0
        %v1647 = vpop.f32.mrb[0].mxu0
        %v1648 = vadd.f32 0.0, %v1647
        %v1649 = vpop.f32.mrb[0].mxu0
        %1650 = vmatprep.mubr.bf16.mxu0 0
        %1651 = vmatmul.mubr.bf16.gmra.mrb[0].mxu0 %v1558
        %v1652 = vpop.f32.mrb[0].mxu0
        %v1653 = vadd.f32 0.0, %v1652
        %v1654 = vpop.f32.mrb[0].mxu0
        %v1655 = vpop.f32.mrb[0].mxu0
        %v1656 = vadd.f32 0.0, %v1655
        %v1657 = vpop.f32.mrb[0].mxu0
        %1658 = vmatprep.mubr.bf16.mxu0 0
        %1659 = vmatmul.mubr.bf16.gmra.mrb[0].mxu0 %v1561
        %v1660 = vpop.f32.mrb[0].mxu0
        %v1661 = vadd.f32 0.0, %v1660
        %v1662 = vpop.f32.mrb[0].mxu0
        %v1663 = vpop.f32.mrb[0].mxu0
        %v1664 = vadd.f32 0.0, %v1663
        %v1665 = vpop.f32.mrb[0].mxu0
        %1666 = vmatprep.mubr.bf16.mxu0 0
        %1667 = vmatmul.mubr.bf16.gmra.mrb[0].mxu0 %v1564
        %v1668 = vpop.f32.mrb[0].mxu0
        %v1669 = vadd.f32 0.0, %v1668
        %v1670 = vpop.f32.mrb[0].mxu0
        %v1671 = vpop.f32.mrb[0].mxu0
        %v1672 = vadd.f32 0.0, %v1671
        %v1673 = vpop.f32.mrb[0].mxu0
        %1674 = vmatprep.mubr.bf16.mxu0 0
        %1675 = vmatmul.mubr.bf16.gmra.mrb[0].mxu0 %v1567
        %v1676 = vpop.f32.mrb[0].mxu0
        %v1677 = vadd.f32 0.0, %v1676
        %v1678 = vpop.f32.mrb[0].mxu0
        %v1679 = vpop.f32.mrb[0].mxu0
        %v1680 = vadd.f32 0.0, %v1679
        %v1681 = vpop.f32.mrb[0].mxu0
        %1682 = vmatprep.mubr.bf16.mxu0 0
        %1683 = vmatmul.mubr.bf16.gmra.mrb[0].mxu0 %v1570
        %v1684 = vpop.f32.mrb[0].mxu0
        %v1685 = vadd.f32 0.0, %v1684
        %v1686 = vpop.f32.mrb[0].mxu0
        %v1687 = vpop.f32.mrb[0].mxu0
        %v1688 = vadd.f32 0.0, %v1687
        %v1689 = vpop.f32.mrb[0].mxu0
        %1690 = vmatprep.mubr.bf16.mxu0 0
        %1691 = vmatmul.mubr.bf16.gmra.mrb[0].mxu0 %v1573
        %v1692 = vpop.f32.mrb[0].mxu0
        %v1693 = vadd.f32 0.0, %v1692
        %v1694 = vpop.f32.mrb[0].mxu0
        %v1695 = vpop.f32.mrb[0].mxu0
        %v1696 = vadd.f32 0.0, %v1695
        %v1697 = vpop.f32.mrb[0].mxu0
        %1698 = vmatprep.mubr.bf16.mxu0 0
        %1699 = vmatmul.mubr.bf16.gmra.mrb[0].mxu0 %v1576
        %v1700 = vpop.f32.mrb[0].mxu0
        %v1701 = vadd.f32 0.0, %v1700
        %v1702 = vpop.f32.mrb[0].mxu0
        %v1703 = vpop.f32.mrb[0].mxu0
        %v1704 = vadd.f32 0.0, %v1703
        %v1705 = vpop.f32.mrb[0].mxu0
        %1706 = vmatprep.mubr.bf16.mxu0 0
        %1707 = vmatmul.mubr.bf16.gmra.mrb[0].mxu0 %v1579
        %v1708 = vpop.f32.mrb[0].mxu0
        %v1709 = vadd.f32 0.0, %v1708
        %v1710 = vpop.f32.mrb[0].mxu0
        %v1711 = vpop.f32.mrb[0].mxu0
        %v1712 = vadd.f32 0.0, %v1711
        %v1713 = vpop.f32.mrb[0].mxu0
        %1714 = vmatprep.mubr.bf16.mxu0 0
        %1715 = vmatmul.mubr.bf16.gmra.mrb[0].mxu0 %v1582
        %v1716 = vpop.f32.mrb[0].mxu0
        %v1717 = vadd.f32 0.0, %v1716
        %v1718 = vpop.f32.mrb[0].mxu0
        %v1719 = vpop.f32.mrb[0].mxu0
        %v1720 = vadd.f32 0.0, %v1719
        %v1721 = vpop.f32.mrb[0].mxu0
        %1722 = vmatprep.mubr.bf16.mxu0 0
        %1723 = vmatmul.mubr.bf16.gmra.mrb[0].mxu0 %v1585
        %v1724 = vpop.f32.mrb[0].mxu0
        %v1725 = vadd.f32 0.0, %v1724
        %v1726 = vpop.f32.mrb[0].mxu0
        %v1727 = vpop.f32.mrb[0].mxu0
        %v1728 = vadd.f32 0.0, %v1727
        %v1729 = vpop.f32.mrb[0].mxu0
        %1730 = vmatprep.mubr.bf16.mxu0 0
        %1731 = vmatmul.mubr.bf16.gmra.mrb[0].mxu0 %v1588
        %v1732 = vpop.f32.mrb[0].mxu0
        %v1733 = vadd.f32 0.0, %v1732
        %v1734 = vpop.f32.mrb[0].mxu0
        %v1735 = vpop.f32.mrb[0].mxu0
        %v1736 = vadd.f32 0.0, %v1735
        %v1737 = vpop.f32.mrb[0].mxu0
        %1738 = vmatprep.mubr.bf16.mxu0 0
        %1739 = vmatmul.mubr.bf16.gmra.mrb[0].mxu0 %v1591
        %v1740 = vpop.f32.mrb[0].mxu0
        %v1741 = vadd.f32 0.0, %v1740
        %v1742 = vpop.f32.mrb[0].mxu0
        %v1743 = vpop.f32.mrb[0].mxu0
        %v1744 = vadd.f32 0.0, %v1743
        %v1745 = vpop.f32.mrb[0].mxu0
        %1746 = vmatprep.mubr.bf16.mxu0 0
        %1747 = vmatmul.mubr.bf16.gmra.mrb[0].mxu0 %v1594
        %v1748 = vpop.f32.mrb[0].mxu0
        %v1749 = vadd.f32 0.0, %v1748
        %v1750 = vpop.f32.mrb[0].mxu0
        %v1751 = vpop.f32.mrb[0].mxu0
        %v1752 = vadd.f32 0.0, %v1751
        %v1753 = vpop.f32.mrb[0].mxu0
        %1754 = vmatprep.mubr.bf16.mxu0 0
        %1755 = vmatmul.mubr.bf16.gmra.mrb[0].mxu0 %v1597
        %v1756 = vpop.f32.mrb[0].mxu0
        %v1757 = vadd.f32 0.0, %v1756
        %v1758 = vpop.f32.mrb[0].mxu0
        %v1759 = vpop.f32.mrb[0].mxu0
        %v1760 = vadd.f32 0.0, %v1759
        %v1761 = vpop.f32.mrb[0].mxu0
        %1762 = vdwg.mxu0
        %v1763 = vadd.f32 %v1469, %v1637
        %v1764 = vadd.f32 %v1470, %v1640
        %v1765 = vadd.f32 %v1471, %v1645
        %v1766 = vadd.f32 %v1472, %v1648
        %v1767 = vadd.f32 %v1473, %v1653
        %v1768 = vadd.f32 %v1474, %v1656
        %v1769 = vadd.f32 %v1475, %v1661
        %v1770 = vadd.f32 %v1476, %v1664
        %v1771 = vadd.f32 %v1477, %v1669
        %v1772 = vadd.f32 %v1478, %v1672
        %v1773 = vadd.f32 %v1479, %v1677
        %v1774 = vadd.f32 %v1480, %v1680
        %v1775 = vadd.f32 %v1481, %v1685
        %v1776 = vadd.f32 %v1482, %v1688
        %v1777 = vadd.f32 %v1483, %v1693
        %v1778 = vadd.f32 %v1484, %v1696
        %v1779 = vadd.f32 %v1485, %v1701
        %v1780 = vadd.f32 %v1486, %v1704
        %v1781 = vadd.f32 %v1487, %v1709
        %v1782 = vadd.f32 %v1488, %v1712
        %v1783 = vadd.f32 %v1489, %v1717
        %v1784 = vadd.f32 %v1490, %v1720
        %v1785 = vadd.f32 %v1491, %v1725
        %v1786 = vadd.f32 %v1492, %v1728
        %v1787 = vadd.f32 %v1493, %v1733
        %v1788 = vadd.f32 %v1494, %v1736
        %v1789 = vadd.f32 %v1495, %v1741
        %v1790 = vadd.f32 %v1496, %v1744
        %v1791 = vadd.f32 %v1497, %v1749
        %v1792 = vadd.f32 %v1498, %v1752
        %v1793 = vadd.f32 %v1499, %v1757
        %v1794 = vadd.f32 %v1500, %v1760
        %v1795 = vld [vmem:[%s356 + $0x2] sm:$0xff]
        %v1796 = vld [vmem:[%s356 + $0xa] sm:$0xff]
        %v1797 = vld [vmem:[%s356 + $0x1a] sm:$0xff]
        %v1798 = vld [vmem:[%s356 + $0x22] sm:$0xff]
        %v1799 = vld [vmem:[%s356 + $0x32] sm:$0xff]
        %v1800 = vld [vmem:[%s356 + $0x3a] sm:$0xff]
        %v1801 = vld [vmem:[%s356 + $0x4a] sm:$0xff]
        %v1802 = vld [vmem:[%s356 + $0x52] sm:$0xff]
        %v1803 = vld [vmem:[%s356 + $0x62] sm:$0xff]
        %v1804 = vld [vmem:[%s356 + $0x6a] sm:$0xff]
        %v1805 = vld [vmem:[%s356 + $0x7a] sm:$0xff]
        %v1806 = vld [vmem:[%s356 + $0x82] sm:$0xff]
        %v1807 = vld [vmem:[%s356 + $0x92] sm:$0xff]
        %v1808 = vld [vmem:[%s356 + $0x9a] sm:$0xff]
        %v1809 = vld [vmem:[%s356 + $0xaa] sm:$0xff]
        %v1810 = vld [vmem:[%s356 + $0xb2] sm:$0xff]
        %v1811 = vld [vmem:[%s356 + $0xc2] sm:$0xff]
        %v1812 = vld [vmem:[%s356 + $0xca] sm:$0xff]
        %v1813 = vld [vmem:[%s356 + $0xda] sm:$0xff]
        %v1814 = vld [vmem:[%s356 + $0xe2] sm:$0xff]
        %v1815 = vld [vmem:[%s356 + $0xf2] sm:$0xff]
        %v1816 = vld [vmem:[%s356 + $0xfa] sm:$0xff]
        %v1817 = vld [vmem:[%s356 + $0x10a] sm:$0xff]
        %v1818 = vld [vmem:[%s356 + $0x112] sm:$0xff]
        %v1819 = vld [vmem:[%s356 + $0x122] sm:$0xff]
        %v1820 = vld [vmem:[%s356 + $0x12a] sm:$0xff]
        %v1821 = vld [vmem:[%s356 + $0x13a] sm:$0xff]
        %v1822 = vld [vmem:[%s356 + $0x142] sm:$0xff]
        %v1823 = vld [vmem:[%s356 + $0x152] sm:$0xff]
        %v1824 = vld [vmem:[%s356 + $0x15a] sm:$0xff]
        %v1825 = vld [vmem:[%s356 + $0x16a] sm:$0xff]
        %v1826 = vld [vmem:[%s356 + $0x172] sm:$0xff]
        %v1827 = vpack.c.bf16 %v1796, %v1795
        %v1828 = vpack.c.bf16 %v1798, %v1797
        %v1829 = vpack.c.bf16 %v1800, %v1799
        %v1830 = vpack.c.bf16 %v1802, %v1801
        %v1831 = vpack.c.bf16 %v1804, %v1803
        %v1832 = vpack.c.bf16 %v1806, %v1805
        %v1833 = vpack.c.bf16 %v1808, %v1807
        %v1834 = vpack.c.bf16 %v1810, %v1809
        %v1835 = vpack.c.bf16 %v1812, %v1811
        %v1836 = vpack.c.bf16 %v1814, %v1813
        %v1837 = vpack.c.bf16 %v1816, %v1815
        %v1838 = vpack.c.bf16 %v1818, %v1817
        %v1839 = vpack.c.bf16 %v1820, %v1819
        %v1840 = vpack.c.bf16 %v1822, %v1821
        %v1841 = vpack.c.bf16 %v1824, %v1823
        %v1842 = vpack.c.bf16 %v1826, %v1825
        %s1843 = scalar_lea.vmem %s1, 10
        %v1844 = vld [vmem:[%s1843] sm:$0x3]
        %v1846 = vsel %vm310, %v1827, 0
        %v1849 = vsel %vm310, %v1828, 0
        %v1852 = vsel %vm310, %v1829, 0
        %v1855 = vsel %vm310, %v1830, 0
        %v1858 = vsel %vm310, %v1831, 0
        %v1861 = vsel %vm310, %v1832, 0
        %v1864 = vsel %vm310, %v1833, 0
        %v1867 = vsel %vm310, %v1834, 0
        %v1870 = vsel %vm310, %v1835, 0
        %v1873 = vsel %vm310, %v1836, 0
        %v1876 = vsel %vm310, %v1837, 0
        %v1879 = vsel %vm310, %v1838, 0
        %v1882 = vsel %vm310, %v1839, 0
        %v1885 = vsel %vm310, %v1840, 0
        %v1888 = vsel %vm310, %v1841, 0
        %v1891 = vsel %vm310, %v1842, 0
        %v1894 = vsel %vm536, %v1844, 0
        %1896 = vmatprep.subr.bf16.mxu0 0
        %1897 = vmatpush1.bf16.msra.mxu0 %v1894
        %1898 = vmatprep.subr.bf16.mxu0 0
        %1899 = vmatpush1.bf16.msra.mxu0 0
        %1900 = vmatprep.subr.bf16.mxu0 0
        %1901 = vmatpush1.bf16.msra.mxu0 0
        %1902 = vmatprep.subr.bf16.mxu0 0
        %1903 = vmatpush1.bf16.msra.mxu0 0
        %1904 = vmatprep.subr.bf16.mxu0 0
        %1905 = vmatpush1.bf16.msra.mxu0 0
        %1906 = vmatprep.subr.bf16.mxu0 0
        %1907 = vmatpush1.bf16.msra.mxu0 0
        %1908 = vmatprep.subr.bf16.mxu0 0
        %1909 = vmatpush1.bf16.msra.mxu0 0
        %1910 = vmatprep.subr.bf16.mxu0 0
        %1911 = vmatpush1.bf16.msra.mxu0 0
        %1912 = vmatprep.subr.bf16.mxu0 0
        %1913 = vmatpush1.bf16.msra.mxu0 0
        %1914 = vmatprep.subr.bf16.mxu0 0
        %1915 = vmatpush1.bf16.msra.mxu0 0
        %1916 = vmatprep.subr.bf16.mxu0 0
        %1917 = vmatpush1.bf16.msra.mxu0 0
        %1918 = vmatprep.subr.bf16.mxu0 0
        %1919 = vmatpush1.bf16.msra.mxu0 0
        %1920 = vmatprep.subr.bf16.mxu0 0
        %1921 = vmatpush1.bf16.msra.mxu0 0
        %1922 = vmatprep.subr.bf16.mxu0 0
        %1923 = vmatpush1.bf16.msra.mxu0 0
        %1924 = vmatprep.subr.bf16.mxu0 0
        %1925 = vmatpush1.bf16.msra.mxu0 0
        %1926 = vmatprep.subr.bf16.mxu0 0
        %1927 = vmatpush1.bf16.msra.mxu0 0
        %1928 = vmatprep.mubr.bf16.mxu0 0
        %1929 = vmatmul.mubr.bf16.gmra.mrb[0].mxu0 %v1846
        %v1930 = vpop.f32.mrb[0].mxu0
        %v1931 = vadd.f32 0.0, %v1930
        %v1932 = vpop.f32.mrb[0].mxu0
        %v1933 = vpop.f32.mrb[0].mxu0
        %v1934 = vadd.f32 0.0, %v1933
        %v1935 = vpop.f32.mrb[0].mxu0
        %1936 = vmatprep.mubr.bf16.mxu0 0
        %1937 = vmatmul.mubr.bf16.gmra.mrb[0].mxu0 %v1849
        %v1938 = vpop.f32.mrb[0].mxu0
        %v1939 = vadd.f32 0.0, %v1938
        %v1940 = vpop.f32.mrb[0].mxu0
        %v1941 = vpop.f32.mrb[0].mxu0
        %v1942 = vadd.f32 0.0, %v1941
        %v1943 = vpop.f32.mrb[0].mxu0
        %1944 = vmatprep.mubr.bf16.mxu0 0
        %1945 = vmatmul.mubr.bf16.gmra.mrb[0].mxu0 %v1852
        %v1946 = vpop.f32.mrb[0].mxu0
        %v1947 = vadd.f32 0.0, %v1946
        %v1948 = vpop.f32.mrb[0].mxu0
        %v1949 = vpop.f32.mrb[0].mxu0
        %v1950 = vadd.f32 0.0, %v1949
        %v1951 = vpop.f32.mrb[0].mxu0
        %1952 = vmatprep.mubr.bf16.mxu0 0
        %1953 = vmatmul.mubr.bf16.gmra.mrb[0].mxu0 %v1855
        %v1954 = vpop.f32.mrb[0].mxu0
        %v1955 = vadd.f32 0.0, %v1954
        %v1956 = vpop.f32.mrb[0].mxu0
        %v1957 = vpop.f32.mrb[0].mxu0
        %v1958 = vadd.f32 0.0, %v1957
        %v1959 = vpop.f32.mrb[0].mxu0
        %1960 = vmatprep.mubr.bf16.mxu0 0
        %1961 = vmatmul.mubr.bf16.gmra.mrb[0].mxu0 %v1858
        %v1962 = vpop.f32.mrb[0].mxu0
        %v1963 = vadd.f32 0.0, %v1962
        %v1964 = vpop.f32.mrb[0].mxu0
        %v1965 = vpop.f32.mrb[0].mxu0
        %v1966 = vadd.f32 0.0, %v1965
        %v1967 = vpop.f32.mrb[0].mxu0
        %1968 = vmatprep.mubr.bf16.mxu0 0
        %1969 = vmatmul.mubr.bf16.gmra.mrb[0].mxu0 %v1861
        %v1970 = vpop.f32.mrb[0].mxu0
        %v1971 = vadd.f32 0.0, %v1970
        %v1972 = vpop.f32.mrb[0].mxu0
        %v1973 = vpop.f32.mrb[0].mxu0
        %v1974 = vadd.f32 0.0, %v1973
        %v1975 = vpop.f32.mrb[0].mxu0
        %1976 = vmatprep.mubr.bf16.mxu0 0
        %1977 = vmatmul.mubr.bf16.gmra.mrb[0].mxu0 %v1864
        %v1978 = vpop.f32.mrb[0].mxu0
        %v1979 = vadd.f32 0.0, %v1978
        %v1980 = vpop.f32.mrb[0].mxu0
        %v1981 = vpop.f32.mrb[0].mxu0
        %v1982 = vadd.f32 0.0, %v1981
        %v1983 = vpop.f32.mrb[0].mxu0
        %1984 = vmatprep.mubr.bf16.mxu0 0
        %1985 = vmatmul.mubr.bf16.gmra.mrb[0].mxu0 %v1867
        %v1986 = vpop.f32.mrb[0].mxu0
        %v1987 = vadd.f32 0.0, %v1986
        %v1988 = vpop.f32.mrb[0].mxu0
        %v1989 = vpop.f32.mrb[0].mxu0
        %v1990 = vadd.f32 0.0, %v1989
        %v1991 = vpop.f32.mrb[0].mxu0
        %1992 = vmatprep.mubr.bf16.mxu0 0
        %1993 = vmatmul.mubr.bf16.gmra.mrb[0].mxu0 %v1870
        %v1994 = vpop.f32.mrb[0].mxu0
        %v1995 = vadd.f32 0.0, %v1994
        %v1996 = vpop.f32.mrb[0].mxu0
        %v1997 = vpop.f32.mrb[0].mxu0
        %v1998 = vadd.f32 0.0, %v1997
        %v1999 = vpop.f32.mrb[0].mxu0
        %2000 = vmatprep.mubr.bf16.mxu0 0
        %2001 = vmatmul.mubr.bf16.gmra.mrb[0].mxu0 %v1873
        %v2002 = vpop.f32.mrb[0].mxu0
        %v2003 = vadd.f32 0.0, %v2002
        %v2004 = vpop.f32.mrb[0].mxu0
        %v2005 = vpop.f32.mrb[0].mxu0
        %v2006 = vadd.f32 0.0, %v2005
        %v2007 = vpop.f32.mrb[0].mxu0
        %2008 = vmatprep.mubr.bf16.mxu0 0
        %2009 = vmatmul.mubr.bf16.gmra.mrb[0].mxu0 %v1876
        %v2010 = vpop.f32.mrb[0].mxu0
        %v2011 = vadd.f32 0.0, %v2010
        %v2012 = vpop.f32.mrb[0].mxu0
        %v2013 = vpop.f32.mrb[0].mxu0
        %v2014 = vadd.f32 0.0, %v2013
        %v2015 = vpop.f32.mrb[0].mxu0
        %2016 = vmatprep.mubr.bf16.mxu0 0
        %2017 = vmatmul.mubr.bf16.gmra.mrb[0].mxu0 %v1879
        %v2018 = vpop.f32.mrb[0].mxu0
        %v2019 = vadd.f32 0.0, %v2018
        %v2020 = vpop.f32.mrb[0].mxu0
        %v2021 = vpop.f32.mrb[0].mxu0
        %v2022 = vadd.f32 0.0, %v2021
        %v2023 = vpop.f32.mrb[0].mxu0
        %2024 = vmatprep.mubr.bf16.mxu0 0
        %2025 = vmatmul.mubr.bf16.gmra.mrb[0].mxu0 %v1882
        %v2026 = vpop.f32.mrb[0].mxu0
        %v2027 = vadd.f32 0.0, %v2026
        %v2028 = vpop.f32.mrb[0].mxu0
        %v2029 = vpop.f32.mrb[0].mxu0
        %v2030 = vadd.f32 0.0, %v2029
        %v2031 = vpop.f32.mrb[0].mxu0
        %2032 = vmatprep.mubr.bf16.mxu0 0
        %2033 = vmatmul.mubr.bf16.gmra.mrb[0].mxu0 %v1885
        %v2034 = vpop.f32.mrb[0].mxu0
        %v2035 = vadd.f32 0.0, %v2034
        %v2036 = vpop.f32.mrb[0].mxu0
        %v2037 = vpop.f32.mrb[0].mxu0
        %v2038 = vadd.f32 0.0, %v2037
        %v2039 = vpop.f32.mrb[0].mxu0
        %2040 = vmatprep.mubr.bf16.mxu0 0
        %2041 = vmatmul.mubr.bf16.gmra.mrb[0].mxu0 %v1888
        %v2042 = vpop.f32.mrb[0].mxu0
        %v2043 = vadd.f32 0.0, %v2042
        %v2044 = vpop.f32.mrb[0].mxu0
        %v2045 = vpop.f32.mrb[0].mxu0
        %v2046 = vadd.f32 0.0, %v2045
        %v2047 = vpop.f32.mrb[0].mxu0
        %2048 = vmatprep.mubr.bf16.mxu0 0
        %2049 = vmatmul.mubr.bf16.gmra.mrb[0].mxu0 %v1891
        %v2050 = vpop.f32.mrb[0].mxu0
        %v2051 = vadd.f32 0.0, %v2050
        %v2052 = vpop.f32.mrb[0].mxu0
        %v2053 = vpop.f32.mrb[0].mxu0
        %v2054 = vadd.f32 0.0, %v2053
        %v2055 = vpop.f32.mrb[0].mxu0
        %2056 = vdwg.mxu0
        %v2057 = vadd.f32 %v1763, %v1931
        %v2058 = vadd.f32 %v1764, %v1934
        %v2059 = vadd.f32 %v1765, %v1939
        %v2060 = vadd.f32 %v1766, %v1942
        %v2061 = vadd.f32 %v1767, %v1947
        %v2062 = vadd.f32 %v1768, %v1950
        %v2063 = vadd.f32 %v1769, %v1955
        %v2064 = vadd.f32 %v1770, %v1958
        %v2065 = vadd.f32 %v1771, %v1963
        %v2066 = vadd.f32 %v1772, %v1966
        %v2067 = vadd.f32 %v1773, %v1971
        %v2068 = vadd.f32 %v1774, %v1974
        %v2069 = vadd.f32 %v1775, %v1979
        %v2070 = vadd.f32 %v1776, %v1982
        %v2071 = vadd.f32 %v1777, %v1987
        %v2072 = vadd.f32 %v1778, %v1990
        %v2073 = vadd.f32 %v1779, %v1995
        %v2074 = vadd.f32 %v1780, %v1998
        %v2075 = vadd.f32 %v1781, %v2003
        %v2076 = vadd.f32 %v1782, %v2006
        %v2077 = vadd.f32 %v1783, %v2011
        %v2078 = vadd.f32 %v1784, %v2014
        %v2079 = vadd.f32 %v1785, %v2019
        %v2080 = vadd.f32 %v1786, %v2022
        %v2081 = vadd.f32 %v1787, %v2027
        %v2082 = vadd.f32 %v1788, %v2030
        %v2083 = vadd.f32 %v1789, %v2035
        %v2084 = vadd.f32 %v1790, %v2038
        %v2085 = vadd.f32 %v1791, %v2043
        %v2086 = vadd.f32 %v1792, %v2046
        %v2087 = vadd.f32 %v1793, %v2051
        %v2088 = vadd.f32 %v1794, %v2054
        %s2089 = scalar_lea.vmem [#allocation2], 48
        %v2090 = vld [vmem:[%s2089] sm:$0xff]
        %v2091 = vld [vmem:[%s2089 + $0x8] sm:$0xff]
        %v2092 = vld [vmem:[%s2089 + $0x18] sm:$0xff]
        %v2093 = vld [vmem:[%s2089 + $0x20] sm:$0xff]
        %v2094 = vld [vmem:[%s2089 + $0x30] sm:$0xff]
        %v2095 = vld [vmem:[%s2089 + $0x38] sm:$0xff]
        %v2096 = vld [vmem:[%s2089 + $0x48] sm:$0xff]
        %v2097 = vld [vmem:[%s2089 + $0x50] sm:$0xff]
        %v2098 = vld [vmem:[%s2089 + $0x60] sm:$0xff]
        %v2099 = vld [vmem:[%s2089 + $0x68] sm:$0xff]
        %v2100 = vld [vmem:[%s2089 + $0x78] sm:$0xff]
        %v2101 = vld [vmem:[%s2089 + $0x80] sm:$0xff]
        %v2102 = vld [vmem:[%s2089 + $0x90] sm:$0xff]
        %v2103 = vld [vmem:[%s2089 + $0x98] sm:$0xff]
        %v2104 = vld [vmem:[%s2089 + $0xa8] sm:$0xff]
        %v2105 = vld [vmem:[%s2089 + $0xb0] sm:$0xff]
        %v2106 = vld [vmem:[%s2089 + $0xc0] sm:$0xff]
        %v2107 = vld [vmem:[%s2089 + $0xc8] sm:$0xff]
        %v2108 = vld [vmem:[%s2089 + $0xd8] sm:$0xff]
        %v2109 = vld [vmem:[%s2089 + $0xe0] sm:$0xff]
        %v2110 = vld [vmem:[%s2089 + $0xf0] sm:$0xff]
        %v2111 = vld [vmem:[%s2089 + $0xf8] sm:$0xff]
        %v2112 = vld [vmem:[%s2089 + $0x108] sm:$0xff]
        %v2113 = vld [vmem:[%s2089 + $0x110] sm:$0xff]
        %v2114 = vld [vmem:[%s2089 + $0x120] sm:$0xff]
        %v2115 = vld [vmem:[%s2089 + $0x128] sm:$0xff]
        %v2116 = vld [vmem:[%s2089 + $0x138] sm:$0xff]
        %v2117 = vld [vmem:[%s2089 + $0x140] sm:$0xff]
        %v2118 = vld [vmem:[%s2089 + $0x150] sm:$0xff]
        %v2119 = vld [vmem:[%s2089 + $0x158] sm:$0xff]
        %v2120 = vld [vmem:[%s2089 + $0x168] sm:$0xff]
        %v2121 = vld [vmem:[%s2089 + $0x170] sm:$0xff]
        %v2122 = vpack.c.bf16 %v2091, %v2090
        %v2123 = vpack.c.bf16 %v2093, %v2092
        %v2124 = vpack.c.bf16 %v2095, %v2094
        %v2125 = vpack.c.bf16 %v2097, %v2096
        %v2126 = vpack.c.bf16 %v2099, %v2098
        %v2127 = vpack.c.bf16 %v2101, %v2100
        %v2128 = vpack.c.bf16 %v2103, %v2102
        %v2129 = vpack.c.bf16 %v2105, %v2104
        %v2130 = vpack.c.bf16 %v2107, %v2106
        %v2131 = vpack.c.bf16 %v2109, %v2108
        %v2132 = vpack.c.bf16 %v2111, %v2110
        %v2133 = vpack.c.bf16 %v2113, %v2112
        %v2134 = vpack.c.bf16 %v2115, %v2114
        %v2135 = vpack.c.bf16 %v2117, %v2116
        %v2136 = vpack.c.bf16 %v2119, %v2118
        %v2137 = vpack.c.bf16 %v2121, %v2120
        %s2138 = scalar_lea.vmem %s1, 12
        %v2139 = vld [vmem:[%s2138] sm:$0x3]
        %v2141 = vsel %vm310, %v2122, 0
        %v2144 = vsel %vm310, %v2123, 0
        %v2147 = vsel %vm310, %v2124, 0
        %v2150 = vsel %vm310, %v2125, 0
        %v2153 = vsel %vm310, %v2126, 0
        %v2156 = vsel %vm310, %v2127, 0
        %v2159 = vsel %vm310, %v2128, 0
        %v2162 = vsel %vm310, %v2129, 0
        %v2165 = vsel %vm310, %v2130, 0
        %v2168 = vsel %vm310, %v2131, 0
        %v2171 = vsel %vm310, %v2132, 0
        %v2174 = vsel %vm310, %v2133, 0
        %v2177 = vsel %vm310, %v2134, 0
        %v2180 = vsel %vm310, %v2135, 0
        %v2183 = vsel %vm310, %v2136, 0
        %v2186 = vsel %vm310, %v2137, 0
        %v2189 = vsel %vm536, %v2139, 0
        %2191 = vmatprep.subr.bf16.mxu0 0
        %2192 = vmatpush1.bf16.msra.mxu0 %v2189
        %2193 = vmatprep.subr.bf16.mxu0 0
        %2194 = vmatpush1.bf16.msra.mxu0 0
        %2195 = vmatprep.subr.bf16.mxu0 0
        %2196 = vmatpush1.bf16.msra.mxu0 0
        %2197 = vmatprep.subr.bf16.mxu0 0
        %2198 = vmatpush1.bf16.msra.mxu0 0
        %2199 = vmatprep.subr.bf16.mxu0 0
        %2200 = vmatpush1.bf16.msra.mxu0 0
        %2201 = vmatprep.subr.bf16.mxu0 0
        %2202 = vmatpush1.bf16.msra.mxu0 0
        %2203 = vmatprep.subr.bf16.mxu0 0
        %2204 = vmatpush1.bf16.msra.mxu0 0
        %2205 = vmatprep.subr.bf16.mxu0 0
        %2206 = vmatpush1.bf16.msra.mxu0 0
        %2207 = vmatprep.subr.bf16.mxu0 0
        %2208 = vmatpush1.bf16.msra.mxu0 0
        %2209 = vmatprep.subr.bf16.mxu0 0
        %2210 = vmatpush1.bf16.msra.mxu0 0
        %2211 = vmatprep.subr.bf16.mxu0 0
        %2212 = vmatpush1.bf16.msra.mxu0 0
        %2213 = vmatprep.subr.bf16.mxu0 0
        %2214 = vmatpush1.bf16.msra.mxu0 0
        %2215 = vmatprep.subr.bf16.mxu0 0
        %2216 = vmatpush1.bf16.msra.mxu0 0
        %2217 = vmatprep.subr.bf16.mxu0 0
        %2218 = vmatpush1.bf16.msra.mxu0 0
        %2219 = vmatprep.subr.bf16.mxu0 0
        %2220 = vmatpush1.bf16.msra.mxu0 0
        %2221 = vmatprep.subr.bf16.mxu0 0
        %2222 = vmatpush1.bf16.msra.mxu0 0
        %2223 = vmatprep.mubr.bf16.mxu0 0
        %2224 = vmatmul.mubr.bf16.gmra.mrb[0].mxu0 %v2141
        %v2225 = vpop.f32.mrb[0].mxu0
        %v2226 = vadd.f32 0.0, %v2225
        %v2227 = vpop.f32.mrb[0].mxu0
        %v2228 = vpop.f32.mrb[0].mxu0
        %v2229 = vadd.f32 0.0, %v2228
        %v2230 = vpop.f32.mrb[0].mxu0
        %2231 = vmatprep.mubr.bf16.mxu0 0
        %2232 = vmatmul.mubr.bf16.gmra.mrb[0].mxu0 %v2144
        %v2233 = vpop.f32.mrb[0].mxu0
        %v2234 = vadd.f32 0.0, %v2233
        %v2235 = vpop.f32.mrb[0].mxu0
        %v2236 = vpop.f32.mrb[0].mxu0
        %v2237 = vadd.f32 0.0, %v2236
        %v2238 = vpop.f32.mrb[0].mxu0
        %2239 = vmatprep.mubr.bf16.mxu0 0
        %2240 = vmatmul.mubr.bf16.gmra.mrb[0].mxu0 %v2147
        %v2241 = vpop.f32.mrb[0].mxu0
        %v2242 = vadd.f32 0.0, %v2241
        %v2243 = vpop.f32.mrb[0].mxu0
        %v2244 = vpop.f32.mrb[0].mxu0
        %v2245 = vadd.f32 0.0, %v2244
        %v2246 = vpop.f32.mrb[0].mxu0
        %2247 = vmatprep.mubr.bf16.mxu0 0
        %2248 = vmatmul.mubr.bf16.gmra.mrb[0].mxu0 %v2150
        %v2249 = vpop.f32.mrb[0].mxu0
        %v2250 = vadd.f32 0.0, %v2249
        %v2251 = vpop.f32.mrb[0].mxu0
        %v2252 = vpop.f32.mrb[0].mxu0
        %v2253 = vadd.f32 0.0, %v2252
        %v2254 = vpop.f32.mrb[0].mxu0
        %2255 = vmatprep.mubr.bf16.mxu0 0
        %2256 = vmatmul.mubr.bf16.gmra.mrb[0].mxu0 %v2153
        %v2257 = vpop.f32.mrb[0].mxu0
        %v2258 = vadd.f32 0.0, %v2257
        %v2259 = vpop.f32.mrb[0].mxu0
        %v2260 = vpop.f32.mrb[0].mxu0
        %v2261 = vadd.f32 0.0, %v2260
        %v2262 = vpop.f32.mrb[0].mxu0
        %2263 = vmatprep.mubr.bf16.mxu0 0
        %2264 = vmatmul.mubr.bf16.gmra.mrb[0].mxu0 %v2156
        %v2265 = vpop.f32.mrb[0].mxu0
        %v2266 = vadd.f32 0.0, %v2265
        %v2267 = vpop.f32.mrb[0].mxu0
        %v2268 = vpop.f32.mrb[0].mxu0
        %v2269 = vadd.f32 0.0, %v2268
        %v2270 = vpop.f32.mrb[0].mxu0
        %2271 = vmatprep.mubr.bf16.mxu0 0
        %2272 = vmatmul.mubr.bf16.gmra.mrb[0].mxu0 %v2159
        %v2273 = vpop.f32.mrb[0].mxu0
        %v2274 = vadd.f32 0.0, %v2273
        %v2275 = vpop.f32.mrb[0].mxu0
        %v2276 = vpop.f32.mrb[0].mxu0
        %v2277 = vadd.f32 0.0, %v2276
        %v2278 = vpop.f32.mrb[0].mxu0
        %2279 = vmatprep.mubr.bf16.mxu0 0
        %2280 = vmatmul.mubr.bf16.gmra.mrb[0].mxu0 %v2162
        %v2281 = vpop.f32.mrb[0].mxu0
        %v2282 = vadd.f32 0.0, %v2281
        %v2283 = vpop.f32.mrb[0].mxu0
        %v2284 = vpop.f32.mrb[0].mxu0
        %v2285 = vadd.f32 0.0, %v2284
        %v2286 = vpop.f32.mrb[0].mxu0
        %2287 = vmatprep.mubr.bf16.mxu0 0
        %2288 = vmatmul.mubr.bf16.gmra.mrb[0].mxu0 %v2165
        %v2289 = vpop.f32.mrb[0].mxu0
        %v2290 = vadd.f32 0.0, %v2289
        %v2291 = vpop.f32.mrb[0].mxu0
        %v2292 = vpop.f32.mrb[0].mxu0
        %v2293 = vadd.f32 0.0, %v2292
        %v2294 = vpop.f32.mrb[0].mxu0
        %2295 = vmatprep.mubr.bf16.mxu0 0
        %2296 = vmatmul.mubr.bf16.gmra.mrb[0].mxu0 %v2168
        %v2297 = vpop.f32.mrb[0].mxu0
        %v2298 = vadd.f32 0.0, %v2297
        %v2299 = vpop.f32.mrb[0].mxu0
        %v2300 = vpop.f32.mrb[0].mxu0
        %v2301 = vadd.f32 0.0, %v2300
        %v2302 = vpop.f32.mrb[0].mxu0
        %2303 = vmatprep.mubr.bf16.mxu0 0
        %2304 = vmatmul.mubr.bf16.gmra.mrb[0].mxu0 %v2171
        %v2305 = vpop.f32.mrb[0].mxu0
        %v2306 = vadd.f32 0.0, %v2305
        %v2307 = vpop.f32.mrb[0].mxu0
        %v2308 = vpop.f32.mrb[0].mxu0
        %v2309 = vadd.f32 0.0, %v2308
        %v2310 = vpop.f32.mrb[0].mxu0
        %2311 = vmatprep.mubr.bf16.mxu0 0
        %2312 = vmatmul.mubr.bf16.gmra.mrb[0].mxu0 %v2174
        %v2313 = vpop.f32.mrb[0].mxu0
        %v2314 = vadd.f32 0.0, %v2313
        %v2315 = vpop.f32.mrb[0].mxu0
        %v2316 = vpop.f32.mrb[0].mxu0
        %v2317 = vadd.f32 0.0, %v2316
        %v2318 = vpop.f32.mrb[0].mxu0
        %2319 = vmatprep.mubr.bf16.mxu0 0
        %2320 = vmatmul.mubr.bf16.gmra.mrb[0].mxu0 %v2177
        %v2321 = vpop.f32.mrb[0].mxu0
        %v2322 = vadd.f32 0.0, %v2321
        %v2323 = vpop.f32.mrb[0].mxu0
        %v2324 = vpop.f32.mrb[0].mxu0
        %v2325 = vadd.f32 0.0, %v2324
        %v2326 = vpop.f32.mrb[0].mxu0
        %2327 = vmatprep.mubr.bf16.mxu0 0
        %2328 = vmatmul.mubr.bf16.gmra.mrb[0].mxu0 %v2180
        %v2329 = vpop.f32.mrb[0].mxu0
        %v2330 = vadd.f32 0.0, %v2329
        %v2331 = vpop.f32.mrb[0].mxu0
        %v2332 = vpop.f32.mrb[0].mxu0
        %v2333 = vadd.f32 0.0, %v2332
        %v2334 = vpop.f32.mrb[0].mxu0
        %2335 = vmatprep.mubr.bf16.mxu0 0
        %2336 = vmatmul.mubr.bf16.gmra.mrb[0].mxu0 %v2183
        %v2337 = vpop.f32.mrb[0].mxu0
        %v2338 = vadd.f32 0.0, %v2337
        %v2339 = vpop.f32.mrb[0].mxu0
        %v2340 = vpop.f32.mrb[0].mxu0
        %v2341 = vadd.f32 0.0, %v2340
        %v2342 = vpop.f32.mrb[0].mxu0
        %2343 = vmatprep.mubr.bf16.mxu0 0
        %2344 = vmatmul.mubr.bf16.gmra.mrb[0].mxu0 %v2186
        %v2345 = vpop.f32.mrb[0].mxu0
        %v2346 = vadd.f32 0.0, %v2345
        %v2347 = vpop.f32.mrb[0].mxu0
        %v2348 = vpop.f32.mrb[0].mxu0
        %v2349 = vadd.f32 0.0, %v2348
        %v2350 = vpop.f32.mrb[0].mxu0
        %2351 = vdwg.mxu0
        %v2352 = vadd.f32 %v2057, %v2226
        %v2353 = vadd.f32 %v2058, %v2229
        %v2354 = vadd.f32 %v2059, %v2234
        %v2355 = vadd.f32 %v2060, %v2237
        %v2356 = vadd.f32 %v2061, %v2242
        %v2357 = vadd.f32 %v2062, %v2245
        %v2358 = vadd.f32 %v2063, %v2250
        %v2359 = vadd.f32 %v2064, %v2253
        %v2360 = vadd.f32 %v2065, %v2258
        %v2361 = vadd.f32 %v2066, %v2261
        %v2362 = vadd.f32 %v2067, %v2266
        %v2363 = vadd.f32 %v2068, %v2269
        %v2364 = vadd.f32 %v2069, %v2274
        %v2365 = vadd.f32 %v2070, %v2277
        %v2366 = vadd.f32 %v2071, %v2282
        %v2367 = vadd.f32 %v2072, %v2285
        %v2368 = vadd.f32 %v2073, %v2290
        %v2369 = vadd.f32 %v2074, %v2293
        %v2370 = vadd.f32 %v2075, %v2298
        %v2371 = vadd.f32 %v2076, %v2301
        %v2372 = vadd.f32 %v2077, %v2306
        %v2373 = vadd.f32 %v2078, %v2309
        %v2374 = vadd.f32 %v2079, %v2314
        %v2375 = vadd.f32 %v2080, %v2317
        %v2376 = vadd.f32 %v2081, %v2322
        %v2377 = vadd.f32 %v2082, %v2325
        %v2378 = vadd.f32 %v2083, %v2330
        %v2379 = vadd.f32 %v2084, %v2333
        %v2380 = vadd.f32 %v2085, %v2338
        %v2381 = vadd.f32 %v2086, %v2341
        %v2382 = vadd.f32 %v2087, %v2346
        %v2383 = vadd.f32 %v2088, %v2349
        %v2384 = vld [vmem:[%s2089 + $0x1] sm:$0xff]
        %v2385 = vld [vmem:[%s2089 + $0x9] sm:$0xff]
        %v2386 = vld [vmem:[%s2089 + $0x19] sm:$0xff]
        %v2387 = vld [vmem:[%s2089 + $0x21] sm:$0xff]
        %v2388 = vld [vmem:[%s2089 + $0x31] sm:$0xff]
        %v2389 = vld [vmem:[%s2089 + $0x39] sm:$0xff]
        %v2390 = vld [vmem:[%s2089 + $0x49] sm:$0xff]
        %v2391 = vld [vmem:[%s2089 + $0x51] sm:$0xff]
        %v2392 = vld [vmem:[%s2089 + $0x61] sm:$0xff]
        %v2393 = vld [vmem:[%s2089 + $0x69] sm:$0xff]
        %v2394 = vld [vmem:[%s2089 + $0x79] sm:$0xff]
        %v2395 = vld [vmem:[%s2089 + $0x81] sm:$0xff]
        %v2396 = vld [vmem:[%s2089 + $0x91] sm:$0xff]
        %v2397 = vld [vmem:[%s2089 + $0x99] sm:$0xff]
        %v2398 = vld [vmem:[%s2089 + $0xa9] sm:$0xff]
        %v2399 = vld [vmem:[%s2089 + $0xb1] sm:$0xff]
        %v2400 = vld [vmem:[%s2089 + $0xc1] sm:$0xff]
        %v2401 = vld [vmem:[%s2089 + $0xc9] sm:$0xff]
        %v2402 = vld [vmem:[%s2089 + $0xd9] sm:$0xff]
        %v2403 = vld [vmem:[%s2089 + $0xe1] sm:$0xff]
        %v2404 = vld [vmem:[%s2089 + $0xf1] sm:$0xff]
        %v2405 = vld [vmem:[%s2089 + $0xf9] sm:$0xff]
        %v2406 = vld [vmem:[%s2089 + $0x109] sm:$0xff]
        %v2407 = vld [vmem:[%s2089 + $0x111] sm:$0xff]
        %v2408 = vld [vmem:[%s2089 + $0x121] sm:$0xff]
        %v2409 = vld [vmem:[%s2089 + $0x129] sm:$0xff]
        %v2410 = vld [vmem:[%s2089 + $0x139] sm:$0xff]
        %v2411 = vld [vmem:[%s2089 + $0x141] sm:$0xff]
        %v2412 = vld [vmem:[%s2089 + $0x151] sm:$0xff]
        %v2413 = vld [vmem:[%s2089 + $0x159] sm:$0xff]
        %v2414 = vld [vmem:[%s2089 + $0x169] sm:$0xff]
        %v2415 = vld [vmem:[%s2089 + $0x171] sm:$0xff]
        %v2416 = vpack.c.bf16 %v2385, %v2384
        %v2417 = vpack.c.bf16 %v2387, %v2386
        %v2418 = vpack.c.bf16 %v2389, %v2388
        %v2419 = vpack.c.bf16 %v2391, %v2390
        %v2420 = vpack.c.bf16 %v2393, %v2392
        %v2421 = vpack.c.bf16 %v2395, %v2394
        %v2422 = vpack.c.bf16 %v2397, %v2396
        %v2423 = vpack.c.bf16 %v2399, %v2398
        %v2424 = vpack.c.bf16 %v2401, %v2400
        %v2425 = vpack.c.bf16 %v2403, %v2402
        %v2426 = vpack.c.bf16 %v2405, %v2404
        %v2427 = vpack.c.bf16 %v2407, %v2406
        %v2428 = vpack.c.bf16 %v2409, %v2408
        %v2429 = vpack.c.bf16 %v2411, %v2410
        %v2430 = vpack.c.bf16 %v2413, %v2412
        %v2431 = vpack.c.bf16 %v2415, %v2414
        %s2432 = scalar_lea.vmem %s1, 14
        %v2433 = vld [vmem:[%s2432] sm:$0x3]
        %v2435 = vsel %vm310, %v2416, 0
        %v2438 = vsel %vm310, %v2417, 0
        %v2441 = vsel %vm310, %v2418, 0
        %v2444 = vsel %vm310, %v2419, 0
        %v2447 = vsel %vm310, %v2420, 0
        %v2450 = vsel %vm310, %v2421, 0
        %v2453 = vsel %vm310, %v2422, 0
        %v2456 = vsel %vm310, %v2423, 0
        %v2459 = vsel %vm310, %v2424, 0
        %v2462 = vsel %vm310, %v2425, 0
        %v2465 = vsel %vm310, %v2426, 0
        %v2468 = vsel %vm310, %v2427, 0
        %v2471 = vsel %vm310, %v2428, 0
        %v2474 = vsel %vm310, %v2429, 0
        %v2477 = vsel %vm310, %v2430, 0
        %v2480 = vsel %vm310, %v2431, 0
        %v2483 = vsel %vm536, %v2433, 0
        %2485 = vmatprep.subr.bf16.mxu0 0
        %2486 = vmatpush1.bf16.msra.mxu0 %v2483
        %2487 = vmatprep.subr.bf16.mxu0 0
        %2488 = vmatpush1.bf16.msra.mxu0 0
        %2489 = vmatprep.subr.bf16.mxu0 0
        %2490 = vmatpush1.bf16.msra.mxu0 0
        %2491 = vmatprep.subr.bf16.mxu0 0
        %2492 = vmatpush1.bf16.msra.mxu0 0
        %2493 = vmatprep.subr.bf16.mxu0 0
        %2494 = vmatpush1.bf16.msra.mxu0 0
        %2495 = vmatprep.subr.bf16.mxu0 0
        %2496 = vmatpush1.bf16.msra.mxu0 0
        %2497 = vmatprep.subr.bf16.mxu0 0
        %2498 = vmatpush1.bf16.msra.mxu0 0
        %2499 = vmatprep.subr.bf16.mxu0 0
        %2500 = vmatpush1.bf16.msra.mxu0 0
        %2501 = vmatprep.subr.bf16.mxu0 0
        %2502 = vmatpush1.bf16.msra.mxu0 0
        %2503 = vmatprep.subr.bf16.mxu0 0
        %2504 = vmatpush1.bf16.msra.mxu0 0
        %2505 = vmatprep.subr.bf16.mxu0 0
        %2506 = vmatpush1.bf16.msra.mxu0 0
        %2507 = vmatprep.subr.bf16.mxu0 0
        %2508 = vmatpush1.bf16.msra.mxu0 0
        %2509 = vmatprep.subr.bf16.mxu0 0
        %2510 = vmatpush1.bf16.msra.mxu0 0
        %2511 = vmatprep.subr.bf16.mxu0 0
        %2512 = vmatpush1.bf16.msra.mxu0 0
        %2513 = vmatprep.subr.bf16.mxu0 0
        %2514 = vmatpush1.bf16.msra.mxu0 0
        %2515 = vmatprep.subr.bf16.mxu0 0
        %2516 = vmatpush1.bf16.msra.mxu0 0
        %2517 = vmatprep.mubr.bf16.mxu0 0
        %2518 = vmatmul.mubr.bf16.gmra.mrb[0].mxu0 %v2435
        %v2519 = vpop.f32.mrb[0].mxu0
        %v2520 = vadd.f32 0.0, %v2519
        %v2521 = vpop.f32.mrb[0].mxu0
        %v2522 = vpop.f32.mrb[0].mxu0
        %v2523 = vadd.f32 0.0, %v2522
        %v2524 = vpop.f32.mrb[0].mxu0
        %2525 = vmatprep.mubr.bf16.mxu0 0
        %2526 = vmatmul.mubr.bf16.gmra.mrb[0].mxu0 %v2438
        %v2527 = vpop.f32.mrb[0].mxu0
        %v2528 = vadd.f32 0.0, %v2527
        %v2529 = vpop.f32.mrb[0].mxu0
        %v2530 = vpop.f32.mrb[0].mxu0
        %v2531 = vadd.f32 0.0, %v2530
        %v2532 = vpop.f32.mrb[0].mxu0
        %2533 = vmatprep.mubr.bf16.mxu0 0
        %2534 = vmatmul.mubr.bf16.gmra.mrb[0].mxu0 %v2441
        %v2535 = vpop.f32.mrb[0].mxu0
        %v2536 = vadd.f32 0.0, %v2535
        %v2537 = vpop.f32.mrb[0].mxu0
        %v2538 = vpop.f32.mrb[0].mxu0
        %v2539 = vadd.f32 0.0, %v2538
        %v2540 = vpop.f32.mrb[0].mxu0
        %2541 = vmatprep.mubr.bf16.mxu0 0
        %2542 = vmatmul.mubr.bf16.gmra.mrb[0].mxu0 %v2444
        %v2543 = vpop.f32.mrb[0].mxu0
        %v2544 = vadd.f32 0.0, %v2543
        %v2545 = vpop.f32.mrb[0].mxu0
        %v2546 = vpop.f32.mrb[0].mxu0
        %v2547 = vadd.f32 0.0, %v2546
        %v2548 = vpop.f32.mrb[0].mxu0
        %2549 = vmatprep.mubr.bf16.mxu0 0
        %2550 = vmatmul.mubr.bf16.gmra.mrb[0].mxu0 %v2447
        %v2551 = vpop.f32.mrb[0].mxu0
        %v2552 = vadd.f32 0.0, %v2551
        %v2553 = vpop.f32.mrb[0].mxu0
        %v2554 = vpop.f32.mrb[0].mxu0
        %v2555 = vadd.f32 0.0, %v2554
        %v2556 = vpop.f32.mrb[0].mxu0
        %2557 = vmatprep.mubr.bf16.mxu0 0
        %2558 = vmatmul.mubr.bf16.gmra.mrb[0].mxu0 %v2450
        %v2559 = vpop.f32.mrb[0].mxu0
        %v2560 = vadd.f32 0.0, %v2559
        %v2561 = vpop.f32.mrb[0].mxu0
        %v2562 = vpop.f32.mrb[0].mxu0
        %v2563 = vadd.f32 0.0, %v2562
        %v2564 = vpop.f32.mrb[0].mxu0
        %2565 = vmatprep.mubr.bf16.mxu0 0
        %2566 = vmatmul.mubr.bf16.gmra.mrb[0].mxu0 %v2453
        %v2567 = vpop.f32.mrb[0].mxu0
        %v2568 = vadd.f32 0.0, %v2567
        %v2569 = vpop.f32.mrb[0].mxu0
        %v2570 = vpop.f32.mrb[0].mxu0
        %v2571 = vadd.f32 0.0, %v2570
        %v2572 = vpop.f32.mrb[0].mxu0
        %2573 = vmatprep.mubr.bf16.mxu0 0
        %2574 = vmatmul.mubr.bf16.gmra.mrb[0].mxu0 %v2456
        %v2575 = vpop.f32.mrb[0].mxu0
        %v2576 = vadd.f32 0.0, %v2575
        %v2577 = vpop.f32.mrb[0].mxu0
        %v2578 = vpop.f32.mrb[0].mxu0
        %v2579 = vadd.f32 0.0, %v2578
        %v2580 = vpop.f32.mrb[0].mxu0
        %2581 = vmatprep.mubr.bf16.mxu0 0
        %2582 = vmatmul.mubr.bf16.gmra.mrb[0].mxu0 %v2459
        %v2583 = vpop.f32.mrb[0].mxu0
        %v2584 = vadd.f32 0.0, %v2583
        %v2585 = vpop.f32.mrb[0].mxu0
        %v2586 = vpop.f32.mrb[0].mxu0
        %v2587 = vadd.f32 0.0, %v2586
        %v2588 = vpop.f32.mrb[0].mxu0
        %2589 = vmatprep.mubr.bf16.mxu0 0
        %2590 = vmatmul.mubr.bf16.gmra.mrb[0].mxu0 %v2462
        %v2591 = vpop.f32.mrb[0].mxu0
        %v2592 = vadd.f32 0.0, %v2591
        %v2593 = vpop.f32.mrb[0].mxu0
        %v2594 = vpop.f32.mrb[0].mxu0
        %v2595 = vadd.f32 0.0, %v2594
        %v2596 = vpop.f32.mrb[0].mxu0
        %2597 = vmatprep.mubr.bf16.mxu0 0
        %2598 = vmatmul.mubr.bf16.gmra.mrb[0].mxu0 %v2465
        %v2599 = vpop.f32.mrb[0].mxu0
        %v2600 = vadd.f32 0.0, %v2599
        %v2601 = vpop.f32.mrb[0].mxu0
        %v2602 = vpop.f32.mrb[0].mxu0
        %v2603 = vadd.f32 0.0, %v2602
        %v2604 = vpop.f32.mrb[0].mxu0
        %2605 = vmatprep.mubr.bf16.mxu0 0
        %2606 = vmatmul.mubr.bf16.gmra.mrb[0].mxu0 %v2468
        %v2607 = vpop.f32.mrb[0].mxu0
        %v2608 = vadd.f32 0.0, %v2607
        %v2609 = vpop.f32.mrb[0].mxu0
        %v2610 = vpop.f32.mrb[0].mxu0
        %v2611 = vadd.f32 0.0, %v2610
        %v2612 = vpop.f32.mrb[0].mxu0
        %2613 = vmatprep.mubr.bf16.mxu0 0
        %2614 = vmatmul.mubr.bf16.gmra.mrb[0].mxu0 %v2471
        %v2615 = vpop.f32.mrb[0].mxu0
        %v2616 = vadd.f32 0.0, %v2615
        %v2617 = vpop.f32.mrb[0].mxu0
        %v2618 = vpop.f32.mrb[0].mxu0
        %v2619 = vadd.f32 0.0, %v2618
        %v2620 = vpop.f32.mrb[0].mxu0
        %2621 = vmatprep.mubr.bf16.mxu0 0
        %2622 = vmatmul.mubr.bf16.gmra.mrb[0].mxu0 %v2474
        %v2623 = vpop.f32.mrb[0].mxu0
        %v2624 = vadd.f32 0.0, %v2623
        %v2625 = vpop.f32.mrb[0].mxu0
        %v2626 = vpop.f32.mrb[0].mxu0
        %v2627 = vadd.f32 0.0, %v2626
        %v2628 = vpop.f32.mrb[0].mxu0
        %2629 = vmatprep.mubr.bf16.mxu0 0
        %2630 = vmatmul.mubr.bf16.gmra.mrb[0].mxu0 %v2477
        %v2631 = vpop.f32.mrb[0].mxu0
        %v2632 = vadd.f32 0.0, %v2631
        %v2633 = vpop.f32.mrb[0].mxu0
        %v2634 = vpop.f32.mrb[0].mxu0
        %v2635 = vadd.f32 0.0, %v2634
        %v2636 = vpop.f32.mrb[0].mxu0
        %2637 = vmatprep.mubr.bf16.mxu0 0
        %2638 = vmatmul.mubr.bf16.gmra.mrb[0].mxu0 %v2480
        %v2639 = vpop.f32.mrb[0].mxu0
        %v2640 = vadd.f32 0.0, %v2639
        %v2641 = vpop.f32.mrb[0].mxu0
        %v2642 = vpop.f32.mrb[0].mxu0
        %v2643 = vadd.f32 0.0, %v2642
        %v2644 = vpop.f32.mrb[0].mxu0
        %2645 = vdwg.mxu0
        %v2646 = vadd.f32 %v2352, %v2520
        %v2647 = vadd.f32 %v2353, %v2523
        %v2648 = vadd.f32 %v2354, %v2528
        %v2649 = vadd.f32 %v2355, %v2531
        %v2650 = vadd.f32 %v2356, %v2536
        %v2651 = vadd.f32 %v2357, %v2539
        %v2652 = vadd.f32 %v2358, %v2544
        %v2653 = vadd.f32 %v2359, %v2547
        %v2654 = vadd.f32 %v2360, %v2552
        %v2655 = vadd.f32 %v2361, %v2555
        %v2656 = vadd.f32 %v2362, %v2560
        %v2657 = vadd.f32 %v2363, %v2563
        %v2658 = vadd.f32 %v2364, %v2568
        %v2659 = vadd.f32 %v2365, %v2571
        %v2660 = vadd.f32 %v2366, %v2576
        %v2661 = vadd.f32 %v2367, %v2579
        %v2662 = vadd.f32 %v2368, %v2584
        %v2663 = vadd.f32 %v2369, %v2587
        %v2664 = vadd.f32 %v2370, %v2592
        %v2665 = vadd.f32 %v2371, %v2595
        %v2666 = vadd.f32 %v2372, %v2600
        %v2667 = vadd.f32 %v2373, %v2603
        %v2668 = vadd.f32 %v2374, %v2608
        %v2669 = vadd.f32 %v2375, %v2611
        %v2670 = vadd.f32 %v2376, %v2616
        %v2671 = vadd.f32 %v2377, %v2619
        %v2672 = vadd.f32 %v2378, %v2624
        %v2673 = vadd.f32 %v2379, %v2627
        %v2674 = vadd.f32 %v2380, %v2632
        %v2675 = vadd.f32 %v2381, %v2635
        %v2676 = vadd.f32 %v2382, %v2640
        %v2677 = vadd.f32 %v2383, %v2643
        %v2678 = vld [vmem:[%s2089 + $0x2] sm:$0xff]
        %v2679 = vld [vmem:[%s2089 + $0xa] sm:$0xff]
        %v2680 = vld [vmem:[%s2089 + $0x1a] sm:$0xff]
        %v2681 = vld [vmem:[%s2089 + $0x22] sm:$0xff]
        %v2682 = vld [vmem:[%s2089 + $0x32] sm:$0xff]
        %v2683 = vld [vmem:[%s2089 + $0x3a] sm:$0xff]
        %v2684 = vld [vmem:[%s2089 + $0x4a] sm:$0xff]
        %v2685 = vld [vmem:[%s2089 + $0x52] sm:$0xff]
        %v2686 = vld [vmem:[%s2089 + $0x62] sm:$0xff]
        %v2687 = vld [vmem:[%s2089 + $0x6a] sm:$0xff]
        %v2688 = vld [vmem:[%s2089 + $0x7a] sm:$0xff]
        %v2689 = vld [vmem:[%s2089 + $0x82] sm:$0xff]
        %v2690 = vld [vmem:[%s2089 + $0x92] sm:$0xff]
        %v2691 = vld [vmem:[%s2089 + $0x9a] sm:$0xff]
        %v2692 = vld [vmem:[%s2089 + $0xaa] sm:$0xff]
        %v2693 = vld [vmem:[%s2089 + $0xb2] sm:$0xff]
        %v2694 = vld [vmem:[%s2089 + $0xc2] sm:$0xff]
        %v2695 = vld [vmem:[%s2089 + $0xca] sm:$0xff]
        %v2696 = vld [vmem:[%s2089 + $0xda] sm:$0xff]
        %v2697 = vld [vmem:[%s2089 + $0xe2] sm:$0xff]
        %v2698 = vld [vmem:[%s2089 + $0xf2] sm:$0xff]
        %v2699 = vld [vmem:[%s2089 + $0xfa] sm:$0xff]
        %v2700 = vld [vmem:[%s2089 + $0x10a] sm:$0xff]
        %v2701 = vld [vmem:[%s2089 + $0x112] sm:$0xff]
        %v2702 = vld [vmem:[%s2089 + $0x122] sm:$0xff]
        %v2703 = vld [vmem:[%s2089 + $0x12a] sm:$0xff]
        %v2704 = vld [vmem:[%s2089 + $0x13a] sm:$0xff]
        %v2705 = vld [vmem:[%s2089 + $0x142] sm:$0xff]
        %v2706 = vld [vmem:[%s2089 + $0x152] sm:$0xff]
        %v2707 = vld [vmem:[%s2089 + $0x15a] sm:$0xff]
        %v2708 = vld [vmem:[%s2089 + $0x16a] sm:$0xff]
        %v2709 = vld [vmem:[%s2089 + $0x172] sm:$0xff]
        %v2710 = vpack.c.bf16 %v2679, %v2678
        %v2711 = vpack.c.bf16 %v2681, %v2680
        %v2712 = vpack.c.bf16 %v2683, %v2682
        %v2713 = vpack.c.bf16 %v2685, %v2684
        %v2714 = vpack.c.bf16 %v2687, %v2686
        %v2715 = vpack.c.bf16 %v2689, %v2688
        %v2716 = vpack.c.bf16 %v2691, %v2690
        %v2717 = vpack.c.bf16 %v2693, %v2692
        %v2718 = vpack.c.bf16 %v2695, %v2694
        %v2719 = vpack.c.bf16 %v2697, %v2696
        %v2720 = vpack.c.bf16 %v2699, %v2698
        %v2721 = vpack.c.bf16 %v2701, %v2700
        %v2722 = vpack.c.bf16 %v2703, %v2702
        %v2723 = vpack.c.bf16 %v2705, %v2704
        %v2724 = vpack.c.bf16 %v2707, %v2706
        %v2725 = vpack.c.bf16 %v2709, %v2708
        %s2726 = scalar_lea.vmem %s1, 16
        %v2727 = vld [vmem:[%s2726] sm:$0x3]
        %v2729 = vsel %vm310, %v2710, 0
        %v2732 = vsel %vm310, %v2711, 0
        %v2735 = vsel %vm310, %v2712, 0
        %v2738 = vsel %vm310, %v2713, 0
        %v2741 = vsel %vm310, %v2714, 0
        %v2744 = vsel %vm310, %v2715, 0
        %v2747 = vsel %vm310, %v2716, 0
        %v2750 = vsel %vm310, %v2717, 0
        %v2753 = vsel %vm310, %v2718, 0
        %v2756 = vsel %vm310, %v2719, 0
        %v2759 = vsel %vm310, %v2720, 0
        %v2762 = vsel %vm310, %v2721, 0
        %v2765 = vsel %vm310, %v2722, 0
        %v2768 = vsel %vm310, %v2723, 0
        %v2771 = vsel %vm310, %v2724, 0
        %v2774 = vsel %vm310, %v2725, 0
        %v2777 = vsel %vm536, %v2727, 0
        %2779 = vmatprep.subr.bf16.mxu0 0
        %2780 = vmatpush1.bf16.msra.mxu0 %v2777
        %2781 = vmatprep.subr.bf16.mxu0 0
        %2782 = vmatpush1.bf16.msra.mxu0 0
        %2783 = vmatprep.subr.bf16.mxu0 0
        %2784 = vmatpush1.bf16.msra.mxu0 0
        %2785 = vmatprep.subr.bf16.mxu0 0
        %2786 = vmatpush1.bf16.msra.mxu0 0
        %2787 = vmatprep.subr.bf16.mxu0 0
        %2788 = vmatpush1.bf16.msra.mxu0 0
        %2789 = vmatprep.subr.bf16.mxu0 0
        %2790 = vmatpush1.bf16.msra.mxu0 0
        %2791 = vmatprep.subr.bf16.mxu0 0
        %2792 = vmatpush1.bf16.msra.mxu0 0
        %2793 = vmatprep.subr.bf16.mxu0 0
        %2794 = vmatpush1.bf16.msra.mxu0 0
        %2795 = vmatprep.subr.bf16.mxu0 0
        %2796 = vmatpush1.bf16.msra.mxu0 0
        %2797 = vmatprep.subr.bf16.mxu0 0
        %2798 = vmatpush1.bf16.msra.mxu0 0
        %2799 = vmatprep.subr.bf16.mxu0 0
        %2800 = vmatpush1.bf16.msra.mxu0 0
        %2801 = vmatprep.subr.bf16.mxu0 0
        %2802 = vmatpush1.bf16.msra.mxu0 0
        %2803 = vmatprep.subr.bf16.mxu0 0
        %2804 = vmatpush1.bf16.msra.mxu0 0
        %2805 = vmatprep.subr.bf16.mxu0 0
        %2806 = vmatpush1.bf16.msra.mxu0 0
        %2807 = vmatprep.subr.bf16.mxu0 0
        %2808 = vmatpush1.bf16.msra.mxu0 0
        %2809 = vmatprep.subr.bf16.mxu0 0
        %2810 = vmatpush1.bf16.msra.mxu0 0
        %2811 = vmatprep.mubr.bf16.mxu0 0
        %2812 = vmatmul.mubr.bf16.gmra.mrb[0].mxu0 %v2729
        %v2813 = vpop.f32.mrb[0].mxu0
        %v2814 = vadd.f32 0.0, %v2813
        %v2815 = vpop.f32.mrb[0].mxu0
        %v2816 = vpop.f32.mrb[0].mxu0
        %v2817 = vadd.f32 0.0, %v2816
        %v2818 = vpop.f32.mrb[0].mxu0
        %2819 = vmatprep.mubr.bf16.mxu0 0
        %2820 = vmatmul.mubr.bf16.gmra.mrb[0].mxu0 %v2732
        %v2821 = vpop.f32.mrb[0].mxu0
        %v2822 = vadd.f32 0.0, %v2821
        %v2823 = vpop.f32.mrb[0].mxu0
        %v2824 = vpop.f32.mrb[0].mxu0
        %v2825 = vadd.f32 0.0, %v2824
        %v2826 = vpop.f32.mrb[0].mxu0
        %2827 = vmatprep.mubr.bf16.mxu0 0
        %2828 = vmatmul.mubr.bf16.gmra.mrb[0].mxu0 %v2735
        %v2829 = vpop.f32.mrb[0].mxu0
        %v2830 = vadd.f32 0.0, %v2829
        %v2831 = vpop.f32.mrb[0].mxu0
        %v2832 = vpop.f32.mrb[0].mxu0
        %v2833 = vadd.f32 0.0, %v2832
        %v2834 = vpop.f32.mrb[0].mxu0
        %2835 = vmatprep.mubr.bf16.mxu0 0
        %2836 = vmatmul.mubr.bf16.gmra.mrb[0].mxu0 %v2738
        %v2837 = vpop.f32.mrb[0].mxu0
        %v2838 = vadd.f32 0.0, %v2837
        %v2839 = vpop.f32.mrb[0].mxu0
        %v2840 = vpop.f32.mrb[0].mxu0
        %v2841 = vadd.f32 0.0, %v2840
        %v2842 = vpop.f32.mrb[0].mxu0
        %2843 = vmatprep.mubr.bf16.mxu0 0
        %2844 = vmatmul.mubr.bf16.gmra.mrb[0].mxu0 %v2741
        %v2845 = vpop.f32.mrb[0].mxu0
        %v2846 = vadd.f32 0.0, %v2845
        %v2847 = vpop.f32.mrb[0].mxu0
        %v2848 = vpop.f32.mrb[0].mxu0
        %v2849 = vadd.f32 0.0, %v2848
        %v2850 = vpop.f32.mrb[0].mxu0
        %2851 = vmatprep.mubr.bf16.mxu0 0
        %2852 = vmatmul.mubr.bf16.gmra.mrb[0].mxu0 %v2744
        %v2853 = vpop.f32.mrb[0].mxu0
        %v2854 = vadd.f32 0.0, %v2853
        %v2855 = vpop.f32.mrb[0].mxu0
        %v2856 = vpop.f32.mrb[0].mxu0
        %v2857 = vadd.f32 0.0, %v2856
        %v2858 = vpop.f32.mrb[0].mxu0
        %2859 = vmatprep.mubr.bf16.mxu0 0
        %2860 = vmatmul.mubr.bf16.gmra.mrb[0].mxu0 %v2747
        %v2861 = vpop.f32.mrb[0].mxu0
        %v2862 = vadd.f32 0.0, %v2861
        %v2863 = vpop.f32.mrb[0].mxu0
        %v2864 = vpop.f32.mrb[0].mxu0
        %v2865 = vadd.f32 0.0, %v2864
        %v2866 = vpop.f32.mrb[0].mxu0
        %2867 = vmatprep.mubr.bf16.mxu0 0
        %2868 = vmatmul.mubr.bf16.gmra.mrb[0].mxu0 %v2750
        %v2869 = vpop.f32.mrb[0].mxu0
        %v2870 = vadd.f32 0.0, %v2869
        %v2871 = vpop.f32.mrb[0].mxu0
        %v2872 = vpop.f32.mrb[0].mxu0
        %v2873 = vadd.f32 0.0, %v2872
        %v2874 = vpop.f32.mrb[0].mxu0
        %2875 = vmatprep.mubr.bf16.mxu0 0
        %2876 = vmatmul.mubr.bf16.gmra.mrb[0].mxu0 %v2753
        %v2877 = vpop.f32.mrb[0].mxu0
        %v2878 = vadd.f32 0.0, %v2877
        %v2879 = vpop.f32.mrb[0].mxu0
        %v2880 = vpop.f32.mrb[0].mxu0
        %v2881 = vadd.f32 0.0, %v2880
        %v2882 = vpop.f32.mrb[0].mxu0
        %2883 = vmatprep.mubr.bf16.mxu0 0
        %2884 = vmatmul.mubr.bf16.gmra.mrb[0].mxu0 %v2756
        %v2885 = vpop.f32.mrb[0].mxu0
        %v2886 = vadd.f32 0.0, %v2885
        %v2887 = vpop.f32.mrb[0].mxu0
        %v2888 = vpop.f32.mrb[0].mxu0
        %v2889 = vadd.f32 0.0, %v2888
        %v2890 = vpop.f32.mrb[0].mxu0
        %2891 = vmatprep.mubr.bf16.mxu0 0
        %2892 = vmatmul.mubr.bf16.gmra.mrb[0].mxu0 %v2759
        %v2893 = vpop.f32.mrb[0].mxu0
        %v2894 = vadd.f32 0.0, %v2893
        %v2895 = vpop.f32.mrb[0].mxu0
        %v2896 = vpop.f32.mrb[0].mxu0
        %v2897 = vadd.f32 0.0, %v2896
        %v2898 = vpop.f32.mrb[0].mxu0
        %2899 = vmatprep.mubr.bf16.mxu0 0
        %2900 = vmatmul.mubr.bf16.gmra.mrb[0].mxu0 %v2762
        %v2901 = vpop.f32.mrb[0].mxu0
        %v2902 = vadd.f32 0.0, %v2901
        %v2903 = vpop.f32.mrb[0].mxu0
        %v2904 = vpop.f32.mrb[0].mxu0
        %v2905 = vadd.f32 0.0, %v2904
        %v2906 = vpop.f32.mrb[0].mxu0
        %2907 = vmatprep.mubr.bf16.mxu0 0
        %2908 = vmatmul.mubr.bf16.gmra.mrb[0].mxu0 %v2765
        %v2909 = vpop.f32.mrb[0].mxu0
        %v2910 = vadd.f32 0.0, %v2909
        %v2911 = vpop.f32.mrb[0].mxu0
        %v2912 = vpop.f32.mrb[0].mxu0
        %v2913 = vadd.f32 0.0, %v2912
        %v2914 = vpop.f32.mrb[0].mxu0
        %2915 = vmatprep.mubr.bf16.mxu0 0
        %2916 = vmatmul.mubr.bf16.gmra.mrb[0].mxu0 %v2768
        %v2917 = vpop.f32.mrb[0].mxu0
        %v2918 = vadd.f32 0.0, %v2917
        %v2919 = vpop.f32.mrb[0].mxu0
        %v2920 = vpop.f32.mrb[0].mxu0
        %v2921 = vadd.f32 0.0, %v2920
        %v2922 = vpop.f32.mrb[0].mxu0
        %2923 = vmatprep.mubr.bf16.mxu0 0
        %2924 = vmatmul.mubr.bf16.gmra.mrb[0].mxu0 %v2771
        %v2925 = vpop.f32.mrb[0].mxu0
        %v2926 = vadd.f32 0.0, %v2925
        %v2927 = vpop.f32.mrb[0].mxu0
        %v2928 = vpop.f32.mrb[0].mxu0
        %v2929 = vadd.f32 0.0, %v2928
        %v2930 = vpop.f32.mrb[0].mxu0
        %2931 = vmatprep.mubr.bf16.mxu0 0
        %2932 = vmatmul.mubr.bf16.gmra.mrb[0].mxu0 %v2774
        %v2933 = vpop.f32.mrb[0].mxu0
        %v2934 = vadd.f32 0.0, %v2933
        %v2935 = vpop.f32.mrb[0].mxu0
        %v2936 = vpop.f32.mrb[0].mxu0
        %v2937 = vadd.f32 0.0, %v2936
        %v2938 = vpop.f32.mrb[0].mxu0
        %2939 = vdwg.mxu0
        %v2940 = vadd.f32 %v2646, %v2814
        %v2941 = vadd.f32 %v2647, %v2817
        %v2942 = vadd.f32 %v2648, %v2822
        %v2943 = vadd.f32 %v2649, %v2825
        %v2944 = vadd.f32 %v2650, %v2830
        %v2945 = vadd.f32 %v2651, %v2833
        %v2946 = vadd.f32 %v2652, %v2838
        %v2947 = vadd.f32 %v2653, %v2841
        %v2948 = vadd.f32 %v2654, %v2846
        %v2949 = vadd.f32 %v2655, %v2849
        %v2950 = vadd.f32 %v2656, %v2854
        %v2951 = vadd.f32 %v2657, %v2857
        %v2952 = vadd.f32 %v2658, %v2862
        %v2953 = vadd.f32 %v2659, %v2865
        %v2954 = vadd.f32 %v2660, %v2870
        %v2955 = vadd.f32 %v2661, %v2873
        %v2956 = vadd.f32 %v2662, %v2878
        %v2957 = vadd.f32 %v2663, %v2881
        %v2958 = vadd.f32 %v2664, %v2886
        %v2959 = vadd.f32 %v2665, %v2889
        %v2960 = vadd.f32 %v2666, %v2894
        %v2961 = vadd.f32 %v2667, %v2897
        %v2962 = vadd.f32 %v2668, %v2902
        %v2963 = vadd.f32 %v2669, %v2905
        %v2964 = vadd.f32 %v2670, %v2910
        %v2965 = vadd.f32 %v2671, %v2913
        %v2966 = vadd.f32 %v2672, %v2918
        %v2967 = vadd.f32 %v2673, %v2921
        %v2968 = vadd.f32 %v2674, %v2926
        %v2969 = vadd.f32 %v2675, %v2929
        %v2970 = vadd.f32 %v2676, %v2934
        %v2971 = vadd.f32 %v2677, %v2937
        %v2972 = vld [vmem:[%s2] sm:$0x1]
        %v2974 = vlaneseq
        %v2975 = vshrl.u32 %v2974, 7
        %v2976 = vsub.s32 0, %v2975
        %v2977 = vrot.slane %v2972, %v2976
        %v2979 = vmul.f32 %v2940, %v2977
        %v2980 = vmul.f32 %v2941, %v2977
        %v2981 = vmul.f32 %v2942, %v2977
        %v2982 = vmul.f32 %v2943, %v2977
        %v2983 = vmul.f32 %v2944, %v2977
        %v2984 = vmul.f32 %v2945, %v2977
        %v2985 = vmul.f32 %v2946, %v2977
        %v2986 = vmul.f32 %v2947, %v2977
        %v2987 = vmul.f32 %v2948, %v2977
        %v2988 = vmul.f32 %v2949, %v2977
        %v2989 = vmul.f32 %v2950, %v2977
        %v2990 = vmul.f32 %v2951, %v2977
        %v2991 = vmul.f32 %v2952, %v2977
        %v2992 = vmul.f32 %v2953, %v2977
        %v2993 = vmul.f32 %v2954, %v2977
        %v2994 = vmul.f32 %v2955, %v2977
        %v2995 = vmul.f32 %v2956, %v2977
        %v2996 = vmul.f32 %v2957, %v2977
        %v2997 = vmul.f32 %v2958, %v2977
        %v2998 = vmul.f32 %v2959, %v2977
        %v2999 = vmul.f32 %v2960, %v2977
        %v3000 = vmul.f32 %v2961, %v2977
        %v3001 = vmul.f32 %v2962, %v2977
        %v3002 = vmul.f32 %v2963, %v2977
        %v3003 = vmul.f32 %v2964, %v2977
        %v3004 = vmul.f32 %v2965, %v2977
        %v3005 = vmul.f32 %v2966, %v2977
        %v3006 = vmul.f32 %v2967, %v2977
        %v3007 = vmul.f32 %v2968, %v2977
        %v3008 = vmul.f32 %v2969, %v2977
        %v3009 = vmul.f32 %v2970, %v2977
        %v3010 = vmul.f32 %v2971, %v2977
        %v3011 = vld [vmem:[%s3] sm:$0x1]
        %v3013 = vlaneseq
        %v3014 = vshrl.u32 %v3013, 7
        %v3015 = vsub.s32 0, %v3014
        %v3016 = vrot.slane %v3011, %v3015
        %v3018 = vadd.f32 %v2979, %v3016
        %v3019 = vadd.f32 %v2980, %v3016
        %v3020 = vadd.f32 %v2981, %v3016
        %v3021 = vadd.f32 %v2982, %v3016
        %v3022 = vadd.f32 %v2983, %v3016
        %v3023 = vadd.f32 %v2984, %v3016
        %v3024 = vadd.f32 %v2985, %v3016
        %v3025 = vadd.f32 %v2986, %v3016
        %v3026 = vadd.f32 %v2987, %v3016
        %v3027 = vadd.f32 %v2988, %v3016
        %v3028 = vadd.f32 %v2989, %v3016
        %v3029 = vadd.f32 %v2990, %v3016
        %v3030 = vadd.f32 %v2991, %v3016
        %v3031 = vadd.f32 %v2992, %v3016
        %v3032 = vadd.f32 %v2993, %v3016
        %v3033 = vadd.f32 %v2994, %v3016
        %v3034 = vadd.f32 %v2995, %v3016
        %v3035 = vadd.f32 %v2996, %v3016
        %v3036 = vadd.f32 %v2997, %v3016
        %v3037 = vadd.f32 %v2998, %v3016
        %v3038 = vadd.f32 %v2999, %v3016
        %v3039 = vadd.f32 %v3000, %v3016
        %v3040 = vadd.f32 %v3001, %v3016
        %v3041 = vadd.f32 %v3002, %v3016
        %v3042 = vadd.f32 %v3003, %v3016
        %v3043 = vadd.f32 %v3004, %v3016
        %v3044 = vadd.f32 %v3005, %v3016
        %v3045 = vadd.f32 %v3006, %v3016
        %v3046 = vadd.f32 %v3007, %v3016
        %v3047 = vadd.f32 %v3008, %v3016
        %v3048 = vadd.f32 %v3009, %v3016
        %v3049 = vadd.f32 %v3010, %v3016
        %v3050 = vmax.f32 %v3018, 0.0
        %v3051 = vmax.f32 %v3019, 0.0
        %v3052 = vmax.f32 %v3020, 0.0
        %v3053 = vmax.f32 %v3021, 0.0
        %v3054 = vmax.f32 %v3022, 0.0
        %v3055 = vmax.f32 %v3023, 0.0
        %v3056 = vmax.f32 %v3024, 0.0
        %v3057 = vmax.f32 %v3025, 0.0
        %v3058 = vmax.f32 %v3026, 0.0
        %v3059 = vmax.f32 %v3027, 0.0
        %v3060 = vmax.f32 %v3028, 0.0
        %v3061 = vmax.f32 %v3029, 0.0
        %v3062 = vmax.f32 %v3030, 0.0
        %v3063 = vmax.f32 %v3031, 0.0
        %v3064 = vmax.f32 %v3032, 0.0
        %v3065 = vmax.f32 %v3033, 0.0
        %v3066 = vmax.f32 %v3034, 0.0
        %v3067 = vmax.f32 %v3035, 0.0
        %v3068 = vmax.f32 %v3036, 0.0
        %v3069 = vmax.f32 %v3037, 0.0
        %v3070 = vmax.f32 %v3038, 0.0
        %v3071 = vmax.f32 %v3039, 0.0
        %v3072 = vmax.f32 %v3040, 0.0
        %v3073 = vmax.f32 %v3041, 0.0
        %v3074 = vmax.f32 %v3042, 0.0
        %v3075 = vmax.f32 %v3043, 0.0
        %v3076 = vmax.f32 %v3044, 0.0
        %v3077 = vmax.f32 %v3045, 0.0
        %v3078 = vmax.f32 %v3046, 0.0
        %v3079 = vmax.f32 %v3047, 0.0
        %v3080 = vmax.f32 %v3048, 0.0
        %v3081 = vmax.f32 %v3049, 0.0
        %v3082 = vmax.f32 %v3050, %v3052
        %v3083 = vmax.f32 %v3051, %v3053
        %v3084 = vmax.f32 %v3054, %v3056
        %v3085 = vmax.f32 %v3055, %v3057
        %v3086 = vmax.f32 %v3058, %v3060
        %v3087 = vmax.f32 %v3059, %v3061
        %v3088 = vmax.f32 %v3062, %v3064
        %v3089 = vmax.f32 %v3063, %v3065
        %v3090 = vmax.f32 %v3066, %v3068
        %v3091 = vmax.f32 %v3067, %v3069
        %v3092 = vmax.f32 %v3070, %v3072
        %v3093 = vmax.f32 %v3071, %v3073
        %v3094 = vmax.f32 %v3074, %v3076
        %v3095 = vmax.f32 %v3075, %v3077
        %v3096 = vmax.f32 %v3078, %v3080
        %v3097 = vmax.f32 %v3079, %v3081
        %vm3098 = vcmask 130048
        %3099 = vst.msk [vmem:[#allocation3] sm:$0xff] %vm3098, %v3082
        %3100 = vst.msk [vmem:[#allocation3 + $0x8] sm:$0xff] %vm3098, %v3083
        %3101 = vst.msk [vmem:[#allocation3 + $0x10] sm:$0xff] %vm3098, %v3084
        %3102 = vst.msk [vmem:[#allocation3 + $0x18] sm:$0xff] %vm3098, %v3085
        %3103 = vst.msk [vmem:[#allocation3 + $0x20] sm:$0xff] %vm3098, %v3086
        %3104 = vst.msk [vmem:[#allocation3 + $0x28] sm:$0xff] %vm3098, %v3087
        %3105 = vst.msk [vmem:[#allocation3 + $0x30] sm:$0xff] %vm3098, %v3088
        %3106 = vst.msk [vmem:[#allocation3 + $0x38] sm:$0xff] %vm3098, %v3089
        %3107 = vst.msk [vmem:[#allocation3 + $0x40] sm:$0xff] %vm3098, %v3090
        %3108 = vst.msk [vmem:[#allocation3 + $0x48] sm:$0xff] %vm3098, %v3091
        %3109 = vst.msk [vmem:[#allocation3 + $0x50] sm:$0xff] %vm3098, %v3092
        %3110 = vst.msk [vmem:[#allocation3 + $0x58] sm:$0xff] %vm3098, %v3093
        %3111 = vst.msk [vmem:[#allocation3 + $0x60] sm:$0xff] %vm3098, %v3094
        %3112 = vst.msk [vmem:[#allocation3 + $0x68] sm:$0xff] %vm3098, %v3095
        %3113 = vst.msk [vmem:[#allocation3 + $0x70] sm:$0xff] %vm3098, %v3096
        %3114 = vst.msk [vmem:[#allocation3 + $0x78] sm:$0xff] %vm3098, %v3097
        %v3115 = vld [vmem:[#allocation3] ss:$2 sm:$0xff]
        %s3116 = scalar_lea.vmem [#allocation3], 16
        %v3117 = vld [vmem:[%s3116] ss:$2 sm:$0xff]
        %s3118 = scalar_lea.vmem [#allocation3], 32
        %v3119 = vld [vmem:[%s3118] ss:$2 sm:$0xff]
        %s3120 = scalar_lea.vmem [#allocation3], 48
        %v3121 = vld [vmem:[%s3120] ss:$2 sm:$0xff]
        %s3122 = scalar_lea.vmem [#allocation3], 64
        %v3123 = vld [vmem:[%s3122] ss:$2 sm:$0xff]
        %s3124 = scalar_lea.vmem [#allocation3], 80
        %v3125 = vld [vmem:[%s3124] ss:$2 sm:$0xff]
        %s3126 = scalar_lea.vmem [#allocation3], 96
        %v3127 = vld [vmem:[%s3126] ss:$2 sm:$0xff]
        %s3128 = scalar_lea.vmem [#allocation3], 112
        %v3129 = vld [vmem:[%s3128] ss:$2 sm:$0xff]
        %s3130 = scalar_lea.vmem [#allocation3], 1
        %v3131 = vld [vmem:[%s3130] ss:$2 sm:$0xff]
        %s3132 = scalar_lea.vmem [#allocation3], 17
        %v3133 = vld [vmem:[%s3132] ss:$2 sm:$0xff]
        %s3134 = scalar_lea.vmem [#allocation3], 33
        %v3135 = vld [vmem:[%s3134] ss:$2 sm:$0xff]
        %s3136 = scalar_lea.vmem [#allocation3], 49
        %v3137 = vld [vmem:[%s3136] ss:$2 sm:$0xff]
        %s3138 = scalar_lea.vmem [#allocation3], 65
        %v3139 = vld [vmem:[%s3138] ss:$2 sm:$0xff]
        %s3140 = scalar_lea.vmem [#allocation3], 81
        %v3141 = vld [vmem:[%s3140] ss:$2 sm:$0xff]
        %s3142 = scalar_lea.vmem [#allocation3], 97
        %v3143 = vld [vmem:[%s3142] ss:$2 sm:$0xff]
        %s3144 = scalar_lea.vmem [#allocation3], 113
        %v3145 = vld [vmem:[%s3144] ss:$2 sm:$0xff]
        %v3146 = vmax.f32 %v3115, %v3131
        %v3147 = vmax.f32 %v3117, %v3133
        %v3148 = vmax.f32 %v3119, %v3135
        %v3149 = vmax.f32 %v3121, %v3137
        %v3150 = vmax.f32 %v3123, %v3139
        %v3151 = vmax.f32 %v3125, %v3141
        %v3152 = vmax.f32 %v3127, %v3143
        %v3153 = vmax.f32 %v3129, %v3145
        %3154 = vst.msk [vmem:[#allocation4] sm:$0xff] %vm3098, 0.0
        %vm3155 = vcmask 123904
        %3156 = vst.msk [vmem:[#allocation4 + $0x8] sm:$0x3] %vm3155, 0.0
        %s3157 = scalar_lea.vmem [#allocation4], 144
        %3158 = vst.msk [vmem:[%s3157] sm:$0xff] %vm3098, 0.0
        %3159 = vst.msk [vmem:[%s3157 + $0x8] sm:$0x3] %vm3155, 0.0
        %vm3160 = vcmask 122880
        %3161 = vst.msk [vmem:[#allocation4] sm:$0x1] %vm3160, 0.0
        %3162 = vst.msk [vmem:[#allocation4 + $0x10] sm:$0x1] %vm3160, 0.0
        %3163 = vst.msk [vmem:[#allocation4 + $0x20] sm:$0x1] %vm3160, 0.0
        %3164 = vst.msk [vmem:[#allocation4 + $0x30] sm:$0x1] %vm3160, 0.0
        %3165 = vst.msk [vmem:[#allocation4 + $0x40] sm:$0x1] %vm3160, 0.0
        %3166 = vst.msk [vmem:[#allocation4 + $0x50] sm:$0x1] %vm3160, 0.0
        %3167 = vst.msk [vmem:[#allocation4 + $0x60] sm:$0x1] %vm3160, 0.0
        %3168 = vst.msk [vmem:[#allocation4 + $0x70] sm:$0x1] %vm3160, 0.0
        %3169 = vst.msk [vmem:[#allocation4 + $0x80] sm:$0x1] %vm3160, 0.0
        %3170 = vst.msk [vmem:[#allocation4 + $0x90] sm:$0x1] %vm3160, 0.0
        %3171 = vst.msk [vmem:[#allocation4 + $0x9] sm:$0x1] %vm3160, 0.0
        %3172 = vst.msk [vmem:[#allocation4 + $0x19] sm:$0x1] %vm3160, 0.0
        %3173 = vst.msk [vmem:[#allocation4 + $0x29] sm:$0x1] %vm3160, 0.0
        %3174 = vst.msk [vmem:[#allocation4 + $0x39] sm:$0x1] %vm3160, 0.0
        %3175 = vst.msk [vmem:[#allocation4 + $0x49] sm:$0x1] %vm3160, 0.0
        %3176 = vst.msk [vmem:[#allocation4 + $0x59] sm:$0x1] %vm3160, 0.0
        %3177 = vst.msk [vmem:[#allocation4 + $0x69] sm:$0x1] %vm3160, 0.0
        %3178 = vst.msk [vmem:[#allocation4 + $0x79] sm:$0x1] %vm3160, 0.0
        %3179 = vst.msk [vmem:[#allocation4 + $0x89] sm:$0x1] %vm3160, 0.0
        %3180 = vst.msk [vmem:[#allocation4 + $0x99] sm:$0x1] %vm3160, 0.0
        %s3181 = scalar_lea.vmem [#allocation4], 16
        %3182 = vst.msk [vmem:[%s3181 + $0x1] sm:$0xff] %vm3098, %v3146
        %3183 = vst.msk [vmem:[%s3181 + $0x11] sm:$0xff] %vm3098, %v3147
        %3184 = vst.msk [vmem:[%s3181 + $0x21] sm:$0xff] %vm3098, %v3148
        %3185 = vst.msk [vmem:[%s3181 + $0x31] sm:$0xff] %vm3098, %v3149
        %3186 = vst.msk [vmem:[%s3181 + $0x41] sm:$0xff] %vm3098, %v3150
        %3187 = vst.msk [vmem:[%s3181 + $0x51] sm:$0xff] %vm3098, %v3151
        %3188 = vst.msk [vmem:[%s3181 + $0x61] sm:$0xff] %vm3098, %v3152
        %3189 = vst.msk [vmem:[%s3181 + $0x71] sm:$0xff] %vm3098, %v3153
        %v3190 = vld [vmem:[#allocation4] sm:$0xff]
        %v3191 = vld [vmem:[#allocation4 + $0x10] sm:$0xff]
        %v3192 = vld [vmem:[#allocation4 + $0x20] sm:$0xff]
        %v3193 = vld [vmem:[#allocation4 + $0x30] sm:$0xff]
        %v3194 = vld [vmem:[#allocation4 + $0x40] sm:$0xff]
        %v3195 = vld [vmem:[#allocation4 + $0x50] sm:$0xff]
        %v3196 = vld [vmem:[#allocation4 + $0x60] sm:$0xff]
        %v3197 = vld [vmem:[#allocation4 + $0x70] sm:$0xff]
        %v3198 = vpack.c.bf16 %v3191, %v3190
        %v3199 = vpack.c.bf16 %v3193, %v3192
        %v3200 = vpack.c.bf16 %v3195, %v3194
        %v3201 = vpack.c.bf16 %v3197, %v3196
        %v3202 = vld [vmem:[%s4] sm:$0xf]
        %v3203 = vld [vmem:[%s4 + $0x4] sm:$0xf]
        %v3204 = vld [vmem:[#allocation4 + $0x1] sm:$0xff]
        %v3205 = vld [vmem:[#allocation4 + $0x11] sm:$0xff]
        %v3206 = vld [vmem:[#allocation4 + $0x21] sm:$0xff]
        %v3207 = vld [vmem:[#allocation4 + $0x31] sm:$0xff]
        %v3208 = vld [vmem:[#allocation4 + $0x41] sm:$0xff]
        %v3209 = vld [vmem:[#allocation4 + $0x51] sm:$0xff]
        %v3210 = vld [vmem:[#allocation4 + $0x61] sm:$0xff]
        %v3211 = vld [vmem:[#allocation4 + $0x71] sm:$0xff]
        %v3212 = vpack.c.bf16 %v3205, %v3204
        %v3213 = vpack.c.bf16 %v3207, %v3206
        %v3214 = vpack.c.bf16 %v3209, %v3208
        %v3215 = vpack.c.bf16 %v3211, %v3210
        %s3216 = scalar_lea.vmem %s4, 8
        %v3217 = vld [vmem:[%s3216] sm:$0xf]
        %v3218 = vld [vmem:[%s3216 + $0x4] sm:$0xf]
        %v3221 = vunpack.c.l.b16 %v3217
        %v3222 = vunpack.c.l.b16 %v3218
        %v3223 = vpack.c.b16 %v3222, %v3221
        %v3226 = vsel %vm3098, %v3212, 0
        %v3229 = vsel %vm3098, %v3213, 0
        %v3232 = vsel %vm3098, %v3214, 0
        %v3235 = vsel %vm3098, %v3215, 0
        %3237 = vmatprep.subr.bf16.mxu0 0
        %3238 = vmatpush1.bf16.msra.mxu0 %v3223
        %3239 = vmatprep.subr.bf16.mxu0 0
        %3240 = vmatpush1.bf16.msra.mxu0 0
        %3241 = vmatprep.subr.bf16.mxu0 0
        %3242 = vmatpush1.bf16.msra.mxu0 0
        %3243 = vmatprep.subr.bf16.mxu0 0
        %3244 = vmatpush1.bf16.msra.mxu0 0
        %3245 = vmatprep.subr.bf16.mxu0 0
        %3246 = vmatpush1.bf16.msra.mxu0 0
        %3247 = vmatprep.subr.bf16.mxu0 0
        %3248 = vmatpush1.bf16.msra.mxu0 0
        %3249 = vmatprep.subr.bf16.mxu0 0
        %3250 = vmatpush1.bf16.msra.mxu0 0
        %3251 = vmatprep.subr.bf16.mxu0 0
        %3252 = vmatpush1.bf16.msra.mxu0 0
        %3253 = vmatprep.subr.bf16.mxu0 0
        %3254 = vmatpush1.bf16.msra.mxu0 0
        %3255 = vmatprep.subr.bf16.mxu0 0
        %3256 = vmatpush1.bf16.msra.mxu0 0
        %3257 = vmatprep.subr.bf16.mxu0 0
        %3258 = vmatpush1.bf16.msra.mxu0 0
        %3259 = vmatprep.subr.bf16.mxu0 0
        %3260 = vmatpush1.bf16.msra.mxu0 0
        %3261 = vmatprep.subr.bf16.mxu0 0
        %3262 = vmatpush1.bf16.msra.mxu0 0
        %3263 = vmatprep.subr.bf16.mxu0 0
        %3264 = vmatpush1.bf16.msra.mxu0 0
        %3265 = vmatprep.subr.bf16.mxu0 0
        %3266 = vmatpush1.bf16.msra.mxu0 0
        %3267 = vmatprep.subr.bf16.mxu0 0
        %3268 = vmatpush1.bf16.msra.mxu0 0
        %3269 = vmatprep.mubr.bf16.mxu0 0
        %3270 = vmatmul.mubr.bf16.gmra.mrb[0].mxu0 %v3226
        %v3271 = vpop.f32.mrb[0].mxu0
        %v3272 = vadd.f32 0.0, %v3271
        %v3273 = vpop.f32.mrb[0].mxu0
        %v3274 = vpop.f32.mrb[0].mxu0
        %v3275 = vadd.f32 0.0, %v3274
        %v3276 = vpop.f32.mrb[0].mxu0
        %3277 = vmatprep.mubr.bf16.mxu0 0
        %3278 = vmatmul.mubr.bf16.gmra.mrb[0].mxu0 %v3229
        %v3279 = vpop.f32.mrb[0].mxu0
        %v3280 = vadd.f32 0.0, %v3279
        %v3281 = vpop.f32.mrb[0].mxu0
        %v3282 = vpop.f32.mrb[0].mxu0
        %v3283 = vadd.f32 0.0, %v3282
        %v3284 = vpop.f32.mrb[0].mxu0
        %3285 = vmatprep.mubr.bf16.mxu0 0
        %3286 = vmatmul.mubr.bf16.gmra.mrb[0].mxu0 %v3232
        %v3287 = vpop.f32.mrb[0].mxu0
        %v3288 = vadd.f32 0.0, %v3287
        %v3289 = vpop.f32.mrb[0].mxu0
        %v3290 = vpop.f32.mrb[0].mxu0
        %v3291 = vadd.f32 0.0, %v3290
        %v3292 = vpop.f32.mrb[0].mxu0
        %3293 = vmatprep.mubr.bf16.mxu0 0
        %3294 = vmatmul.mubr.bf16.gmra.mrb[0].mxu0 %v3235
        %v3295 = vpop.f32.mrb[0].mxu0
        %v3296 = vadd.f32 0.0, %v3295
        %v3297 = vpop.f32.mrb[0].mxu0
        %v3298 = vpop.f32.mrb[0].mxu0
        %v3299 = vadd.f32 0.0, %v3298
        %v3300 = vpop.f32.mrb[0].mxu0
        %3301 = vdwg.mxu0
        %v3304 = vunpack.c.l.b16 %v3202
        %v3305 = vunpack.c.l.b16 %v3203
        %v3306 = vpack.c.b16 %v3305, %v3304
        %v3309 = vsel %vm3098, %v3198, 0
        %v3312 = vsel %vm3098, %v3199, 0
        %v3315 = vsel %vm3098, %v3200, 0
        %v3318 = vsel %vm3098, %v3201, 0
        %3320 = vmatprep.subr.bf16.mxu0 0
        %3321 = vmatpush1.bf16.msra.mxu0 %v3306
        %3322 = vmatprep.subr.bf16.mxu0 0
        %3323 = vmatpush1.bf16.msra.mxu0 0
        %3324 = vmatprep.subr.bf16.mxu0 0
        %3325 = vmatpush1.bf16.msra.mxu0 0
        %3326 = vmatprep.subr.bf16.mxu0 0
        %3327 = vmatpush1.bf16.msra.mxu0 0
        %3328 = vmatprep.subr.bf16.mxu0 0
        %3329 = vmatpush1.bf16.msra.mxu0 0
        %3330 = vmatprep.subr.bf16.mxu0 0
        %3331 = vmatpush1.bf16.msra.mxu0 0
        %3332 = vmatprep.subr.bf16.mxu0 0
        %3333 = vmatpush1.bf16.msra.mxu0 0
        %3334 = vmatprep.subr.bf16.mxu0 0
        %3335 = vmatpush1.bf16.msra.mxu0 0
        %3336 = vmatprep.subr.bf16.mxu0 0
        %3337 = vmatpush1.bf16.msra.mxu0 0
        %3338 = vmatprep.subr.bf16.mxu0 0
        %3339 = vmatpush1.bf16.msra.mxu0 0
        %3340 = vmatprep.subr.bf16.mxu0 0
        %3341 = vmatpush1.bf16.msra.mxu0 0
        %3342 = vmatprep.subr.bf16.mxu0 0
        %3343 = vmatpush1.bf16.msra.mxu0 0
        %3344 = vmatprep.subr.bf16.mxu0 0
        %3345 = vmatpush1.bf16.msra.mxu0 0
        %3346 = vmatprep.subr.bf16.mxu0 0
        %3347 = vmatpush1.bf16.msra.mxu0 0
        %3348 = vmatprep.subr.bf16.mxu0 0
        %3349 = vmatpush1.bf16.msra.mxu0 0
        %3350 = vmatprep.subr.bf16.mxu0 0
        %3351 = vmatpush1.bf16.msra.mxu0 0
        %3352 = vmatprep.mubr.bf16.mxu0 0
        %3353 = vmatmul.mubr.bf16.gmra.mrb[0].mxu0 %v3309
        %v3354 = vpop.f32.mrb[0].mxu0
        %v3355 = vadd.f32 %v3272, %v3354
        %v3356 = vpop.f32.mrb[0].mxu0
        %v3357 = vpop.f32.mrb[0].mxu0
        %v3358 = vadd.f32 %v3275, %v3357
        %v3359 = vpop.f32.mrb[0].mxu0
        %3360 = vmatprep.mubr.bf16.mxu0 0
        %3361 = vmatmul.mubr.bf16.gmra.mrb[0].mxu0 %v3312
        %v3362 = vpop.f32.mrb[0].mxu0
        %v3363 = vadd.f32 %v3280, %v3362
        %v3364 = vpop.f32.mrb[0].mxu0
        %v3365 = vpop.f32.mrb[0].mxu0
        %v3366 = vadd.f32 %v3283, %v3365
        %v3367 = vpop.f32.mrb[0].mxu0
        %3368 = vmatprep.mubr.bf16.mxu0 0
        %3369 = vmatmul.mubr.bf16.gmra.mrb[0].mxu0 %v3315
        %v3370 = vpop.f32.mrb[0].mxu0
        %v3371 = vadd.f32 %v3288, %v3370
        %v3372 = vpop.f32.mrb[0].mxu0
        %v3373 = vpop.f32.mrb[0].mxu0
        %v3374 = vadd.f32 %v3291, %v3373
        %v3375 = vpop.f32.mrb[0].mxu0
        %3376 = vmatprep.mubr.bf16.mxu0 0
        %3377 = vmatmul.mubr.bf16.gmra.mrb[0].mxu0 %v3318
        %v3378 = vpop.f32.mrb[0].mxu0
        %v3379 = vadd.f32 %v3296, %v3378
        %v3380 = vpop.f32.mrb[0].mxu0
        %v3381 = vpop.f32.mrb[0].mxu0
        %v3382 = vadd.f32 %v3299, %v3381
        %v3383 = vpop.f32.mrb[0].mxu0
        %3384 = vdwg.mxu0
        %v3385 = vld [vmem:[#allocation4 + $0x2] sm:$0xff]
        %v3386 = vld [vmem:[#allocation4 + $0x12] sm:$0xff]
        %v3387 = vld [vmem:[#allocation4 + $0x22] sm:$0xff]
        %v3388 = vld [vmem:[#allocation4 + $0x32] sm:$0xff]
        %v3389 = vld [vmem:[#allocation4 + $0x42] sm:$0xff]
        %v3390 = vld [vmem:[#allocation4 + $0x52] sm:$0xff]
        %v3391 = vld [vmem:[#allocation4 + $0x62] sm:$0xff]
        %v3392 = vld [vmem:[#allocation4 + $0x72] sm:$0xff]
        %v3393 = vpack.c.bf16 %v3386, %v3385
        %v3394 = vpack.c.bf16 %v3388, %v3387
        %v3395 = vpack.c.bf16 %v3390, %v3389
        %v3396 = vpack.c.bf16 %v3392, %v3391
        %s3397 = scalar_lea.vmem %s4, 16
        %v3398 = vld [vmem:[%s3397] sm:$0xf]
        %v3399 = vld [vmem:[%s3397 + $0x4] sm:$0xf]
        %v3402 = vunpack.c.l.b16 %v3398
        %v3403 = vunpack.c.l.b16 %v3399
        %v3404 = vpack.c.b16 %v3403, %v3402
        %v3407 = vsel %vm3098, %v3393, 0
        %v3410 = vsel %vm3098, %v3394, 0
        %v3413 = vsel %vm3098, %v3395, 0
        %v3416 = vsel %vm3098, %v3396, 0
        %3418 = vmatprep.subr.bf16.mxu0 0
        %3419 = vmatpush1.bf16.msra.mxu0 %v3404
        %3420 = vmatprep.subr.bf16.mxu0 0
        %3421 = vmatpush1.bf16.msra.mxu0 0
        %3422 = vmatprep.subr.bf16.mxu0 0
        %3423 = vmatpush1.bf16.msra.mxu0 0
        %3424 = vmatprep.subr.bf16.mxu0 0
        %3425 = vmatpush1.bf16.msra.mxu0 0
        %3426 = vmatprep.subr.bf16.mxu0 0
        %3427 = vmatpush1.bf16.msra.mxu0 0
        %3428 = vmatprep.subr.bf16.mxu0 0
        %3429 = vmatpush1.bf16.msra.mxu0 0
        %3430 = vmatprep.subr.bf16.mxu0 0
        %3431 = vmatpush1.bf16.msra.mxu0 0
        %3432 = vmatprep.subr.bf16.mxu0 0
        %3433 = vmatpush1.bf16.msra.mxu0 0
        %3434 = vmatprep.subr.bf16.mxu0 0
        %3435 = vmatpush1.bf16.msra.mxu0 0
        %3436 = vmatprep.subr.bf16.mxu0 0
        %3437 = vmatpush1.bf16.msra.mxu0 0
        %3438 = vmatprep.subr.bf16.mxu0 0
        %3439 = vmatpush1.bf16.msra.mxu0 0
        %3440 = vmatprep.subr.bf16.mxu0 0
        %3441 = vmatpush1.bf16.msra.mxu0 0
        %3442 = vmatprep.subr.bf16.mxu0 0
        %3443 = vmatpush1.bf16.msra.mxu0 0
        %3444 = vmatprep.subr.bf16.mxu0 0
        %3445 = vmatpush1.bf16.msra.mxu0 0
        %3446 = vmatprep.subr.bf16.mxu0 0
        %3447 = vmatpush1.bf16.msra.mxu0 0
        %3448 = vmatprep.subr.bf16.mxu0 0
        %3449 = vmatpush1.bf16.msra.mxu0 0
        %3450 = vmatprep.mubr.bf16.mxu0 0
        %3451 = vmatmul.mubr.bf16.gmra.mrb[0].mxu0 %v3407
        %v3452 = vpop.f32.mrb[0].mxu0
        %v3453 = vadd.f32 0.0, %v3452
        %v3454 = vpop.f32.mrb[0].mxu0
        %v3455 = vpop.f32.mrb[0].mxu0
        %v3456 = vadd.f32 0.0, %v3455
        %v3457 = vpop.f32.mrb[0].mxu0
        %3458 = vmatprep.mubr.bf16.mxu0 0
        %3459 = vmatmul.mubr.bf16.gmra.mrb[0].mxu0 %v3410
        %v3460 = vpop.f32.mrb[0].mxu0
        %v3461 = vadd.f32 0.0, %v3460
        %v3462 = vpop.f32.mrb[0].mxu0
        %v3463 = vpop.f32.mrb[0].mxu0
        %v3464 = vadd.f32 0.0, %v3463
        %v3465 = vpop.f32.mrb[0].mxu0
        %3466 = vmatprep.mubr.bf16.mxu0 0
        %3467 = vmatmul.mubr.bf16.gmra.mrb[0].mxu0 %v3413
        %v3468 = vpop.f32.mrb[0].mxu0
        %v3469 = vadd.f32 0.0, %v3468
        %v3470 = vpop.f32.mrb[0].mxu0
        %v3471 = vpop.f32.mrb[0].mxu0
        %v3472 = vadd.f32 0.0, %v3471
        %v3473 = vpop.f32.mrb[0].mxu0
        %3474 = vmatprep.mubr.bf16.mxu0 0
        %3475 = vmatmul.mubr.bf16.gmra.mrb[0].mxu0 %v3416
        %v3476 = vpop.f32.mrb[0].mxu0
        %v3477 = vadd.f32 0.0, %v3476
        %v3478 = vpop.f32.mrb[0].mxu0
        %v3479 = vpop.f32.mrb[0].mxu0
        %v3480 = vadd.f32 0.0, %v3479
        %v3481 = vpop.f32.mrb[0].mxu0
        %3482 = vdwg.mxu0
        %v3483 = vadd.f32 %v3355, %v3453
        %v3484 = vadd.f32 %v3358, %v3456
        %v3485 = vadd.f32 %v3363, %v3461
        %v3486 = vadd.f32 %v3366, %v3464
        %v3487 = vadd.f32 %v3371, %v3469
        %v3488 = vadd.f32 %v3374, %v3472
        %v3489 = vadd.f32 %v3379, %v3477
        %v3490 = vadd.f32 %v3382, %v3480
        %v3491 = vld [vmem:[%s3181] sm:$0xff]
        %v3492 = vld [vmem:[%s3181 + $0x10] sm:$0xff]
        %v3493 = vld [vmem:[%s3181 + $0x20] sm:$0xff]
        %v3494 = vld [vmem:[%s3181 + $0x30] sm:$0xff]
        %v3495 = vld [vmem:[%s3181 + $0x40] sm:$0xff]
        %v3496 = vld [vmem:[%s3181 + $0x50] sm:$0xff]
        %v3497 = vld [vmem:[%s3181 + $0x60] sm:$0xff]
        %v3498 = vld [vmem:[%s3181 + $0x70] sm:$0xff]
        %v3499 = vpack.c.bf16 %v3492, %v3491
        %v3500 = vpack.c.bf16 %v3494, %v3493
        %v3501 = vpack.c.bf16 %v3496, %v3495
        %v3502 = vpack.c.bf16 %v3498, %v3497
        %s3503 = scalar_lea.vmem %s4, 24
        %v3504 = vld [vmem:[%s3503] sm:$0xf]
        %v3505 = vld [vmem:[%s3503 + $0x4] sm:$0xf]
        %v3508 = vunpack.c.l.b16 %v3504
        %v3509 = vunpack.c.l.b16 %v3505
        %v3510 = vpack.c.b16 %v3509, %v3508
        %v3513 = vsel %vm3098, %v3499, 0
        %v3516 = vsel %vm3098, %v3500, 0
        %v3519 = vsel %vm3098, %v3501, 0
        %v3522 = vsel %vm3098, %v3502, 0
        %3524 = vmatprep.subr.bf16.mxu0 0
        %3525 = vmatpush1.bf16.msra.mxu0 %v3510
        %3526 = vmatprep.subr.bf16.mxu0 0
        %3527 = vmatpush1.bf16.msra.mxu0 0
        %3528 = vmatprep.subr.bf16.mxu0 0
        %3529 = vmatpush1.bf16.msra.mxu0 0
        %3530 = vmatprep.subr.bf16.mxu0 0
        %3531 = vmatpush1.bf16.msra.mxu0 0
        %3532 = vmatprep.subr.bf16.mxu0 0
        %3533 = vmatpush1.bf16.msra.mxu0 0
        %3534 = vmatprep.subr.bf16.mxu0 0
        %3535 = vmatpush1.bf16.msra.mxu0 0
        %3536 = vmatprep.subr.bf16.mxu0 0
        %3537 = vmatpush1.bf16.msra.mxu0 0
        %3538 = vmatprep.subr.bf16.mxu0 0
        %3539 = vmatpush1.bf16.msra.mxu0 0
        %3540 = vmatprep.subr.bf16.mxu0 0
        %3541 = vmatpush1.bf16.msra.mxu0 0
        %3542 = vmatprep.subr.bf16.mxu0 0
        %3543 = vmatpush1.bf16.msra.mxu0 0
        %3544 = vmatprep.subr.bf16.mxu0 0
        %3545 = vmatpush1.bf16.msra.mxu0 0
        %3546 = vmatprep.subr.bf16.mxu0 0
        %3547 = vmatpush1.bf16.msra.mxu0 0
        %3548 = vmatprep.subr.bf16.mxu0 0
        %3549 = vmatpush1.bf16.msra.mxu0 0
        %3550 = vmatprep.subr.bf16.mxu0 0
        %3551 = vmatpush1.bf16.msra.mxu0 0
        %3552 = vmatprep.subr.bf16.mxu0 0
        %3553 = vmatpush1.bf16.msra.mxu0 0
        %3554 = vmatprep.subr.bf16.mxu0 0
        %3555 = vmatpush1.bf16.msra.mxu0 0
        %3556 = vmatprep.mubr.bf16.mxu0 0
        %3557 = vmatmul.mubr.bf16.gmra.mrb[0].mxu0 %v3513
        %v3558 = vpop.f32.mrb[0].mxu0
        %v3559 = vadd.f32 0.0, %v3558
        %v3560 = vpop.f32.mrb[0].mxu0
        %v3561 = vpop.f32.mrb[0].mxu0
        %v3562 = vadd.f32 0.0, %v3561
        %v3563 = vpop.f32.mrb[0].mxu0
        %3564 = vmatprep.mubr.bf16.mxu0 0
        %3565 = vmatmul.mubr.bf16.gmra.mrb[0].mxu0 %v3516
        %v3566 = vpop.f32.mrb[0].mxu0
        %v3567 = vadd.f32 0.0, %v3566
        %v3568 = vpop.f32.mrb[0].mxu0
        %v3569 = vpop.f32.mrb[0].mxu0
        %v3570 = vadd.f32 0.0, %v3569
        %v3571 = vpop.f32.mrb[0].mxu0
        %3572 = vmatprep.mubr.bf16.mxu0 0
        %3573 = vmatmul.mubr.bf16.gmra.mrb[0].mxu0 %v3519
        %v3574 = vpop.f32.mrb[0].mxu0
        %v3575 = vadd.f32 0.0, %v3574
        %v3576 = vpop.f32.mrb[0].mxu0
        %v3577 = vpop.f32.mrb[0].mxu0
        %v3578 = vadd.f32 0.0, %v3577
        %v3579 = vpop.f32.mrb[0].mxu0
        %3580 = vmatprep.mubr.bf16.mxu0 0
        %3581 = vmatmul.mubr.bf16.gmra.mrb[0].mxu0 %v3522
        %v3582 = vpop.f32.mrb[0].mxu0
        %v3583 = vadd.f32 0.0, %v3582
        %v3584 = vpop.f32.mrb[0].mxu0
        %v3585 = vpop.f32.mrb[0].mxu0
        %v3586 = vadd.f32 0.0, %v3585
        %v3587 = vpop.f32.mrb[0].mxu0
        %3588 = vdwg.mxu0
        %v3589 = vadd.f32 %v3483, %v3559
        %v3590 = vadd.f32 %v3484, %v3562
        %v3591 = vadd.f32 %v3485, %v3567
        %v3592 = vadd.f32 %v3486, %v3570
        %v3593 = vadd.f32 %v3487, %v3575
        %v3594 = vadd.f32 %v3488, %v3578
        %v3595 = vadd.f32 %v3489, %v3583
        %v3596 = vadd.f32 %v3490, %v3586
        %v3597 = vld [vmem:[%s3181 + $0x1] sm:$0xff]
        %v3598 = vld [vmem:[%s3181 + $0x11] sm:$0xff]
        %v3599 = vld [vmem:[%s3181 + $0x21] sm:$0xff]
        %v3600 = vld [vmem:[%s3181 + $0x31] sm:$0xff]
        %v3601 = vld [vmem:[%s3181 + $0x41] sm:$0xff]
        %v3602 = vld [vmem:[%s3181 + $0x51] sm:$0xff]
        %v3603 = vld [vmem:[%s3181 + $0x61] sm:$0xff]
        %v3604 = vld [vmem:[%s3181 + $0x71] sm:$0xff]
        %v3605 = vpack.c.bf16 %v3598, %v3597
        %v3606 = vpack.c.bf16 %v3600, %v3599
        %v3607 = vpack.c.bf16 %v3602, %v3601
        %v3608 = vpack.c.bf16 %v3604, %v3603
        %s3609 = scalar_lea.vmem %s4, 32
        %v3610 = vld [vmem:[%s3609] sm:$0xf]
        %v3611 = vld [vmem:[%s3609 + $0x4] sm:$0xf]
        %v3614 = vunpack.c.l.b16 %v3610
        %v3615 = vunpack.c.l.b16 %v3611
        %v3616 = vpack.c.b16 %v3615, %v3614
        %v3619 = vsel %vm3098, %v3605, 0
        %v3622 = vsel %vm3098, %v3606, 0
        %v3625 = vsel %vm3098, %v3607, 0
        %v3628 = vsel %vm3098, %v3608, 0
        %3630 = vmatprep.subr.bf16.mxu0 0
        %3631 = vmatpush1.bf16.msra.mxu0 %v3616
        %3632 = vmatprep.subr.bf16.mxu0 0
        %3633 = vmatpush1.bf16.msra.mxu0 0
        %3634 = vmatprep.subr.bf16.mxu0 0
        %3635 = vmatpush1.bf16.msra.mxu0 0
        %3636 = vmatprep.subr.bf16.mxu0 0
        %3637 = vmatpush1.bf16.msra.mxu0 0
        %3638 = vmatprep.subr.bf16.mxu0 0
        %3639 = vmatpush1.bf16.msra.mxu0 0
        %3640 = vmatprep.subr.bf16.mxu0 0
        %3641 = vmatpush1.bf16.msra.mxu0 0
        %3642 = vmatprep.subr.bf16.mxu0 0
        %3643 = vmatpush1.bf16.msra.mxu0 0
        %3644 = vmatprep.subr.bf16.mxu0 0
        %3645 = vmatpush1.bf16.msra.mxu0 0
        %3646 = vmatprep.subr.bf16.mxu0 0
        %3647 = vmatpush1.bf16.msra.mxu0 0
        %3648 = vmatprep.subr.bf16.mxu0 0
        %3649 = vmatpush1.bf16.msra.mxu0 0
        %3650 = vmatprep.subr.bf16.mxu0 0
        %3651 = vmatpush1.bf16.msra.mxu0 0
        %3652 = vmatprep.subr.bf16.mxu0 0
        %3653 = vmatpush1.bf16.msra.mxu0 0
        %3654 = vmatprep.subr.bf16.mxu0 0
        %3655 = vmatpush1.bf16.msra.mxu0 0
        %3656 = vmatprep.subr.bf16.mxu0 0
        %3657 = vmatpush1.bf16.msra.mxu0 0
        %3658 = vmatprep.subr.bf16.mxu0 0
        %3659 = vmatpush1.bf16.msra.mxu0 0
        %3660 = vmatprep.subr.bf16.mxu0 0
        %3661 = vmatpush1.bf16.msra.mxu0 0
        %3662 = vmatprep.mubr.bf16.mxu0 0
        %3663 = vmatmul.mubr.bf16.gmra.mrb[0].mxu0 %v3619
        %v3664 = vpop.f32.mrb[0].mxu0
        %v3665 = vadd.f32 0.0, %v3664
        %v3666 = vpop.f32.mrb[0].mxu0
        %v3667 = vpop.f32.mrb[0].mxu0
        %v3668 = vadd.f32 0.0, %v3667
        %v3669 = vpop.f32.mrb[0].mxu0
        %3670 = vmatprep.mubr.bf16.mxu0 0
        %3671 = vmatmul.mubr.bf16.gmra.mrb[0].mxu0 %v3622
        %v3672 = vpop.f32.mrb[0].mxu0
        %v3673 = vadd.f32 0.0, %v3672
        %v3674 = vpop.f32.mrb[0].mxu0
        %v3675 = vpop.f32.mrb[0].mxu0
        %v3676 = vadd.f32 0.0, %v3675
        %v3677 = vpop.f32.mrb[0].mxu0
        %3678 = vmatprep.mubr.bf16.mxu0 0
        %3679 = vmatmul.mubr.bf16.gmra.mrb[0].mxu0 %v3625
        %v3680 = vpop.f32.mrb[0].mxu0
        %v3681 = vadd.f32 0.0, %v3680
        %v3682 = vpop.f32.mrb[0].mxu0
        %v3683 = vpop.f32.mrb[0].mxu0
        %v3684 = vadd.f32 0.0, %v3683
        %v3685 = vpop.f32.mrb[0].mxu0
        %3686 = vmatprep.mubr.bf16.mxu0 0
        %3687 = vmatmul.mubr.bf16.gmra.mrb[0].mxu0 %v3628
        %v3688 = vpop.f32.mrb[0].mxu0
        %v3689 = vadd.f32 0.0, %v3688
        %v3690 = vpop.f32.mrb[0].mxu0
        %v3691 = vpop.f32.mrb[0].mxu0
        %v3692 = vadd.f32 0.0, %v3691
        %v3693 = vpop.f32.mrb[0].mxu0
        %3694 = vdwg.mxu0
        %v3695 = vadd.f32 %v3589, %v3665
        %v3696 = vadd.f32 %v3590, %v3668
        %v3697 = vadd.f32 %v3591, %v3673
        %v3698 = vadd.f32 %v3592, %v3676
        %v3699 = vadd.f32 %v3593, %v3681
        %v3700 = vadd.f32 %v3594, %v3684
        %v3701 = vadd.f32 %v3595, %v3689
        %v3702 = vadd.f32 %v3596, %v3692
        %v3703 = vld [vmem:[%s3181 + $0x2] sm:$0xff]
        %v3704 = vld [vmem:[%s3181 + $0x12] sm:$0xff]
        %v3705 = vld [vmem:[%s3181 + $0x22] sm:$0xff]
        %v3706 = vld [vmem:[%s3181 + $0x32] sm:$0xff]
        %v3707 = vld [vmem:[%s3181 + $0x42] sm:$0xff]
        %v3708 = vld [vmem:[%s3181 + $0x52] sm:$0xff]
        %v3709 = vld [vmem:[%s3181 + $0x62] sm:$0xff]
        %v3710 = vld [vmem:[%s3181 + $0x72] sm:$0xff]
        %v3711 = vpack.c.bf16 %v3704, %v3703
        %v3712 = vpack.c.bf16 %v3706, %v3705
        %v3713 = vpack.c.bf16 %v3708, %v3707
        %v3714 = vpack.c.bf16 %v3710, %v3709
        %s3715 = scalar_lea.vmem %s4, 40
        %v3716 = vld [vmem:[%s3715] sm:$0xf]
        %v3717 = vld [vmem:[%s3715 + $0x4] sm:$0xf]
        %v3720 = vunpack.c.l.b16 %v3716
        %v3721 = vunpack.c.l.b16 %v3717
        %v3722 = vpack.c.b16 %v3721, %v3720
        %v3725 = vsel %vm3098, %v3711, 0
        %v3728 = vsel %vm3098, %v3712, 0
        %v3731 = vsel %vm3098, %v3713, 0
        %v3734 = vsel %vm3098, %v3714, 0
        %3736 = vmatprep.subr.bf16.mxu0 0
        %3737 = vmatpush1.bf16.msra.mxu0 %v3722
        %3738 = vmatprep.subr.bf16.mxu0 0
        %3739 = vmatpush1.bf16.msra.mxu0 0
        %3740 = vmatprep.subr.bf16.mxu0 0
        %3741 = vmatpush1.bf16.msra.mxu0 0
        %3742 = vmatprep.subr.bf16.mxu0 0
        %3743 = vmatpush1.bf16.msra.mxu0 0
        %3744 = vmatprep.subr.bf16.mxu0 0
        %3745 = vmatpush1.bf16.msra.mxu0 0
        %3746 = vmatprep.subr.bf16.mxu0 0
        %3747 = vmatpush1.bf16.msra.mxu0 0
        %3748 = vmatprep.subr.bf16.mxu0 0
        %3749 = vmatpush1.bf16.msra.mxu0 0
        %3750 = vmatprep.subr.bf16.mxu0 0
        %3751 = vmatpush1.bf16.msra.mxu0 0
        %3752 = vmatprep.subr.bf16.mxu0 0
        %3753 = vmatpush1.bf16.msra.mxu0 0
        %3754 = vmatprep.subr.bf16.mxu0 0
        %3755 = vmatpush1.bf16.msra.mxu0 0
        %3756 = vmatprep.subr.bf16.mxu0 0
        %3757 = vmatpush1.bf16.msra.mxu0 0
        %3758 = vmatprep.subr.bf16.mxu0 0
        %3759 = vmatpush1.bf16.msra.mxu0 0
        %3760 = vmatprep.subr.bf16.mxu0 0
        %3761 = vmatpush1.bf16.msra.mxu0 0
        %3762 = vmatprep.subr.bf16.mxu0 0
        %3763 = vmatpush1.bf16.msra.mxu0 0
        %3764 = vmatprep.subr.bf16.mxu0 0
        %3765 = vmatpush1.bf16.msra.mxu0 0
        %3766 = vmatprep.subr.bf16.mxu0 0
        %3767 = vmatpush1.bf16.msra.mxu0 0
        %3768 = vmatprep.mubr.bf16.mxu0 0
        %3769 = vmatmul.mubr.bf16.gmra.mrb[0].mxu0 %v3725
        %v3770 = vpop.f32.mrb[0].mxu0
        %v3771 = vadd.f32 0.0, %v3770
        %v3772 = vpop.f32.mrb[0].mxu0
        %v3773 = vpop.f32.mrb[0].mxu0
        %v3774 = vadd.f32 0.0, %v3773
        %v3775 = vpop.f32.mrb[0].mxu0
        %3776 = vmatprep.mubr.bf16.mxu0 0
        %3777 = vmatmul.mubr.bf16.gmra.mrb[0].mxu0 %v3728
        %v3778 = vpop.f32.mrb[0].mxu0
        %v3779 = vadd.f32 0.0, %v3778
        %v3780 = vpop.f32.mrb[0].mxu0
        %v3781 = vpop.f32.mrb[0].mxu0
        %v3782 = vadd.f32 0.0, %v3781
        %v3783 = vpop.f32.mrb[0].mxu0
        %3784 = vmatprep.mubr.bf16.mxu0 0
        %3785 = vmatmul.mubr.bf16.gmra.mrb[0].mxu0 %v3731
        %v3786 = vpop.f32.mrb[0].mxu0
        %v3787 = vadd.f32 0.0, %v3786
        %v3788 = vpop.f32.mrb[0].mxu0
        %v3789 = vpop.f32.mrb[0].mxu0
        %v3790 = vadd.f32 0.0, %v3789
        %v3791 = vpop.f32.mrb[0].mxu0
        %3792 = vmatprep.mubr.bf16.mxu0 0
        %3793 = vmatmul.mubr.bf16.gmra.mrb[0].mxu0 %v3734
        %v3794 = vpop.f32.mrb[0].mxu0
        %v3795 = vadd.f32 0.0, %v3794
        %v3796 = vpop.f32.mrb[0].mxu0
        %v3797 = vpop.f32.mrb[0].mxu0
        %v3798 = vadd.f32 0.0, %v3797
        %v3799 = vpop.f32.mrb[0].mxu0
        %3800 = vdwg.mxu0
        %v3801 = vadd.f32 %v3695, %v3771
        %v3802 = vadd.f32 %v3696, %v3774
        %v3803 = vadd.f32 %v3697, %v3779
        %v3804 = vadd.f32 %v3698, %v3782
        %v3805 = vadd.f32 %v3699, %v3787
        %v3806 = vadd.f32 %v3700, %v3790
        %v3807 = vadd.f32 %v3701, %v3795
        %v3808 = vadd.f32 %v3702, %v3798
        %s3809 = scalar_lea.vmem [#allocation4], 32
        %v3810 = vld [vmem:[%s3809] sm:$0xff]
        %v3811 = vld [vmem:[%s3809 + $0x10] sm:$0xff]
        %v3812 = vld [vmem:[%s3809 + $0x20] sm:$0xff]
        %v3813 = vld [vmem:[%s3809 + $0x30] sm:$0xff]
        %v3814 = vld [vmem:[%s3809 + $0x40] sm:$0xff]
        %v3815 = vld [vmem:[%s3809 + $0x50] sm:$0xff]
        %v3816 = vld [vmem:[%s3809 + $0x60] sm:$0xff]
        %v3817 = vld [vmem:[%s3809 + $0x70] sm:$0xff]
        %v3818 = vpack.c.bf16 %v3811, %v3810
        %v3819 = vpack.c.bf16 %v3813, %v3812
        %v3820 = vpack.c.bf16 %v3815, %v3814
        %v3821 = vpack.c.bf16 %v3817, %v3816
        %s3822 = scalar_lea.vmem %s4, 48
        %v3823 = vld [vmem:[%s3822] sm:$0xf]
        %v3824 = vld [vmem:[%s3822 + $0x4] sm:$0xf]
        %v3827 = vunpack.c.l.b16 %v3823
        %v3828 = vunpack.c.l.b16 %v3824
        %v3829 = vpack.c.b16 %v3828, %v3827
        %v3832 = vsel %vm3098, %v3818, 0
        %v3835 = vsel %vm3098, %v3819, 0
        %v3838 = vsel %vm3098, %v3820, 0
        %v3841 = vsel %vm3098, %v3821, 0
        %3843 = vmatprep.subr.bf16.mxu0 0
        %3844 = vmatpush1.bf16.msra.mxu0 %v3829
        %3845 = vmatprep.subr.bf16.mxu0 0
        %3846 = vmatpush1.bf16.msra.mxu0 0
        %3847 = vmatprep.subr.bf16.mxu0 0
        %3848 = vmatpush1.bf16.msra.mxu0 0
        %3849 = vmatprep.subr.bf16.mxu0 0
        %3850 = vmatpush1.bf16.msra.mxu0 0
        %3851 = vmatprep.subr.bf16.mxu0 0
        %3852 = vmatpush1.bf16.msra.mxu0 0
        %3853 = vmatprep.subr.bf16.mxu0 0
        %3854 = vmatpush1.bf16.msra.mxu0 0
        %3855 = vmatprep.subr.bf16.mxu0 0
        %3856 = vmatpush1.bf16.msra.mxu0 0
        %3857 = vmatprep.subr.bf16.mxu0 0
        %3858 = vmatpush1.bf16.msra.mxu0 0
        %3859 = vmatprep.subr.bf16.mxu0 0
        %3860 = vmatpush1.bf16.msra.mxu0 0
        %3861 = vmatprep.subr.bf16.mxu0 0
        %3862 = vmatpush1.bf16.msra.mxu0 0
        %3863 = vmatprep.subr.bf16.mxu0 0
        %3864 = vmatpush1.bf16.msra.mxu0 0
        %3865 = vmatprep.subr.bf16.mxu0 0
        %3866 = vmatpush1.bf16.msra.mxu0 0
        %3867 = vmatprep.subr.bf16.mxu0 0
        %3868 = vmatpush1.bf16.msra.mxu0 0
        %3869 = vmatprep.subr.bf16.mxu0 0
        %3870 = vmatpush1.bf16.msra.mxu0 0
        %3871 = vmatprep.subr.bf16.mxu0 0
        %3872 = vmatpush1.bf16.msra.mxu0 0
        %3873 = vmatprep.subr.bf16.mxu0 0
        %3874 = vmatpush1.bf16.msra.mxu0 0
        %3875 = vmatprep.mubr.bf16.mxu0 0
        %3876 = vmatmul.mubr.bf16.gmra.mrb[0].mxu0 %v3832
        %v3877 = vpop.f32.mrb[0].mxu0
        %v3878 = vadd.f32 0.0, %v3877
        %v3879 = vpop.f32.mrb[0].mxu0
        %v3880 = vpop.f32.mrb[0].mxu0
        %v3881 = vadd.f32 0.0, %v3880
        %v3882 = vpop.f32.mrb[0].mxu0
        %3883 = vmatprep.mubr.bf16.mxu0 0
        %3884 = vmatmul.mubr.bf16.gmra.mrb[0].mxu0 %v3835
        %v3885 = vpop.f32.mrb[0].mxu0
        %v3886 = vadd.f32 0.0, %v3885
        %v3887 = vpop.f32.mrb[0].mxu0
        %v3888 = vpop.f32.mrb[0].mxu0
        %v3889 = vadd.f32 0.0, %v3888
        %v3890 = vpop.f32.mrb[0].mxu0
        %3891 = vmatprep.mubr.bf16.mxu0 0
        %3892 = vmatmul.mubr.bf16.gmra.mrb[0].mxu0 %v3838
        %v3893 = vpop.f32.mrb[0].mxu0
        %v3894 = vadd.f32 0.0, %v3893
        %v3895 = vpop.f32.mrb[0].mxu0
        %v3896 = vpop.f32.mrb[0].mxu0
        %v3897 = vadd.f32 0.0, %v3896
        %v3898 = vpop.f32.mrb[0].mxu0
        %3899 = vmatprep.mubr.bf16.mxu0 0
        %3900 = vmatmul.mubr.bf16.gmra.mrb[0].mxu0 %v3841
        %v3901 = vpop.f32.mrb[0].mxu0
        %v3902 = vadd.f32 0.0, %v3901
        %v3903 = vpop.f32.mrb[0].mxu0
        %v3904 = vpop.f32.mrb[0].mxu0
        %v3905 = vadd.f32 0.0, %v3904
        %v3906 = vpop.f32.mrb[0].mxu0
        %3907 = vdwg.mxu0
        %v3908 = vadd.f32 %v3801, %v3878
        %v3909 = vadd.f32 %v3802, %v3881
        %v3910 = vadd.f32 %v3803, %v3886
        %v3911 = vadd.f32 %v3804, %v3889
        %v3912 = vadd.f32 %v3805, %v3894
        %v3913 = vadd.f32 %v3806, %v3897
        %v3914 = vadd.f32 %v3807, %v3902
        %v3915 = vadd.f32 %v3808, %v3905
        %v3916 = vld [vmem:[%s3809 + $0x1] sm:$0xff]
        %v3917 = vld [vmem:[%s3809 + $0x11] sm:$0xff]
        %v3918 = vld [vmem:[%s3809 + $0x21] sm:$0xff]
        %v3919 = vld [vmem:[%s3809 + $0x31] sm:$0xff]
        %v3920 = vld [vmem:[%s3809 + $0x41] sm:$0xff]
        %v3921 = vld [vmem:[%s3809 + $0x51] sm:$0xff]
        %v3922 = vld [vmem:[%s3809 + $0x61] sm:$0xff]
        %v3923 = vld [vmem:[%s3809 + $0x71] sm:$0xff]
        %v3924 = vpack.c.bf16 %v3917, %v3916
        %v3925 = vpack.c.bf16 %v3919, %v3918
        %v3926 = vpack.c.bf16 %v3921, %v3920
        %v3927 = vpack.c.bf16 %v3923, %v3922
        %s3928 = scalar_lea.vmem %s4, 56
        %v3929 = vld [vmem:[%s3928] sm:$0xf]
        %v3930 = vld [vmem:[%s3928 + $0x4] sm:$0xf]
        %v3933 = vunpack.c.l.b16 %v3929
        %v3934 = vunpack.c.l.b16 %v3930
        %v3935 = vpack.c.b16 %v3934, %v3933
        %v3938 = vsel %vm3098, %v3924, 0
        %v3941 = vsel %vm3098, %v3925, 0
        %v3944 = vsel %vm3098, %v3926, 0
        %v3947 = vsel %vm3098, %v3927, 0
        %3949 = vmatprep.subr.bf16.mxu0 0
        %3950 = vmatpush1.bf16.msra.mxu0 %v3935
        %3951 = vmatprep.subr.bf16.mxu0 0
        %3952 = vmatpush1.bf16.msra.mxu0 0
        %3953 = vmatprep.subr.bf16.mxu0 0
        %3954 = vmatpush1.bf16.msra.mxu0 0
        %3955 = vmatprep.subr.bf16.mxu0 0
        %3956 = vmatpush1.bf16.msra.mxu0 0
        %3957 = vmatprep.subr.bf16.mxu0 0
        %3958 = vmatpush1.bf16.msra.mxu0 0
        %3959 = vmatprep.subr.bf16.mxu0 0
        %3960 = vmatpush1.bf16.msra.mxu0 0
        %3961 = vmatprep.subr.bf16.mxu0 0
        %3962 = vmatpush1.bf16.msra.mxu0 0
        %3963 = vmatprep.subr.bf16.mxu0 0
        %3964 = vmatpush1.bf16.msra.mxu0 0
        %3965 = vmatprep.subr.bf16.mxu0 0
        %3966 = vmatpush1.bf16.msra.mxu0 0
        %3967 = vmatprep.subr.bf16.mxu0 0
        %3968 = vmatpush1.bf16.msra.mxu0 0
        %3969 = vmatprep.subr.bf16.mxu0 0
        %3970 = vmatpush1.bf16.msra.mxu0 0
        %3971 = vmatprep.subr.bf16.mxu0 0
        %3972 = vmatpush1.bf16.msra.mxu0 0
        %3973 = vmatprep.subr.bf16.mxu0 0
        %3974 = vmatpush1.bf16.msra.mxu0 0
        %3975 = vmatprep.subr.bf16.mxu0 0
        %3976 = vmatpush1.bf16.msra.mxu0 0
        %3977 = vmatprep.subr.bf16.mxu0 0
        %3978 = vmatpush1.bf16.msra.mxu0 0
        %3979 = vmatprep.subr.bf16.mxu0 0
        %3980 = vmatpush1.bf16.msra.mxu0 0
        %3981 = vmatprep.mubr.bf16.mxu0 0
        %3982 = vmatmul.mubr.bf16.gmra.mrb[0].mxu0 %v3938
        %v3983 = vpop.f32.mrb[0].mxu0
        %v3984 = vadd.f32 0.0, %v3983
        %v3985 = vpop.f32.mrb[0].mxu0
        %v3986 = vpop.f32.mrb[0].mxu0
        %v3987 = vadd.f32 0.0, %v3986
        %v3988 = vpop.f32.mrb[0].mxu0
        %3989 = vmatprep.mubr.bf16.mxu0 0
        %3990 = vmatmul.mubr.bf16.gmra.mrb[0].mxu0 %v3941
        %v3991 = vpop.f32.mrb[0].mxu0
        %v3992 = vadd.f32 0.0, %v3991
        %v3993 = vpop.f32.mrb[0].mxu0
        %v3994 = vpop.f32.mrb[0].mxu0
        %v3995 = vadd.f32 0.0, %v3994
        %v3996 = vpop.f32.mrb[0].mxu0
        %3997 = vmatprep.mubr.bf16.mxu0 0
        %3998 = vmatmul.mubr.bf16.gmra.mrb[0].mxu0 %v3944
        %v3999 = vpop.f32.mrb[0].mxu0
        %v4000 = vadd.f32 0.0, %v3999
        %v4001 = vpop.f32.mrb[0].mxu0
        %v4002 = vpop.f32.mrb[0].mxu0
        %v4003 = vadd.f32 0.0, %v4002
        %v4004 = vpop.f32.mrb[0].mxu0
        %4005 = vmatprep.mubr.bf16.mxu0 0
        %4006 = vmatmul.mubr.bf16.gmra.mrb[0].mxu0 %v3947
        %v4007 = vpop.f32.mrb[0].mxu0
        %v4008 = vadd.f32 0.0, %v4007
        %v4009 = vpop.f32.mrb[0].mxu0
        %v4010 = vpop.f32.mrb[0].mxu0
        %v4011 = vadd.f32 0.0, %v4010
        %v4012 = vpop.f32.mrb[0].mxu0
        %4013 = vdwg.mxu0
        %v4014 = vadd.f32 %v3908, %v3984
        %v4015 = vadd.f32 %v3909, %v3987
        %v4016 = vadd.f32 %v3910, %v3992
        %v4017 = vadd.f32 %v3911, %v3995
        %v4018 = vadd.f32 %v3912, %v4000
        %v4019 = vadd.f32 %v3913, %v4003
        %v4020 = vadd.f32 %v3914, %v4008
        %v4021 = vadd.f32 %v3915, %v4011
        %v4022 = vld [vmem:[%s3809 + $0x2] sm:$0xff]
        %v4023 = vld [vmem:[%s3809 + $0x12] sm:$0xff]
        %v4024 = vld [vmem:[%s3809 + $0x22] sm:$0xff]
        %v4025 = vld [vmem:[%s3809 + $0x32] sm:$0xff]
        %v4026 = vld [vmem:[%s3809 + $0x42] sm:$0xff]
        %v4027 = vld [vmem:[%s3809 + $0x52] sm:$0xff]
        %v4028 = vld [vmem:[%s3809 + $0x62] sm:$0xff]
        %v4029 = vld [vmem:[%s3809 + $0x72] sm:$0xff]
        %v4030 = vpack.c.bf16 %v4023, %v4022
        %v4031 = vpack.c.bf16 %v4025, %v4024
        %v4032 = vpack.c.bf16 %v4027, %v4026
        %v4033 = vpack.c.bf16 %v4029, %v4028
        %s4034 = scalar_lea.vmem %s4, 64
        %v4035 = vld [vmem:[%s4034] sm:$0xf]
        %v4036 = vld [vmem:[%s4034 + $0x4] sm:$0xf]
        %v4039 = vunpack.c.l.b16 %v4035
        %v4040 = vunpack.c.l.b16 %v4036
        %v4041 = vpack.c.b16 %v4040, %v4039
        %v4044 = vsel %vm3098, %v4030, 0
        %v4047 = vsel %vm3098, %v4031, 0
        %v4050 = vsel %vm3098, %v4032, 0
        %v4053 = vsel %vm3098, %v4033, 0
        %4055 = vmatprep.subr.bf16.mxu0 0
        %4056 = vmatpush1.bf16.msra.mxu0 %v4041
        %4057 = vmatprep.subr.bf16.mxu0 0
        %4058 = vmatpush1.bf16.msra.mxu0 0
        %4059 = vmatprep.subr.bf16.mxu0 0
        %4060 = vmatpush1.bf16.msra.mxu0 0
        %4061 = vmatprep.subr.bf16.mxu0 0
        %4062 = vmatpush1.bf16.msra.mxu0 0
        %4063 = vmatprep.subr.bf16.mxu0 0
        %4064 = vmatpush1.bf16.msra.mxu0 0
        %4065 = vmatprep.subr.bf16.mxu0 0
        %4066 = vmatpush1.bf16.msra.mxu0 0
        %4067 = vmatprep.subr.bf16.mxu0 0
        %4068 = vmatpush1.bf16.msra.mxu0 0
        %4069 = vmatprep.subr.bf16.mxu0 0
        %4070 = vmatpush1.bf16.msra.mxu0 0
        %4071 = vmatprep.subr.bf16.mxu0 0
        %4072 = vmatpush1.bf16.msra.mxu0 0
        %4073 = vmatprep.subr.bf16.mxu0 0
        %4074 = vmatpush1.bf16.msra.mxu0 0
        %4075 = vmatprep.subr.bf16.mxu0 0
        %4076 = vmatpush1.bf16.msra.mxu0 0
        %4077 = vmatprep.subr.bf16.mxu0 0
        %4078 = vmatpush1.bf16.msra.mxu0 0
        %4079 = vmatprep.subr.bf16.mxu0 0
        %4080 = vmatpush1.bf16.msra.mxu0 0
        %4081 = vmatprep.subr.bf16.mxu0 0
        %4082 = vmatpush1.bf16.msra.mxu0 0
        %4083 = vmatprep.subr.bf16.mxu0 0
        %4084 = vmatpush1.bf16.msra.mxu0 0
        %4085 = vmatprep.subr.bf16.mxu0 0
        %4086 = vmatpush1.bf16.msra.mxu0 0
        %4087 = vmatprep.mubr.bf16.mxu0 0
        %4088 = vmatmul.mubr.bf16.gmra.mrb[0].mxu0 %v4044
        %v4089 = vpop.f32.mrb[0].mxu0
        %v4090 = vadd.f32 0.0, %v4089
        %v4091 = vpop.f32.mrb[0].mxu0
        %v4092 = vpop.f32.mrb[0].mxu0
        %v4093 = vadd.f32 0.0, %v4092
        %v4094 = vpop.f32.mrb[0].mxu0
        %4095 = vmatprep.mubr.bf16.mxu0 0
        %4096 = vmatmul.mubr.bf16.gmra.mrb[0].mxu0 %v4047
        %v4097 = vpop.f32.mrb[0].mxu0
        %v4098 = vadd.f32 0.0, %v4097
        %v4099 = vpop.f32.mrb[0].mxu0
        %v4100 = vpop.f32.mrb[0].mxu0
        %v4101 = vadd.f32 0.0, %v4100
        %v4102 = vpop.f32.mrb[0].mxu0
        %4103 = vmatprep.mubr.bf16.mxu0 0
        %4104 = vmatmul.mubr.bf16.gmra.mrb[0].mxu0 %v4050
        %v4105 = vpop.f32.mrb[0].mxu0
        %v4106 = vadd.f32 0.0, %v4105
        %v4107 = vpop.f32.mrb[0].mxu0
        %v4108 = vpop.f32.mrb[0].mxu0
        %v4109 = vadd.f32 0.0, %v4108
        %v4110 = vpop.f32.mrb[0].mxu0
        %4111 = vmatprep.mubr.bf16.mxu0 0
        %4112 = vmatmul.mubr.bf16.gmra.mrb[0].mxu0 %v4053
        %v4113 = vpop.f32.mrb[0].mxu0
        %v4114 = vadd.f32 0.0, %v4113
        %v4115 = vpop.f32.mrb[0].mxu0
        %v4116 = vpop.f32.mrb[0].mxu0
        %v4117 = vadd.f32 0.0, %v4116
        %v4118 = vpop.f32.mrb[0].mxu0
        %4119 = vdwg.mxu0
        %v4120 = vadd.f32 %v4014, %v4090
        %v4121 = vadd.f32 %v4015, %v4093
        %v4122 = vadd.f32 %v4016, %v4098
        %v4123 = vadd.f32 %v4017, %v4101
        %v4124 = vadd.f32 %v4018, %v4106
        %v4125 = vadd.f32 %v4019, %v4109
        %v4126 = vadd.f32 %v4020, %v4114
        %v4127 = vadd.f32 %v4021, %v4117
        %v4128 = vld [vmem:[%s5] sm:$0x1]
        %v4130 = vlaneseq
        %v4131 = vshrl.u32 %v4130, 7
        %v4132 = vsub.s32 0, %v4131
        %v4133 = vrot.slane %v4128, %v4132
        %v4135 = vmul.f32 %v4120, %v4133
        %v4136 = vmul.f32 %v4121, %v4133
        %v4137 = vmul.f32 %v4122, %v4133
        %v4138 = vmul.f32 %v4123, %v4133
        %v4139 = vmul.f32 %v4124, %v4133
        %v4140 = vmul.f32 %v4125, %v4133
        %v4141 = vmul.f32 %v4126, %v4133
        %v4142 = vmul.f32 %v4127, %v4133
        %v4143 = vld [vmem:[%s6] sm:$0x1]
        %v4145 = vlaneseq
        %v4146 = vshrl.u32 %v4145, 7
        %v4147 = vsub.s32 0, %v4146
        %v4148 = vrot.slane %v4143, %v4147
        %v4150 = vadd.f32 %v4135, %v4148
        %v4151 = vadd.f32 %v4136, %v4148
        %v4152 = vadd.f32 %v4137, %v4148
        %v4153 = vadd.f32 %v4138, %v4148
        %v4154 = vadd.f32 %v4139, %v4148
        %v4155 = vadd.f32 %v4140, %v4148
        %v4156 = vadd.f32 %v4141, %v4148
        %v4157 = vadd.f32 %v4142, %v4148
        %v4158 = vmax.f32 %v4150, 0.0
        %v4159 = vmax.f32 %v4151, 0.0
        %v4160 = vmax.f32 %v4152, 0.0
        %v4161 = vmax.f32 %v4153, 0.0
        %v4162 = vmax.f32 %v4154, 0.0
        %v4163 = vmax.f32 %v4155, 0.0
        %v4164 = vmax.f32 %v4156, 0.0
        %v4165 = vmax.f32 %v4157, 0.0
        %v4166 = vmax.f32 %v4158, %v4159
        %v4167 = vmax.f32 %v4160, %v4161
        %v4168 = vmax.f32 %v4162, %v4163
        %v4169 = vmax.f32 %v4164, %v4165
        %vm4170 = vcmask 261120
        %4171 = vst.msk [vmem:[#allocation5] sm:$0xff] %vm4170, %v4166
        %4172 = vst.msk [vmem:[#allocation5 + $0x8] sm:$0xff] %vm4170, %v4167
        %4173 = vst.msk [vmem:[#allocation5 + $0x10] sm:$0xff] %vm4170, %v4168
        %4174 = vst.msk [vmem:[#allocation5 + $0x18] sm:$0xff] %vm4170, %v4169
        %v4175 = vld [vmem:[#allocation5] ss:$2 sm:$0xf]
        %s4176 = scalar_lea.vmem [#allocation5], 8
        %v4177 = vld [vmem:[%s4176] ss:$2 sm:$0xf]
        %s4178 = scalar_lea.vmem [#allocation5], 16
        %v4179 = vld [vmem:[%s4178] ss:$2 sm:$0xf]
        %s4180 = scalar_lea.vmem [#allocation5], 24
        %v4181 = vld [vmem:[%s4180] ss:$2 sm:$0xf]
        %s4182 = scalar_lea.vmem [#allocation5], 1
        %v4183 = vld [vmem:[%s4182] ss:$2 sm:$0xf]
        %s4184 = scalar_lea.vmem [#allocation5], 9
        %v4185 = vld [vmem:[%s4184] ss:$2 sm:$0xf]
        %s4186 = scalar_lea.vmem [#allocation5], 17
        %v4187 = vld [vmem:[%s4186] ss:$2 sm:$0xf]
        %s4188 = scalar_lea.vmem [#allocation5], 25
        %v4189 = vld [vmem:[%s4188] ss:$2 sm:$0xf]
        %v4190 = vmax.f32 %v4175, %v4183
        %v4191 = vmax.f32 %v4177, %v4185
        %v4192 = vmax.f32 %v4179, %v4187
        %v4193 = vmax.f32 %v4181, %v4189
        %vm4194 = vcmask 257024
        %4195 = vst.msk [vmem:[%s271] sm:$0xf] %vm4194, %v4190
        %4196 = vst.msk [vmem:[%s271 + $0x4] sm:$0xf] %vm4194, %v4191
        %4197 = vst.msk [vmem:[%s271 + $0x8] sm:$0xf] %vm4194, %v4192
        %4198 = vst.msk [vmem:[%s271 + $0xc] sm:$0xf] %vm4194, %v4193
        %s4199 = sand.u32 %s181, 1
        %s4200 = scalar_lea.sflag [#allocation7], %s4199
        %s4201 = sand.u32 %s181, 1
        %s4202 = smul.addr %s4201, 16
        %s4203 = scalar_lea.vmem [#allocation6], %s4202
        // Predicated region
        $region49: #{tpu_custom_call.1} parent=47 // pred_check
          %p4204 = pneg %p191
        $region50: #{tpu_custom_call.1} parent=47 // pred_check_branch
          %4206 = sbr.rel (%p4204) target = $region52
        $region51: #{tpu_custom_call.1} parent=47 // pred_region
          %s4208 = ssub.s32 256, 256
          %4209 = vsyncadd %s4200, %s4208
          %s4210 = smul.addr %s21, 4
          %s4211 = smul.addr %s4210, 64
          %s4212 = scalar_lea.hbm %s7, %s4211
          %s4213 = sshll.u32 %s4203, 4
          %s4214 = int_to_ptr.vmem [resolvable:$true] %s4213
          %4219 = dma.vmem_to_hbm [thread:$0]  %s4214, 256, %s4212, %s4200, 64, 64, 4
        $region52: #{tpu_custom_call.1} parent=47 // pred_fallthru
          _
      $region48: #{tpu_custom_call.1} parent=5 // pred_fallthru
        _
      %p4220 = scmp.le.s32.totalorder 2, %s16
      // Predicated region
      $region53: #{tpu_custom_call.1} parent=5 // pred_check
        %p4221 = pneg %p4220
      $region54: #{tpu_custom_call.1} parent=5 // pred_check_branch
        %4223 = sbr.rel (%p4221) target = $region56
      $region55: #{tpu_custom_call.1} parent=5 // pred_region
        %s4224 = ssub.s32 %s16, 2
        // Predicated region
        $region57: #{tpu_custom_call.1} parent=55 // pred_check
          %p4225 = pneg %p197
        $region58: #{tpu_custom_call.1} parent=55 // pred_check_branch
          %4227 = sbr.rel (%p4225) target = $region60
        $region59: #{tpu_custom_call.1} parent=55 // pred_region
          %s4228 = sand.u32 %s182, 1
          %s4229 = scalar_lea.sflag [#allocation7], %s4228
          %s4230 = sand.u32 %s182, 1
          %s4231 = smul.addr %s4230, 16
          %s4232 = scalar_lea.vmem [#allocation6], %s4231
          %4233 = dma.done %s4229, 256
        $region60: #{tpu_custom_call.1} parent=55 // pred_fallthru
          _
      $region56: #{tpu_custom_call.1} parent=5 // pred_fallthru
        _
    $region6: #{tpu_custom_call.1} parent=1 // loop_footer
      %s20 = sadd.s32 1, %s16
    $region7: #{tpu_custom_call.1} parent=1 // loop_footer_branch
      %15 = sbr.rel target = $region3
    $region8: #{tpu_custom_call.1} parent=1 // loop_exit
      _
    %4234 = vsyncpa [#allocation7], 1
    %s4235 = scalar_lea.sflag [#allocation7], 1
    %4236 = vsyncpa %s4235, 1

</llo_original>
